<compile_context>
chip_gen: v7x
topology: tpu7x:2x2x1
jax: 0.10.0
libtpu: 0.0.40
codegen_flags: <defaults>
</compile_context>

<pallas_src>
import jax
import jax.numpy as jnp
from jax.experimental import pallas as pl
from jax.experimental.pallas import tpu as pltpu


# --------------------------------------------------------------------------
# Fused kernel: multi-layer LSTM + fc_enc + 'general' attention + fc_out + fc
# One grid program per batch block; everything batch-major.
# --------------------------------------------------------------------------
def _decoder_attn_kernel(dec_ref, z_ref, enc_ref, h0_ref, c0_ref,
                         w_ih_ref, w_hh_ref, b_g_ref,
                         w_enc_ref, b_enc_ref, w_attn_ref,
                         w_out_h_ref, w_out_c_ref, b_out_ref,
                         w_fc_ref, b_fc_ref,
                         logits_ref, hT_ref, cT_ref):
    f32, bf16 = jnp.float32, jnp.bfloat16
    bb, T, embed = dec_ref.shape
    L, Din, H4 = w_ih_ref.shape
    H = H4 // 4
    E = enc_ref.shape[1]

    h0 = h0_ref[...]                                  # (bb, L, H) f32
    c0 = c0_ref[...]

    # ---------------- LSTM: layer-outer / time-inner --------------------
    def run_layer(l, xp):
        # xp: (bb, T, 4H) f32 — hoisted input projection (bias already added)
        w_hh_l = w_hh_ref[l]                          # (H, 4H) bf16
        h = h0[:, l, :]
        c = c0[:, l, :]
        hs = []
        for t in range(T):                            # full static unroll
            gates = xp[:, t, :] + jnp.dot(h.astype(bf16), w_hh_l,
                                          preferred_element_type=f32)
            # Two full-width EUP passes over the whole (bb, 4H) gate vreg,
            # then quarter-vreg lane slices (PyTorch gate order i, f, g, o).
            sig = jax.nn.sigmoid(gates)
            tnh = jnp.tanh(gates)
            i_g = sig[:, 0 * H:1 * H]
            f_g = sig[:, 1 * H:2 * H]
            g_g = tnh[:, 2 * H:3 * H]
            o_g = sig[:, 3 * H:4 * H]
            c = f_g * c + i_g * g_g
            h = o_g * jnp.tanh(c)
            hs.append(h)                              # stays in registers
        hT_ref[:, l, :] = h
        cT_ref[:, l, :] = c
        # Materialize the layer's output sequence once, off the serial path.
        return jnp.stack(hs, axis=1)                  # (bb, T, H) f32

    # layer 0: split input GEMM into token part (bb*T rows) and z part
    # (bb rows, broadcast over T) — avoids concat([x, z]) entirely.
    w0 = w_ih_ref[0]                                  # (Din, 4H) bf16
    xp0 = jnp.dot(dec_ref[...].reshape(bb * T, embed),          # bf16 input
                  w0[:embed, :],
                  preferred_element_type=f32).reshape(bb, T, H4)
    zc = jnp.dot(z_ref[:, 0, :], w0[embed:, :],
                 preferred_element_type=f32)          # (bb, 4H)
    seq = run_layer(0, xp0 + zc[:, None, :] + b_g_ref[0])

    for l in range(1, L):
        # previous layer's full sequence -> one hoisted GEMM
        xp = (jnp.dot(seq.reshape(bb * T, H).astype(bf16),
                      w_ih_ref[l], preferred_element_type=f32)
              + b_g_ref[l]).reshape(bb, T, H4)
        seq = run_layer(l, xp)

    # -------- fc_enc + 'general' attention + fc_out + fc (vocab) --------
    h_flat = seq.reshape(bb * T, H).astype(bf16)      # last layer, (bb*T, H)

    enc_proj = (jnp.dot(enc_ref[...].reshape(bb * E, 2 * Din),   # bf16 input
                        w_enc_ref[...], preferred_element_type=f32)
                + b_enc_ref[...])                     # (bb*E, Din)
    enc_proj = enc_proj.astype(bf16).reshape(bb, E, Din)

    proj_h = jnp.dot(h_flat, w_attn_ref[...],
                     preferred_element_type=f32)      # (bb*T, H)
    scores = jnp.einsum("btd,bed->bte",
                        proj_h.astype(bf16).reshape(bb, T, H), enc_proj,
                        preferred_element_type=f32)   # (bb, T, E)
    scores = scores - jnp.max(scores, axis=-1, keepdims=True)
    p = jnp.exp(scores)                               # f32 EUP
    attn = p * pl.reciprocal(jnp.sum(p, axis=-1, keepdims=True), approx=True)

    ctx = jnp.einsum("bte,bed->btd", attn.astype(bf16), enc_proj,
                     preferred_element_type=f32)      # (bb, T, Din)

    # fc_out on concat([lstm_out, context]) done as a split matmul.
    out = (jnp.dot(h_flat, w_out_h_ref[...], preferred_element_type=f32)
           + jnp.dot(ctx.reshape(bb * T, Din).astype(bf16), w_out_c_ref[...],
                     preferred_element_type=f32)
           + b_out_ref[...])                          # (bb*T, H)

    logits = (jnp.dot(out.astype(bf16), w_fc_ref[...],
                      preferred_element_type=f32)
              + b_fc_ref[...])                        # (bb*T, Vp), lane-dense
    logits_ref[...] = logits.reshape(bb, T, logits.shape[-1])


# --------------------------------------------------------------------------
# Wrapper
# --------------------------------------------------------------------------
def decoder_attention_forward(p, decoder_input, z, drop_prob, encoder_outputs,
                              initial_state=None, dropout_key=None,
                              batch_block=None):
    B, T, embed = decoder_input.shape
    latent = z.shape[-1]
    L, Din, H4 = p["w_ih"].shape
    H = H4 // 4
    E = encoder_outputs.shape[1]
    V = p["w_fc"].shape[1]
    Vp = ((V + 127) // 128) * 128                     # lane-dense logits

    # dropout glue (F.dropout randomness lives outside the kernel)
    if drop_prob > 0.0:
        keep = 1.0 - drop_prob
        mask = jax.random.bernoulli(dropout_key, keep, decoder_input.shape)
        decoder_input = jnp.where(mask, decoder_input / keep, 0.0)

    if initial_state is None:
        h0 = jnp.zeros((L, B, H), jnp.float32)
        c0 = jnp.zeros((L, B, H), jnp.float32)
    else:
        h0, c0 = initial_state
    h0_blh = jnp.transpose(h0, (1, 0, 2))             # (B, L, H): batch-major
    c0_blh = jnp.transpose(c0, (1, 0, 2))

    # bf16 MXU operands (accumulation stays f32 inside the kernel).  The
    # GEMM-only activations are shipped to the kernel as bf16 too (halves
    # their DMA bytes / VMEM footprint); h0/c0 stay f32.
    bf16 = jnp.bfloat16
    dec_bf = decoder_input.astype(bf16)
    z3 = z[:, None, :].astype(bf16)                   # (B, 1, latent)
    enc_bf = encoder_outputs.astype(bf16)
    w_ih = p["w_ih"].astype(bf16)
    w_hh = p["w_hh"].astype(bf16)
    w_enc = p["w_enc"].astype(bf16)
    w_attn = p["w_attn"].astype(bf16)
    w_out_h = p["w_out_h"].astype(bf16)
    w_out_c = p["w_out_c"].astype(bf16)
    w_fc = jnp.zeros((Din, Vp), bf16).at[:, :V].set(p["w_fc"].astype(bf16))
    b_fc = jnp.zeros((1, Vp), jnp.float32).at[:, :V].set(p["b_fc"])

    # Batch blocking: single block by default (v5e/v6e are 1 TC -> the grid is
    # a serial loop, and bigger bb*T fills the MXU).  Only split across v7x's
    # two cores when each block still keeps >= 8 batch rows.
    if batch_block is None:
        batch_block = B // 2 if (B % 2 == 0 and B // 2 >= 8) else B
    bb = batch_block
    assert B % bb == 0
    nb = B // bb

    def full(shape):
        n = len(shape)
        return pl.BlockSpec(shape, lambda i, _n=n: (0,) * _n)

    logits_pad, hT_blh, cT_blh = pl.pallas_call(
        _decoder_attn_kernel,
        grid=(nb,),
        in_specs=[
            pl.BlockSpec((bb, T, embed), lambda i: (i, 0, 0)),
            pl.BlockSpec((bb, 1, latent), lambda i: (i, 0, 0)),
            pl.BlockSpec((bb, E, 2 * Din), lambda i: (i, 0, 0)),
            pl.BlockSpec((bb, L, H), lambda i: (i, 0, 0)),
            pl.BlockSpec((bb, L, H), lambda i: (i, 0, 0)),
            full(w_ih.shape), full(w_hh.shape), full(p["b_gates"].shape),
            full(w_enc.shape), full(p["b_enc"].shape), full(w_attn.shape),
            full(w_out_h.shape), full(w_out_c.shape), full(p["b_out"].shape),
            full(w_fc.shape), full(b_fc.shape),
        ],
        out_specs=[
            pl.BlockSpec((bb, T, Vp), lambda i: (i, 0, 0)),
            pl.BlockSpec((bb, L, H), lambda i: (i, 0, 0)),
            pl.BlockSpec((bb, L, H), lambda i: (i, 0, 0)),
        ],
        out_shape=(jax.ShapeDtypeStruct((B, T, Vp), jnp.float32),
                   jax.ShapeDtypeStruct((B, L, H), jnp.float32),
                   jax.ShapeDtypeStruct((B, L, H), jnp.float32)),
        compiler_params=pltpu.CompilerParams(
            dimension_semantics=("parallel",)),
    )(dec_bf, z3, enc_bf, h0_blh, c0_blh,
      w_ih, w_hh, p["b_gates"], w_enc, p["b_enc"], w_attn,
      w_out_h, w_out_c, p["b_out"], w_fc, b_fc)

    logits = logits_pad[:, :, :V]
    hT = jnp.transpose(hT_blh, (1, 0, 2))             # (L, B, H) like PyTorch
    cT = jnp.transpose(cT_blh, (1, 0, 2))
    return logits, (hT, cT)


# --------------------------------------------------------------------------
# Parameter construction (deterministic, synthetic)
# --------------------------------------------------------------------------
def init_params(key, *, latent, embed, hidden, num_layers, vocab):
    input_size = latent + embed
    # The module's attention bmm / fc_out reshape requires input_size == hidden
    assert input_size == hidden
    ks = jax.random.split(key, 12)

    def rnd(k, shape, scale=0.1):
        return scale * jax.random.normal(k, shape, dtype=jnp.float32)

    H = hidden
    p = {}
    # LSTM: PyTorch gate order (i, f, g, o); weights stored pre-transposed.
    p["w_ih"] = rnd(ks[0], (num_layers, input_size, 4 * H))
    p["w_hh"] = rnd(ks[1], (num_layers, H, 4 * H))
    p["b_gates"] = (rnd(ks[2], (num_layers, 4 * H))
                    + rnd(ks[3], (num_layers, 4 * H))
                    ).reshape(num_layers, 1, 4 * H)
    # attention 'general' fc (no bias), stored as W.T
    p["w_attn"] = rnd(ks[4], (H, H))
    # fc_enc: Linear(2*input_size -> input_size)
    p["w_enc"] = rnd(ks[5], (2 * input_size, input_size))
    p["b_enc"] = rnd(ks[6], (1, input_size))
    # fc_out: Linear(2*input_size -> hidden), split for concat-free matmul
    w_out = rnd(ks[7], (2 * input_size, H))
    p["w_out_h"] = w_out[:H]
    p["w_out_c"] = w_out[H:]
    p["b_out"] = rnd(ks[8], (1, H))
    # fc: Linear(input_size -> vocab)
    p["w_fc"] = rnd(ks[9], (input_size, vocab),
                    scale=(2.0 / (input_size + vocab)) ** 0.5)
    p["b_fc"] = rnd(ks[10], (1, vocab))
    return p


# --------------------------------------------------------------------------
# Pure-JAX f32 reference (mirrors the PyTorch forward) for correctness check.
# --------------------------------------------------------------------------
def reference_forward(p, decoder_input, z, encoder_outputs):
    B, T, _ = decoder_input.shape
    L, Din, H4 = p["w_ih"].shape
    H = H4 // 4
    z_rep = jnp.broadcast_to(z[:, None, :], (B, T, z.shape[-1]))
    x = jnp.concatenate([decoder_input, z_rep], axis=-1)
    x_tbd = jnp.transpose(x, (1, 0, 2))

    h = jnp.zeros((L, B, H), jnp.float32)
    c = jnp.zeros((L, B, H), jnp.float32)
    outs = []
    for t in range(T):
        inp = x_tbd[t]
        nh, nc = [], []
        for l in range(L):
            gates = inp @ p["w_ih"][l] + h[l] @ p["w_hh"][l] + p["b_gates"][l]
            i_g = jax.nn.sigmoid(gates[:, 0 * H:1 * H])
            f_g = jax.nn.sigmoid(gates[:, 1 * H:2 * H])
            g_g = jnp.tanh(gates[:, 2 * H:3 * H])
            o_g = jax.nn.sigmoid(gates[:, 3 * H:4 * H])
            cl = f_g * c[l] + i_g * g_g
            hl = o_g * jnp.tanh(cl)
            nh.append(hl); nc.append(cl)
            inp = hl
        h, c = jnp.stack(nh), jnp.stack(nc)
        outs.append(inp)
    lstm_out = jnp.stack(outs, axis=1)                       # (B, T, H)

    enc_proj = encoder_outputs @ p["w_enc"] + p["b_enc"]     # (B, E, Din)
    proj_h = lstm_out @ p["w_attn"]
    scores = jnp.einsum("btd,bed->bte", proj_h, enc_proj)
    attn = jax.nn.softmax(scores, axis=-1)
    context = jnp.einsum("bte,bed->btd", attn, enc_proj)
    out = lstm_out @ p["w_out_h"] + context @ p["w_out_c"] + p["b_out"]
    logits = out @ p["w_fc"] + p["b_fc"]
    return logits, (h, c)


# --------------------------------------------------------------------------
if __name__ == "__main__":
    # small, module-consistent sizes (input_size = latent + embed = hidden)
    latent, embed, hidden = 16, 16, 32
    num_layers, vocab = 2, 64
    B, T, E = 2, 8, 8
    input_size = latent + embed

    key = jax.random.PRNGKey(0)
    kp, kx, kz, ke = jax.random.split(key, 4)
    params = init_params(kp, latent=latent, embed=embed, hidden=hidden,
                         num_layers=num_layers, vocab=vocab)

    decoder_input = jax.random.normal(kx, (B, T, embed), dtype=jnp.float32)
    z = jax.random.normal(kz, (B, latent), dtype=jnp.float32)
    encoder_outputs = jax.random.normal(ke, (B, E, 2 * input_size),
                                        dtype=jnp.float32)
    drop_prob = 0.0   # deterministic run (dropout handled in glue if > 0)

    logits, (hT, cT) = decoder_attention_forward(
        params, decoder_input, z, drop_prob, encoder_outputs)
    jax.block_until_ready((logits, hT, cT))

    ref_logits, (ref_h, ref_c) = reference_forward(
        params, decoder_input, z, encoder_outputs)

    assert logits.shape == (B, T, vocab)
    assert hT.shape == (num_layers, B, hidden)
    assert cT.shape == (num_layers, B, hidden)
    # Kernel matmuls use bf16 operands (f32 accumulation); compare against the
    # pure-f32 reference with a correspondingly relaxed tolerance.
    assert jnp.allclose(logits, ref_logits, atol=4e-2, rtol=4e-2), \
        float(jnp.max(jnp.abs(logits - ref_logits)))
    assert jnp.allclose(hT, ref_h, atol=4e-2, rtol=4e-2)
    assert jnp.allclose(cT, ref_c, atol=4e-2, rtol=4e-2)

    print("KERNEL_OK")
</pallas_src>

<mosaic_0001>
module attributes {stable_mosaic.version = 11 : i64} {
  func.func @_decoder_attn_kernel(%arg0: i32, %arg1: memref<2x8x16xbf16, #tpu.memory_space<vmem>>, %arg2: memref<2x1x16xbf16, #tpu.memory_space<vmem>>, %arg3: memref<2x8x64xbf16, #tpu.memory_space<vmem>>, %arg4: memref<2x2x32xf32, #tpu.memory_space<vmem>>, %arg5: memref<2x2x32xf32, #tpu.memory_space<vmem>>, %arg6: memref<2x32x128xbf16, #tpu.memory_space<vmem>>, %arg7: memref<2x32x128xbf16, #tpu.memory_space<vmem>>, %arg8: memref<2x1x128xf32, #tpu.memory_space<vmem>>, %arg9: memref<64x32xbf16, #tpu.memory_space<vmem>>, %arg10: memref<1x32xf32, #tpu.memory_space<vmem>>, %arg11: memref<32x32xbf16, #tpu.memory_space<vmem>>, %arg12: memref<32x32xbf16, #tpu.memory_space<vmem>>, %arg13: memref<32x32xbf16, #tpu.memory_space<vmem>>, %arg14: memref<1x32xf32, #tpu.memory_space<vmem>>, %arg15: memref<32x128xbf16, #tpu.memory_space<vmem>>, %arg16: memref<1x128xf32, #tpu.memory_space<vmem>>, %arg17: memref<2x8x128xf32, #tpu.memory_space<vmem>>, %arg18: memref<2x2x32xf32, #tpu.memory_space<vmem>>, %arg19: memref<2x2x32xf32, #tpu.memory_space<vmem>>) attributes {dimension_semantics = [#tpu.dimension_semantics<parallel>], iteration_bounds = array<i64: 1>, scalar_prefetch = 0 : i64, scratch_operands = 0 : i64, tpu.core_type = #tpu.core_type<tc>, window_params = [{transform_indices = @transform_0, window_bounds = array<i64: 2, 8, 16>}, {transform_indices = @transform_1, window_bounds = array<i64: 2, 1, 16>}, {transform_indices = @transform_2, window_bounds = array<i64: 2, 8, 64>}, {transform_indices = @transform_3, window_bounds = array<i64: 2, 2, 32>}, {transform_indices = @transform_4, window_bounds = array<i64: 2, 2, 32>}, {pipeline_mode = #tpu.pipeline_mode<synchronous>, transform_indices = @transform_5, window_bounds = array<i64: 2, 32, 128>}, {pipeline_mode = #tpu.pipeline_mode<synchronous>, transform_indices = @transform_6, window_bounds = array<i64: 2, 32, 128>}, {pipeline_mode = #tpu.pipeline_mode<synchronous>, transform_indices = @transform_7, window_bounds = array<i64: 2, 1, 128>}, {pipeline_mode = #tpu.pipeline_mode<synchronous>, transform_indices = @transform_8, window_bounds = array<i64: 64, 32>}, {pipeline_mode = #tpu.pipeline_mode<synchronous>, transform_indices = @transform_9, window_bounds = array<i64: 1, 32>}, {pipeline_mode = #tpu.pipeline_mode<synchronous>, transform_indices = @transform_10, window_bounds = array<i64: 32, 32>}, {pipeline_mode = #tpu.pipeline_mode<synchronous>, transform_indices = @transform_11, window_bounds = array<i64: 32, 32>}, {pipeline_mode = #tpu.pipeline_mode<synchronous>, transform_indices = @transform_12, window_bounds = array<i64: 32, 32>}, {pipeline_mode = #tpu.pipeline_mode<synchronous>, transform_indices = @transform_13, window_bounds = array<i64: 1, 32>}, {pipeline_mode = #tpu.pipeline_mode<synchronous>, transform_indices = @transform_14, window_bounds = array<i64: 32, 128>}, {pipeline_mode = #tpu.pipeline_mode<synchronous>, transform_indices = @transform_15, window_bounds = array<i64: 1, 128>}, {transform_indices = @transform_16, window_bounds = array<i64: 2, 8, 128>}, {transform_indices = @transform_17, window_bounds = array<i64: 2, 2, 32>}, {transform_indices = @transform_18, window_bounds = array<i64: 2, 2, 32>}]} {
    %c0 = arith.constant 0 : index
    %c0_0 = arith.constant 0 : index
    %c0_1 = arith.constant 0 : index
    %0 = vector.load %arg4[%c0, %c0_0, %c0_1] : memref<2x2x32xf32, #tpu.memory_space<vmem>>, vector<2x2x32xf32>
    %c0_2 = arith.constant 0 : index
    %c0_3 = arith.constant 0 : index
    %c0_4 = arith.constant 0 : index
    %1 = vector.load %arg5[%c0_2, %c0_3, %c0_4] : memref<2x2x32xf32, #tpu.memory_space<vmem>>, vector<2x2x32xf32>
    %c0_5 = arith.constant 0 : index
    %c0_6 = arith.constant 0 : index
    %c0_7 = arith.constant 0 : index
    %2 = vector.load %arg6[%c0_5, %c0_6, %c0_7] : memref<2x32x128xbf16, #tpu.memory_space<vmem>>, vector<1x32x128xbf16>
    %3 = vector.shape_cast %2 : vector<1x32x128xbf16> to vector<32x128xbf16>
    %c0_8 = arith.constant 0 : index
    %c0_9 = arith.constant 0 : index
    %c0_10 = arith.constant 0 : index
    %4 = vector.load %arg1[%c0_8, %c0_9, %c0_10] : memref<2x8x16xbf16, #tpu.memory_space<vmem>>, vector<2x8x16xbf16>
    %5 = vector.shape_cast %4 : vector<2x8x16xbf16> to vector<16x16xbf16>
    %6 = vector.extract_strided_slice %3 {offsets = [0, 0], sizes = [16, 128], strides = [1, 1]} : vector<32x128xbf16> to vector<16x128xbf16>
    %cst = arith.constant dense<0.000000e+00> : vector<16x128xf32>
    %7 = tpu.matmul %5, %6, %cst {dimension_numbers = #tpu.dot_dimension_numbers<[1], [0], [0], [1], [0, 0, 1, 1], [], []>} : vector<16x16xbf16>, vector<16x128xbf16>, vector<16x128xf32> -> vector<16x128xf32>
    %8 = vector.shape_cast %7 : vector<16x128xf32> to vector<2x8x128xf32>
    %c0_11 = arith.constant 0 : index
    %c0_12 = arith.constant 0 : index
    %c0_13 = arith.constant 0 : index
    %9 = vector.load %arg2[%c0_11, %c0_12, %c0_13] : memref<2x1x16xbf16, #tpu.memory_space<vmem>>, vector<2x1x16xbf16>
    %10 = vector.shape_cast %9 : vector<2x1x16xbf16> to vector<2x16xbf16>
    %11 = vector.extract_strided_slice %3 {offsets = [16, 0], sizes = [16, 128], strides = [1, 1]} : vector<32x128xbf16> to vector<16x128xbf16>
    %cst_14 = arith.constant dense<0.000000e+00> : vector<2x128xf32>
    %12 = tpu.matmul %10, %11, %cst_14 {dimension_numbers = #tpu.dot_dimension_numbers<[1], [0], [0], [1], [0, 0, 1, 1], [], []>} : vector<2x16xbf16>, vector<16x128xbf16>, vector<2x128xf32> -> vector<2x128xf32>
    %13 = vector.shape_cast %12 : vector<2x128xf32> to vector<2x1x128xf32>
    %14 = vector.broadcast %13 : vector<2x1x128xf32> to vector<2x8x128xf32>
    %15 = arith.addf %8, %14 : vector<2x8x128xf32>
    %c0_15 = arith.constant 0 : index
    %c0_16 = arith.constant 0 : index
    %c0_17 = arith.constant 0 : index
    %16 = vector.load %arg8[%c0_15, %c0_16, %c0_17] : memref<2x1x128xf32, #tpu.memory_space<vmem>>, vector<1x1x128xf32>
    %17 = vector.shape_cast %16 : vector<1x1x128xf32> to vector<1x128xf32>
    %18 = vector.shape_cast %17 : vector<1x128xf32> to vector<1x1x128xf32>
    %19 = vector.broadcast %18 : vector<1x1x128xf32> to vector<2x8x128xf32>
    %20 = arith.addf %15, %19 : vector<2x8x128xf32>
    %c0_18 = arith.constant 0 : index
    %c0_19 = arith.constant 0 : index
    %c0_20 = arith.constant 0 : index
    %21 = vector.load %arg7[%c0_18, %c0_19, %c0_20] : memref<2x32x128xbf16, #tpu.memory_space<vmem>>, vector<1x32x128xbf16>
    %22 = vector.shape_cast %21 : vector<1x32x128xbf16> to vector<32x128xbf16>
    %23 = vector.extract_strided_slice %0 {offsets = [0, 0, 0], sizes = [2, 1, 32], strides = [1, 1, 1]} : vector<2x2x32xf32> to vector<2x1x32xf32>
    %24 = vector.shape_cast %23 : vector<2x1x32xf32> to vector<2x32xf32>
    %25 = vector.extract_strided_slice %1 {offsets = [0, 0, 0], sizes = [2, 1, 32], strides = [1, 1, 1]} : vector<2x2x32xf32> to vector<2x1x32xf32>
    %26 = vector.shape_cast %25 : vector<2x1x32xf32> to vector<2x32xf32>
    %27 = vector.extract_strided_slice %20 {offsets = [0, 0, 0], sizes = [2, 1, 128], strides = [1, 1, 1]} : vector<2x8x128xf32> to vector<2x1x128xf32>
    %28 = vector.shape_cast %27 : vector<2x1x128xf32> to vector<2x128xf32>
    %29 = arith.truncf %24 : vector<2x32xf32> to vector<2x32xbf16>
    %cst_21 = arith.constant dense<0.000000e+00> : vector<2x128xf32>
    %30 = tpu.matmul %29, %22, %cst_21 {dimension_numbers = #tpu.dot_dimension_numbers<[1], [0], [0], [1], [0, 0, 1, 1], [], []>} : vector<2x32xbf16>, vector<32x128xbf16>, vector<2x128xf32> -> vector<2x128xf32>
    %31 = arith.addf %28, %30 : vector<2x128xf32>
    %32 = arith.negf %31 : vector<2x128xf32>
    %33 = math.exp %32 : vector<2x128xf32>
    %cst_22 = arith.constant 1.000000e+00 : f32
    %34 = vector.broadcast %cst_22 : f32 to vector<2x128xf32>
    %35 = arith.addf %34, %33 : vector<2x128xf32>
    %36 = arith.divf %34, %35 : vector<2x128xf32>
    %37 = math.tanh %31 : vector<2x128xf32>
    %38 = vector.extract_strided_slice %36 {offsets = [0, 0], sizes = [2, 32], strides = [1, 1]} : vector<2x128xf32> to vector<2x32xf32>
    %39 = vector.extract_strided_slice %36 {offsets = [0, 32], sizes = [2, 32], strides = [1, 1]} : vector<2x128xf32> to vector<2x32xf32>
    %40 = vector.extract_strided_slice %37 {offsets = [0, 64], sizes = [2, 32], strides = [1, 1]} : vector<2x128xf32> to vector<2x32xf32>
    %41 = vector.extract_strided_slice %36 {offsets = [0, 96], sizes = [2, 32], strides = [1, 1]} : vector<2x128xf32> to vector<2x32xf32>
    %42 = arith.mulf %39, %26 : vector<2x32xf32>
    %43 = arith.mulf %38, %40 : vector<2x32xf32>
    %44 = arith.addf %42, %43 : vector<2x32xf32>
    %45 = math.tanh %44 : vector<2x32xf32>
    %46 = arith.mulf %41, %45 : vector<2x32xf32>
    %47 = vector.extract_strided_slice %20 {offsets = [0, 1, 0], sizes = [2, 1, 128], strides = [1, 1, 1]} : vector<2x8x128xf32> to vector<2x1x128xf32>
    %48 = vector.shape_cast %47 : vector<2x1x128xf32> to vector<2x128xf32>
    %49 = arith.truncf %46 : vector<2x32xf32> to vector<2x32xbf16>
    %cst_23 = arith.constant dense<0.000000e+00> : vector<2x128xf32>
    %50 = tpu.matmul %49, %22, %cst_23 {dimension_numbers = #tpu.dot_dimension_numbers<[1], [0], [0], [1], [0, 0, 1, 1], [], []>} : vector<2x32xbf16>, vector<32x128xbf16>, vector<2x128xf32> -> vector<2x128xf32>
    %51 = arith.addf %48, %50 : vector<2x128xf32>
    %52 = arith.negf %51 : vector<2x128xf32>
    %53 = math.exp %52 : vector<2x128xf32>
    %cst_24 = arith.constant 1.000000e+00 : f32
    %54 = vector.broadcast %cst_24 : f32 to vector<2x128xf32>
    %55 = arith.addf %54, %53 : vector<2x128xf32>
    %56 = arith.divf %54, %55 : vector<2x128xf32>
    %57 = math.tanh %51 : vector<2x128xf32>
    %58 = vector.extract_strided_slice %56 {offsets = [0, 0], sizes = [2, 32], strides = [1, 1]} : vector<2x128xf32> to vector<2x32xf32>
    %59 = vector.extract_strided_slice %56 {offsets = [0, 32], sizes = [2, 32], strides = [1, 1]} : vector<2x128xf32> to vector<2x32xf32>
    %60 = vector.extract_strided_slice %57 {offsets = [0, 64], sizes = [2, 32], strides = [1, 1]} : vector<2x128xf32> to vector<2x32xf32>
    %61 = vector.extract_strided_slice %56 {offsets = [0, 96], sizes = [2, 32], strides = [1, 1]} : vector<2x128xf32> to vector<2x32xf32>
    %62 = arith.mulf %59, %44 : vector<2x32xf32>
    %63 = arith.mulf %58, %60 : vector<2x32xf32>
    %64 = arith.addf %62, %63 : vector<2x32xf32>
    %65 = math.tanh %64 : vector<2x32xf32>
    %66 = arith.mulf %61, %65 : vector<2x32xf32>
    %67 = vector.extract_strided_slice %20 {offsets = [0, 2, 0], sizes = [2, 1, 128], strides = [1, 1, 1]} : vector<2x8x128xf32> to vector<2x1x128xf32>
    %68 = vector.shape_cast %67 : vector<2x1x128xf32> to vector<2x128xf32>
    %69 = arith.truncf %66 : vector<2x32xf32> to vector<2x32xbf16>
    %cst_25 = arith.constant dense<0.000000e+00> : vector<2x128xf32>
    %70 = tpu.matmul %69, %22, %cst_25 {dimension_numbers = #tpu.dot_dimension_numbers<[1], [0], [0], [1], [0, 0, 1, 1], [], []>} : vector<2x32xbf16>, vector<32x128xbf16>, vector<2x128xf32> -> vector<2x128xf32>
    %71 = arith.addf %68, %70 : vector<2x128xf32>
    %72 = arith.negf %71 : vector<2x128xf32>
    %73 = math.exp %72 : vector<2x128xf32>
    %cst_26 = arith.constant 1.000000e+00 : f32
    %74 = vector.broadcast %cst_26 : f32 to vector<2x128xf32>
    %75 = arith.addf %74, %73 : vector<2x128xf32>
    %76 = arith.divf %74, %75 : vector<2x128xf32>
    %77 = math.tanh %71 : vector<2x128xf32>
    %78 = vector.extract_strided_slice %76 {offsets = [0, 0], sizes = [2, 32], strides = [1, 1]} : vector<2x128xf32> to vector<2x32xf32>
    %79 = vector.extract_strided_slice %76 {offsets = [0, 32], sizes = [2, 32], strides = [1, 1]} : vector<2x128xf32> to vector<2x32xf32>
    %80 = vector.extract_strided_slice %77 {offsets = [0, 64], sizes = [2, 32], strides = [1, 1]} : vector<2x128xf32> to vector<2x32xf32>
    %81 = vector.extract_strided_slice %76 {offsets = [0, 96], sizes = [2, 32], strides = [1, 1]} : vector<2x128xf32> to vector<2x32xf32>
    %82 = arith.mulf %79, %64 : vector<2x32xf32>
    %83 = arith.mulf %78, %80 : vector<2x32xf32>
    %84 = arith.addf %82, %83 : vector<2x32xf32>
    %85 = math.tanh %84 : vector<2x32xf32>
    %86 = arith.mulf %81, %85 : vector<2x32xf32>
    %87 = vector.extract_strided_slice %20 {offsets = [0, 3, 0], sizes = [2, 1, 128], strides = [1, 1, 1]} : vector<2x8x128xf32> to vector<2x1x128xf32>
    %88 = vector.shape_cast %87 : vector<2x1x128xf32> to vector<2x128xf32>
    %89 = arith.truncf %86 : vector<2x32xf32> to vector<2x32xbf16>
    %cst_27 = arith.constant dense<0.000000e+00> : vector<2x128xf32>
    %90 = tpu.matmul %89, %22, %cst_27 {dimension_numbers = #tpu.dot_dimension_numbers<[1], [0], [0], [1], [0, 0, 1, 1], [], []>} : vector<2x32xbf16>, vector<32x128xbf16>, vector<2x128xf32> -> vector<2x128xf32>
    %91 = arith.addf %88, %90 : vector<2x128xf32>
    %92 = arith.negf %91 : vector<2x128xf32>
    %93 = math.exp %92 : vector<2x128xf32>
    %cst_28 = arith.constant 1.000000e+00 : f32
    %94 = vector.broadcast %cst_28 : f32 to vector<2x128xf32>
    %95 = arith.addf %94, %93 : vector<2x128xf32>
    %96 = arith.divf %94, %95 : vector<2x128xf32>
    %97 = math.tanh %91 : vector<2x128xf32>
    %98 = vector.extract_strided_slice %96 {offsets = [0, 0], sizes = [2, 32], strides = [1, 1]} : vector<2x128xf32> to vector<2x32xf32>
    %99 = vector.extract_strided_slice %96 {offsets = [0, 32], sizes = [2, 32], strides = [1, 1]} : vector<2x128xf32> to vector<2x32xf32>
    %100 = vector.extract_strided_slice %97 {offsets = [0, 64], sizes = [2, 32], strides = [1, 1]} : vector<2x128xf32> to vector<2x32xf32>
    %101 = vector.extract_strided_slice %96 {offsets = [0, 96], sizes = [2, 32], strides = [1, 1]} : vector<2x128xf32> to vector<2x32xf32>
    %102 = arith.mulf %99, %84 : vector<2x32xf32>
    %103 = arith.mulf %98, %100 : vector<2x32xf32>
    %104 = arith.addf %102, %103 : vector<2x32xf32>
    %105 = math.tanh %104 : vector<2x32xf32>
    %106 = arith.mulf %101, %105 : vector<2x32xf32>
    %107 = vector.extract_strided_slice %20 {offsets = [0, 4, 0], sizes = [2, 1, 128], strides = [1, 1, 1]} : vector<2x8x128xf32> to vector<2x1x128xf32>
    %108 = vector.shape_cast %107 : vector<2x1x128xf32> to vector<2x128xf32>
    %109 = arith.truncf %106 : vector<2x32xf32> to vector<2x32xbf16>
    %cst_29 = arith.constant dense<0.000000e+00> : vector<2x128xf32>
    %110 = tpu.matmul %109, %22, %cst_29 {dimension_numbers = #tpu.dot_dimension_numbers<[1], [0], [0], [1], [0, 0, 1, 1], [], []>} : vector<2x32xbf16>, vector<32x128xbf16>, vector<2x128xf32> -> vector<2x128xf32>
    %111 = arith.addf %108, %110 : vector<2x128xf32>
    %112 = arith.negf %111 : vector<2x128xf32>
    %113 = math.exp %112 : vector<2x128xf32>
    %cst_30 = arith.constant 1.000000e+00 : f32
    %114 = vector.broadcast %cst_30 : f32 to vector<2x128xf32>
    %115 = arith.addf %114, %113 : vector<2x128xf32>
    %116 = arith.divf %114, %115 : vector<2x128xf32>
    %117 = math.tanh %111 : vector<2x128xf32>
    %118 = vector.extract_strided_slice %116 {offsets = [0, 0], sizes = [2, 32], strides = [1, 1]} : vector<2x128xf32> to vector<2x32xf32>
    %119 = vector.extract_strided_slice %116 {offsets = [0, 32], sizes = [2, 32], strides = [1, 1]} : vector<2x128xf32> to vector<2x32xf32>
    %120 = vector.extract_strided_slice %117 {offsets = [0, 64], sizes = [2, 32], strides = [1, 1]} : vector<2x128xf32> to vector<2x32xf32>
    %121 = vector.extract_strided_slice %116 {offsets = [0, 96], sizes = [2, 32], strides = [1, 1]} : vector<2x128xf32> to vector<2x32xf32>
    %122 = arith.mulf %119, %104 : vector<2x32xf32>
    %123 = arith.mulf %118, %120 : vector<2x32xf32>
    %124 = arith.addf %122, %123 : vector<2x32xf32>
    %125 = math.tanh %124 : vector<2x32xf32>
    %126 = arith.mulf %121, %125 : vector<2x32xf32>
    %127 = vector.extract_strided_slice %20 {offsets = [0, 5, 0], sizes = [2, 1, 128], strides = [1, 1, 1]} : vector<2x8x128xf32> to vector<2x1x128xf32>
    %128 = vector.shape_cast %127 : vector<2x1x128xf32> to vector<2x128xf32>
    %129 = arith.truncf %126 : vector<2x32xf32> to vector<2x32xbf16>
    %cst_31 = arith.constant dense<0.000000e+00> : vector<2x128xf32>
    %130 = tpu.matmul %129, %22, %cst_31 {dimension_numbers = #tpu.dot_dimension_numbers<[1], [0], [0], [1], [0, 0, 1, 1], [], []>} : vector<2x32xbf16>, vector<32x128xbf16>, vector<2x128xf32> -> vector<2x128xf32>
    %131 = arith.addf %128, %130 : vector<2x128xf32>
    %132 = arith.negf %131 : vector<2x128xf32>
    %133 = math.exp %132 : vector<2x128xf32>
    %cst_32 = arith.constant 1.000000e+00 : f32
    %134 = vector.broadcast %cst_32 : f32 to vector<2x128xf32>
    %135 = arith.addf %134, %133 : vector<2x128xf32>
    %136 = arith.divf %134, %135 : vector<2x128xf32>
    %137 = math.tanh %131 : vector<2x128xf32>
    %138 = vector.extract_strided_slice %136 {offsets = [0, 0], sizes = [2, 32], strides = [1, 1]} : vector<2x128xf32> to vector<2x32xf32>
    %139 = vector.extract_strided_slice %136 {offsets = [0, 32], sizes = [2, 32], strides = [1, 1]} : vector<2x128xf32> to vector<2x32xf32>
    %140 = vector.extract_strided_slice %137 {offsets = [0, 64], sizes = [2, 32], strides = [1, 1]} : vector<2x128xf32> to vector<2x32xf32>
    %141 = vector.extract_strided_slice %136 {offsets = [0, 96], sizes = [2, 32], strides = [1, 1]} : vector<2x128xf32> to vector<2x32xf32>
    %142 = arith.mulf %139, %124 : vector<2x32xf32>
    %143 = arith.mulf %138, %140 : vector<2x32xf32>
    %144 = arith.addf %142, %143 : vector<2x32xf32>
    %145 = math.tanh %144 : vector<2x32xf32>
    %146 = arith.mulf %141, %145 : vector<2x32xf32>
    %147 = vector.extract_strided_slice %20 {offsets = [0, 6, 0], sizes = [2, 1, 128], strides = [1, 1, 1]} : vector<2x8x128xf32> to vector<2x1x128xf32>
    %148 = vector.shape_cast %147 : vector<2x1x128xf32> to vector<2x128xf32>
    %149 = arith.truncf %146 : vector<2x32xf32> to vector<2x32xbf16>
    %cst_33 = arith.constant dense<0.000000e+00> : vector<2x128xf32>
    %150 = tpu.matmul %149, %22, %cst_33 {dimension_numbers = #tpu.dot_dimension_numbers<[1], [0], [0], [1], [0, 0, 1, 1], [], []>} : vector<2x32xbf16>, vector<32x128xbf16>, vector<2x128xf32> -> vector<2x128xf32>
    %151 = arith.addf %148, %150 : vector<2x128xf32>
    %152 = arith.negf %151 : vector<2x128xf32>
    %153 = math.exp %152 : vector<2x128xf32>
    %cst_34 = arith.constant 1.000000e+00 : f32
    %154 = vector.broadcast %cst_34 : f32 to vector<2x128xf32>
    %155 = arith.addf %154, %153 : vector<2x128xf32>
    %156 = arith.divf %154, %155 : vector<2x128xf32>
    %157 = math.tanh %151 : vector<2x128xf32>
    %158 = vector.extract_strided_slice %156 {offsets = [0, 0], sizes = [2, 32], strides = [1, 1]} : vector<2x128xf32> to vector<2x32xf32>
    %159 = vector.extract_strided_slice %156 {offsets = [0, 32], sizes = [2, 32], strides = [1, 1]} : vector<2x128xf32> to vector<2x32xf32>
    %160 = vector.extract_strided_slice %157 {offsets = [0, 64], sizes = [2, 32], strides = [1, 1]} : vector<2x128xf32> to vector<2x32xf32>
    %161 = vector.extract_strided_slice %156 {offsets = [0, 96], sizes = [2, 32], strides = [1, 1]} : vector<2x128xf32> to vector<2x32xf32>
    %162 = arith.mulf %159, %144 : vector<2x32xf32>
    %163 = arith.mulf %158, %160 : vector<2x32xf32>
    %164 = arith.addf %162, %163 : vector<2x32xf32>
    %165 = math.tanh %164 : vector<2x32xf32>
    %166 = arith.mulf %161, %165 : vector<2x32xf32>
    %167 = vector.extract_strided_slice %20 {offsets = [0, 7, 0], sizes = [2, 1, 128], strides = [1, 1, 1]} : vector<2x8x128xf32> to vector<2x1x128xf32>
    %168 = vector.shape_cast %167 : vector<2x1x128xf32> to vector<2x128xf32>
    %169 = arith.truncf %166 : vector<2x32xf32> to vector<2x32xbf16>
    %cst_35 = arith.constant dense<0.000000e+00> : vector<2x128xf32>
    %170 = tpu.matmul %169, %22, %cst_35 {dimension_numbers = #tpu.dot_dimension_numbers<[1], [0], [0], [1], [0, 0, 1, 1], [], []>} : vector<2x32xbf16>, vector<32x128xbf16>, vector<2x128xf32> -> vector<2x128xf32>
    %171 = arith.addf %168, %170 : vector<2x128xf32>
    %172 = arith.negf %171 : vector<2x128xf32>
    %173 = math.exp %172 : vector<2x128xf32>
    %cst_36 = arith.constant 1.000000e+00 : f32
    %174 = vector.broadcast %cst_36 : f32 to vector<2x128xf32>
    %175 = arith.addf %174, %173 : vector<2x128xf32>
    %176 = arith.divf %174, %175 : vector<2x128xf32>
    %177 = math.tanh %171 : vector<2x128xf32>
    %178 = vector.extract_strided_slice %176 {offsets = [0, 0], sizes = [2, 32], strides = [1, 1]} : vector<2x128xf32> to vector<2x32xf32>
    %179 = vector.extract_strided_slice %176 {offsets = [0, 32], sizes = [2, 32], strides = [1, 1]} : vector<2x128xf32> to vector<2x32xf32>
    %180 = vector.extract_strided_slice %177 {offsets = [0, 64], sizes = [2, 32], strides = [1, 1]} : vector<2x128xf32> to vector<2x32xf32>
    %181 = vector.extract_strided_slice %176 {offsets = [0, 96], sizes = [2, 32], strides = [1, 1]} : vector<2x128xf32> to vector<2x32xf32>
    %182 = arith.mulf %179, %164 : vector<2x32xf32>
    %183 = arith.mulf %178, %180 : vector<2x32xf32>
    %184 = arith.addf %182, %183 : vector<2x32xf32>
    %185 = math.tanh %184 : vector<2x32xf32>
    %186 = arith.mulf %181, %185 : vector<2x32xf32>
    %c0_37 = arith.constant 0 : index
    %c0_38 = arith.constant 0 : index
    %c0_39 = arith.constant 0 : index
    %187 = vector.load %arg18[%c0_37, %c0_38, %c0_39] : memref<2x2x32xf32, #tpu.memory_space<vmem>>, vector<2x1x32xf32>
    %188 = vector.shape_cast %187 : vector<2x1x32xf32> to vector<2x32xf32>
    %189 = vector.shape_cast %186 : vector<2x32xf32> to vector<2x1x32xf32>
    tpu.vector_store %arg18[%c0_37, %c0_38, %c0_39], %189 {strides = array<i32>} : memref<2x2x32xf32, #tpu.memory_space<vmem>>, vector<2x1x32xf32>,
    %c0_40 = arith.constant 0 : index
    %c0_41 = arith.constant 0 : index
    %c0_42 = arith.constant 0 : index
    %190 = vector.load %arg19[%c0_40, %c0_41, %c0_42] : memref<2x2x32xf32, #tpu.memory_space<vmem>>, vector<2x1x32xf32>
    %191 = vector.shape_cast %190 : vector<2x1x32xf32> to vector<2x32xf32>
    %192 = vector.shape_cast %184 : vector<2x32xf32> to vector<2x1x32xf32>
    tpu.vector_store %arg19[%c0_40, %c0_41, %c0_42], %192 {strides = array<i32>} : memref<2x2x32xf32, #tpu.memory_space<vmem>>, vector<2x1x32xf32>,
    %193 = vector.shape_cast %46 : vector<2x32xf32> to vector<2x1x32xf32>
    %194 = vector.shape_cast %66 : vector<2x32xf32> to vector<2x1x32xf32>
    %195 = vector.shape_cast %86 : vector<2x32xf32> to vector<2x1x32xf32>
    %196 = vector.shape_cast %106 : vector<2x32xf32> to vector<2x1x32xf32>
    %197 = vector.shape_cast %126 : vector<2x32xf32> to vector<2x1x32xf32>
    %198 = vector.shape_cast %146 : vector<2x32xf32> to vector<2x1x32xf32>
    %199 = vector.shape_cast %166 : vector<2x32xf32> to vector<2x1x32xf32>
    %200 = vector.shape_cast %186 : vector<2x32xf32> to vector<2x1x32xf32>
    %201 = tpu.concatenate %193, %194, %195, %196, %197, %198, %199, %200 in 1 : vector<2x1x32xf32>, vector<2x1x32xf32>, vector<2x1x32xf32>, vector<2x1x32xf32>, vector<2x1x32xf32>, vector<2x1x32xf32>, vector<2x1x32xf32>, vector<2x1x32xf32> -> vector<2x8x32xf32>
    %202 = vector.shape_cast %201 : vector<2x8x32xf32> to vector<16x32xf32>
    %203 = arith.truncf %202 : vector<16x32xf32> to vector<16x32xbf16>
    %c1 = arith.constant 1 : index
    %c0_43 = arith.constant 0 : index
    %c0_44 = arith.constant 0 : index
    %204 = vector.load %arg6[%c1, %c0_43, %c0_44] : memref<2x32x128xbf16, #tpu.memory_space<vmem>>, vector<1x32x128xbf16>
    %205 = vector.shape_cast %204 : vector<1x32x128xbf16> to vector<32x128xbf16>
    %cst_45 = arith.constant dense<0.000000e+00> : vector<16x128xf32>
    %206 = tpu.matmul %203, %205, %cst_45 {dimension_numbers = #tpu.dot_dimension_numbers<[1], [0], [0], [1], [0, 0, 1, 1], [], []>} : vector<16x32xbf16>, vector<32x128xbf16>, vector<16x128xf32> -> vector<16x128xf32>
    %c1_46 = arith.constant 1 : index
    %c0_47 = arith.constant 0 : index
    %c0_48 = arith.constant 0 : index
    %207 = vector.load %arg8[%c1_46, %c0_47, %c0_48] : memref<2x1x128xf32, #tpu.memory_space<vmem>>, vector<1x1x128xf32>
    %208 = vector.shape_cast %207 : vector<1x1x128xf32> to vector<1x128xf32>
    %209 = vector.broadcast %208 : vector<1x128xf32> to vector<16x128xf32>
    %210 = arith.addf %206, %209 : vector<16x128xf32>
    %211 = vector.shape_cast %210 : vector<16x128xf32> to vector<2x8x128xf32>
    %c1_49 = arith.constant 1 : index
    %c0_50 = arith.constant 0 : index
    %c0_51 = arith.constant 0 : index
    %212 = vector.load %arg7[%c1_49, %c0_50, %c0_51] : memref<2x32x128xbf16, #tpu.memory_space<vmem>>, vector<1x32x128xbf16>
    %213 = vector.shape_cast %212 : vector<1x32x128xbf16> to vector<32x128xbf16>
    %214 = vector.extract_strided_slice %0 {offsets = [0, 1, 0], sizes = [2, 1, 32], strides = [1, 1, 1]} : vector<2x2x32xf32> to vector<2x1x32xf32>
    %215 = vector.shape_cast %214 : vector<2x1x32xf32> to vector<2x32xf32>
    %216 = vector.extract_strided_slice %1 {offsets = [0, 1, 0], sizes = [2, 1, 32], strides = [1, 1, 1]} : vector<2x2x32xf32> to vector<2x1x32xf32>
    %217 = vector.shape_cast %216 : vector<2x1x32xf32> to vector<2x32xf32>
    %218 = vector.extract_strided_slice %211 {offsets = [0, 0, 0], sizes = [2, 1, 128], strides = [1, 1, 1]} : vector<2x8x128xf32> to vector<2x1x128xf32>
    %219 = vector.shape_cast %218 : vector<2x1x128xf32> to vector<2x128xf32>
    %220 = arith.truncf %215 : vector<2x32xf32> to vector<2x32xbf16>
    %cst_52 = arith.constant dense<0.000000e+00> : vector<2x128xf32>
    %221 = tpu.matmul %220, %213, %cst_52 {dimension_numbers = #tpu.dot_dimension_numbers<[1], [0], [0], [1], [0, 0, 1, 1], [], []>} : vector<2x32xbf16>, vector<32x128xbf16>, vector<2x128xf32> -> vector<2x128xf32>
    %222 = arith.addf %219, %221 : vector<2x128xf32>
    %223 = arith.negf %222 : vector<2x128xf32>
    %224 = math.exp %223 : vector<2x128xf32>
    %cst_53 = arith.constant 1.000000e+00 : f32
    %225 = vector.broadcast %cst_53 : f32 to vector<2x128xf32>
    %226 = arith.addf %225, %224 : vector<2x128xf32>
    %227 = arith.divf %225, %226 : vector<2x128xf32>
    %228 = math.tanh %222 : vector<2x128xf32>
    %229 = vector.extract_strided_slice %227 {offsets = [0, 0], sizes = [2, 32], strides = [1, 1]} : vector<2x128xf32> to vector<2x32xf32>
    %230 = vector.extract_strided_slice %227 {offsets = [0, 32], sizes = [2, 32], strides = [1, 1]} : vector<2x128xf32> to vector<2x32xf32>
    %231 = vector.extract_strided_slice %228 {offsets = [0, 64], sizes = [2, 32], strides = [1, 1]} : vector<2x128xf32> to vector<2x32xf32>
    %232 = vector.extract_strided_slice %227 {offsets = [0, 96], sizes = [2, 32], strides = [1, 1]} : vector<2x128xf32> to vector<2x32xf32>
    %233 = arith.mulf %230, %217 : vector<2x32xf32>
    %234 = arith.mulf %229, %231 : vector<2x32xf32>
    %235 = arith.addf %233, %234 : vector<2x32xf32>
    %236 = math.tanh %235 : vector<2x32xf32>
    %237 = arith.mulf %232, %236 : vector<2x32xf32>
    %238 = vector.extract_strided_slice %211 {offsets = [0, 1, 0], sizes = [2, 1, 128], strides = [1, 1, 1]} : vector<2x8x128xf32> to vector<2x1x128xf32>
    %239 = vector.shape_cast %238 : vector<2x1x128xf32> to vector<2x128xf32>
    %240 = arith.truncf %237 : vector<2x32xf32> to vector<2x32xbf16>
    %cst_54 = arith.constant dense<0.000000e+00> : vector<2x128xf32>
    %241 = tpu.matmul %240, %213, %cst_54 {dimension_numbers = #tpu.dot_dimension_numbers<[1], [0], [0], [1], [0, 0, 1, 1], [], []>} : vector<2x32xbf16>, vector<32x128xbf16>, vector<2x128xf32> -> vector<2x128xf32>
    %242 = arith.addf %239, %241 : vector<2x128xf32>
    %243 = arith.negf %242 : vector<2x128xf32>
    %244 = math.exp %243 : vector<2x128xf32>
    %cst_55 = arith.constant 1.000000e+00 : f32
    %245 = vector.broadcast %cst_55 : f32 to vector<2x128xf32>
    %246 = arith.addf %245, %244 : vector<2x128xf32>
    %247 = arith.divf %245, %246 : vector<2x128xf32>
    %248 = math.tanh %242 : vector<2x128xf32>
    %249 = vector.extract_strided_slice %247 {offsets = [0, 0], sizes = [2, 32], strides = [1, 1]} : vector<2x128xf32> to vector<2x32xf32>
    %250 = vector.extract_strided_slice %247 {offsets = [0, 32], sizes = [2, 32], strides = [1, 1]} : vector<2x128xf32> to vector<2x32xf32>
    %251 = vector.extract_strided_slice %248 {offsets = [0, 64], sizes = [2, 32], strides = [1, 1]} : vector<2x128xf32> to vector<2x32xf32>
    %252 = vector.extract_strided_slice %247 {offsets = [0, 96], sizes = [2, 32], strides = [1, 1]} : vector<2x128xf32> to vector<2x32xf32>
    %253 = arith.mulf %250, %235 : vector<2x32xf32>
    %254 = arith.mulf %249, %251 : vector<2x32xf32>
    %255 = arith.addf %253, %254 : vector<2x32xf32>
    %256 = math.tanh %255 : vector<2x32xf32>
    %257 = arith.mulf %252, %256 : vector<2x32xf32>
    %258 = vector.extract_strided_slice %211 {offsets = [0, 2, 0], sizes = [2, 1, 128], strides = [1, 1, 1]} : vector<2x8x128xf32> to vector<2x1x128xf32>
    %259 = vector.shape_cast %258 : vector<2x1x128xf32> to vector<2x128xf32>
    %260 = arith.truncf %257 : vector<2x32xf32> to vector<2x32xbf16>
    %cst_56 = arith.constant dense<0.000000e+00> : vector<2x128xf32>
    %261 = tpu.matmul %260, %213, %cst_56 {dimension_numbers = #tpu.dot_dimension_numbers<[1], [0], [0], [1], [0, 0, 1, 1], [], []>} : vector<2x32xbf16>, vector<32x128xbf16>, vector<2x128xf32> -> vector<2x128xf32>
    %262 = arith.addf %259, %261 : vector<2x128xf32>
    %263 = arith.negf %262 : vector<2x128xf32>
    %264 = math.exp %263 : vector<2x128xf32>
    %cst_57 = arith.constant 1.000000e+00 : f32
    %265 = vector.broadcast %cst_57 : f32 to vector<2x128xf32>
    %266 = arith.addf %265, %264 : vector<2x128xf32>
    %267 = arith.divf %265, %266 : vector<2x128xf32>
    %268 = math.tanh %262 : vector<2x128xf32>
    %269 = vector.extract_strided_slice %267 {offsets = [0, 0], sizes = [2, 32], strides = [1, 1]} : vector<2x128xf32> to vector<2x32xf32>
    %270 = vector.extract_strided_slice %267 {offsets = [0, 32], sizes = [2, 32], strides = [1, 1]} : vector<2x128xf32> to vector<2x32xf32>
    %271 = vector.extract_strided_slice %268 {offsets = [0, 64], sizes = [2, 32], strides = [1, 1]} : vector<2x128xf32> to vector<2x32xf32>
    %272 = vector.extract_strided_slice %267 {offsets = [0, 96], sizes = [2, 32], strides = [1, 1]} : vector<2x128xf32> to vector<2x32xf32>
    %273 = arith.mulf %270, %255 : vector<2x32xf32>
    %274 = arith.mulf %269, %271 : vector<2x32xf32>
    %275 = arith.addf %273, %274 : vector<2x32xf32>
    %276 = math.tanh %275 : vector<2x32xf32>
    %277 = arith.mulf %272, %276 : vector<2x32xf32>
    %278 = vector.extract_strided_slice %211 {offsets = [0, 3, 0], sizes = [2, 1, 128], strides = [1, 1, 1]} : vector<2x8x128xf32> to vector<2x1x128xf32>
    %279 = vector.shape_cast %278 : vector<2x1x128xf32> to vector<2x128xf32>
    %280 = arith.truncf %277 : vector<2x32xf32> to vector<2x32xbf16>
    %cst_58 = arith.constant dense<0.000000e+00> : vector<2x128xf32>
    %281 = tpu.matmul %280, %213, %cst_58 {dimension_numbers = #tpu.dot_dimension_numbers<[1], [0], [0], [1], [0, 0, 1, 1], [], []>} : vector<2x32xbf16>, vector<32x128xbf16>, vector<2x128xf32> -> vector<2x128xf32>
    %282 = arith.addf %279, %281 : vector<2x128xf32>
    %283 = arith.negf %282 : vector<2x128xf32>
    %284 = math.exp %283 : vector<2x128xf32>
    %cst_59 = arith.constant 1.000000e+00 : f32
    %285 = vector.broadcast %cst_59 : f32 to vector<2x128xf32>
    %286 = arith.addf %285, %284 : vector<2x128xf32>
    %287 = arith.divf %285, %286 : vector<2x128xf32>
    %288 = math.tanh %282 : vector<2x128xf32>
    %289 = vector.extract_strided_slice %287 {offsets = [0, 0], sizes = [2, 32], strides = [1, 1]} : vector<2x128xf32> to vector<2x32xf32>
    %290 = vector.extract_strided_slice %287 {offsets = [0, 32], sizes = [2, 32], strides = [1, 1]} : vector<2x128xf32> to vector<2x32xf32>
    %291 = vector.extract_strided_slice %288 {offsets = [0, 64], sizes = [2, 32], strides = [1, 1]} : vector<2x128xf32> to vector<2x32xf32>
    %292 = vector.extract_strided_slice %287 {offsets = [0, 96], sizes = [2, 32], strides = [1, 1]} : vector<2x128xf32> to vector<2x32xf32>
    %293 = arith.mulf %290, %275 : vector<2x32xf32>
    %294 = arith.mulf %289, %291 : vector<2x32xf32>
    %295 = arith.addf %293, %294 : vector<2x32xf32>
    %296 = math.tanh %295 : vector<2x32xf32>
    %297 = arith.mulf %292, %296 : vector<2x32xf32>
    %298 = vector.extract_strided_slice %211 {offsets = [0, 4, 0], sizes = [2, 1, 128], strides = [1, 1, 1]} : vector<2x8x128xf32> to vector<2x1x128xf32>
    %299 = vector.shape_cast %298 : vector<2x1x128xf32> to vector<2x128xf32>
    %300 = arith.truncf %297 : vector<2x32xf32> to vector<2x32xbf16>
    %cst_60 = arith.constant dense<0.000000e+00> : vector<2x128xf32>
    %301 = tpu.matmul %300, %213, %cst_60 {dimension_numbers = #tpu.dot_dimension_numbers<[1], [0], [0], [1], [0, 0, 1, 1], [], []>} : vector<2x32xbf16>, vector<32x128xbf16>, vector<2x128xf32> -> vector<2x128xf32>
    %302 = arith.addf %299, %301 : vector<2x128xf32>
    %303 = arith.negf %302 : vector<2x128xf32>
    %304 = math.exp %303 : vector<2x128xf32>
    %cst_61 = arith.constant 1.000000e+00 : f32
    %305 = vector.broadcast %cst_61 : f32 to vector<2x128xf32>
    %306 = arith.addf %305, %304 : vector<2x128xf32>
    %307 = arith.divf %305, %306 : vector<2x128xf32>
    %308 = math.tanh %302 : vector<2x128xf32>
    %309 = vector.extract_strided_slice %307 {offsets = [0, 0], sizes = [2, 32], strides = [1, 1]} : vector<2x128xf32> to vector<2x32xf32>
    %310 = vector.extract_strided_slice %307 {offsets = [0, 32], sizes = [2, 32], strides = [1, 1]} : vector<2x128xf32> to vector<2x32xf32>
    %311 = vector.extract_strided_slice %308 {offsets = [0, 64], sizes = [2, 32], strides = [1, 1]} : vector<2x128xf32> to vector<2x32xf32>
    %312 = vector.extract_strided_slice %307 {offsets = [0, 96], sizes = [2, 32], strides = [1, 1]} : vector<2x128xf32> to vector<2x32xf32>
    %313 = arith.mulf %310, %295 : vector<2x32xf32>
    %314 = arith.mulf %309, %311 : vector<2x32xf32>
    %315 = arith.addf %313, %314 : vector<2x32xf32>
    %316 = math.tanh %315 : vector<2x32xf32>
    %317 = arith.mulf %312, %316 : vector<2x32xf32>
    %318 = vector.extract_strided_slice %211 {offsets = [0, 5, 0], sizes = [2, 1, 128], strides = [1, 1, 1]} : vector<2x8x128xf32> to vector<2x1x128xf32>
    %319 = vector.shape_cast %318 : vector<2x1x128xf32> to vector<2x128xf32>
    %320 = arith.truncf %317 : vector<2x32xf32> to vector<2x32xbf16>
    %cst_62 = arith.constant dense<0.000000e+00> : vector<2x128xf32>
    %321 = tpu.matmul %320, %213, %cst_62 {dimension_numbers = #tpu.dot_dimension_numbers<[1], [0], [0], [1], [0, 0, 1, 1], [], []>} : vector<2x32xbf16>, vector<32x128xbf16>, vector<2x128xf32> -> vector<2x128xf32>
    %322 = arith.addf %319, %321 : vector<2x128xf32>
    %323 = arith.negf %322 : vector<2x128xf32>
    %324 = math.exp %323 : vector<2x128xf32>
    %cst_63 = arith.constant 1.000000e+00 : f32
    %325 = vector.broadcast %cst_63 : f32 to vector<2x128xf32>
    %326 = arith.addf %325, %324 : vector<2x128xf32>
    %327 = arith.divf %325, %326 : vector<2x128xf32>
    %328 = math.tanh %322 : vector<2x128xf32>
    %329 = vector.extract_strided_slice %327 {offsets = [0, 0], sizes = [2, 32], strides = [1, 1]} : vector<2x128xf32> to vector<2x32xf32>
    %330 = vector.extract_strided_slice %327 {offsets = [0, 32], sizes = [2, 32], strides = [1, 1]} : vector<2x128xf32> to vector<2x32xf32>
    %331 = vector.extract_strided_slice %328 {offsets = [0, 64], sizes = [2, 32], strides = [1, 1]} : vector<2x128xf32> to vector<2x32xf32>
    %332 = vector.extract_strided_slice %327 {offsets = [0, 96], sizes = [2, 32], strides = [1, 1]} : vector<2x128xf32> to vector<2x32xf32>
    %333 = arith.mulf %330, %315 : vector<2x32xf32>
    %334 = arith.mulf %329, %331 : vector<2x32xf32>
    %335 = arith.addf %333, %334 : vector<2x32xf32>
    %336 = math.tanh %335 : vector<2x32xf32>
    %337 = arith.mulf %332, %336 : vector<2x32xf32>
    %338 = vector.extract_strided_slice %211 {offsets = [0, 6, 0], sizes = [2, 1, 128], strides = [1, 1, 1]} : vector<2x8x128xf32> to vector<2x1x128xf32>
    %339 = vector.shape_cast %338 : vector<2x1x128xf32> to vector<2x128xf32>
    %340 = arith.truncf %337 : vector<2x32xf32> to vector<2x32xbf16>
    %cst_64 = arith.constant dense<0.000000e+00> : vector<2x128xf32>
    %341 = tpu.matmul %340, %213, %cst_64 {dimension_numbers = #tpu.dot_dimension_numbers<[1], [0], [0], [1], [0, 0, 1, 1], [], []>} : vector<2x32xbf16>, vector<32x128xbf16>, vector<2x128xf32> -> vector<2x128xf32>
    %342 = arith.addf %339, %341 : vector<2x128xf32>
    %343 = arith.negf %342 : vector<2x128xf32>
    %344 = math.exp %343 : vector<2x128xf32>
    %cst_65 = arith.constant 1.000000e+00 : f32
    %345 = vector.broadcast %cst_65 : f32 to vector<2x128xf32>
    %346 = arith.addf %345, %344 : vector<2x128xf32>
    %347 = arith.divf %345, %346 : vector<2x128xf32>
    %348 = math.tanh %342 : vector<2x128xf32>
    %349 = vector.extract_strided_slice %347 {offsets = [0, 0], sizes = [2, 32], strides = [1, 1]} : vector<2x128xf32> to vector<2x32xf32>
    %350 = vector.extract_strided_slice %347 {offsets = [0, 32], sizes = [2, 32], strides = [1, 1]} : vector<2x128xf32> to vector<2x32xf32>
    %351 = vector.extract_strided_slice %348 {offsets = [0, 64], sizes = [2, 32], strides = [1, 1]} : vector<2x128xf32> to vector<2x32xf32>
    %352 = vector.extract_strided_slice %347 {offsets = [0, 96], sizes = [2, 32], strides = [1, 1]} : vector<2x128xf32> to vector<2x32xf32>
    %353 = arith.mulf %350, %335 : vector<2x32xf32>
    %354 = arith.mulf %349, %351 : vector<2x32xf32>
    %355 = arith.addf %353, %354 : vector<2x32xf32>
    %356 = math.tanh %355 : vector<2x32xf32>
    %357 = arith.mulf %352, %356 : vector<2x32xf32>
    %358 = vector.extract_strided_slice %211 {offsets = [0, 7, 0], sizes = [2, 1, 128], strides = [1, 1, 1]} : vector<2x8x128xf32> to vector<2x1x128xf32>
    %359 = vector.shape_cast %358 : vector<2x1x128xf32> to vector<2x128xf32>
    %360 = arith.truncf %357 : vector<2x32xf32> to vector<2x32xbf16>
    %cst_66 = arith.constant dense<0.000000e+00> : vector<2x128xf32>
    %361 = tpu.matmul %360, %213, %cst_66 {dimension_numbers = #tpu.dot_dimension_numbers<[1], [0], [0], [1], [0, 0, 1, 1], [], []>} : vector<2x32xbf16>, vector<32x128xbf16>, vector<2x128xf32> -> vector<2x128xf32>
    %362 = arith.addf %359, %361 : vector<2x128xf32>
    %363 = arith.negf %362 : vector<2x128xf32>
    %364 = math.exp %363 : vector<2x128xf32>
    %cst_67 = arith.constant 1.000000e+00 : f32
    %365 = vector.broadcast %cst_67 : f32 to vector<2x128xf32>
    %366 = arith.addf %365, %364 : vector<2x128xf32>
    %367 = arith.divf %365, %366 : vector<2x128xf32>
    %368 = math.tanh %362 : vector<2x128xf32>
    %369 = vector.extract_strided_slice %367 {offsets = [0, 0], sizes = [2, 32], strides = [1, 1]} : vector<2x128xf32> to vector<2x32xf32>
    %370 = vector.extract_strided_slice %367 {offsets = [0, 32], sizes = [2, 32], strides = [1, 1]} : vector<2x128xf32> to vector<2x32xf32>
    %371 = vector.extract_strided_slice %368 {offsets = [0, 64], sizes = [2, 32], strides = [1, 1]} : vector<2x128xf32> to vector<2x32xf32>
    %372 = vector.extract_strided_slice %367 {offsets = [0, 96], sizes = [2, 32], strides = [1, 1]} : vector<2x128xf32> to vector<2x32xf32>
    %373 = arith.mulf %370, %355 : vector<2x32xf32>
    %374 = arith.mulf %369, %371 : vector<2x32xf32>
    %375 = arith.addf %373, %374 : vector<2x32xf32>
    %376 = math.tanh %375 : vector<2x32xf32>
    %377 = arith.mulf %372, %376 : vector<2x32xf32>
    %c0_68 = arith.constant 0 : index
    %c1_69 = arith.constant 1 : index
    %c0_70 = arith.constant 0 : index
    %378 = vector.load %arg18[%c0_68, %c1_69, %c0_70] : memref<2x2x32xf32, #tpu.memory_space<vmem>>, vector<2x1x32xf32>
    %379 = vector.shape_cast %378 : vector<2x1x32xf32> to vector<2x32xf32>
    %380 = vector.shape_cast %377 : vector<2x32xf32> to vector<2x1x32xf32>
    tpu.vector_store %arg18[%c0_68, %c1_69, %c0_70], %380 {strides = array<i32>} : memref<2x2x32xf32, #tpu.memory_space<vmem>>, vector<2x1x32xf32>,
    %c0_71 = arith.constant 0 : index
    %c1_72 = arith.constant 1 : index
    %c0_73 = arith.constant 0 : index
    %381 = vector.load %arg19[%c0_71, %c1_72, %c0_73] : memref<2x2x32xf32, #tpu.memory_space<vmem>>, vector<2x1x32xf32>
    %382 = vector.shape_cast %381 : vector<2x1x32xf32> to vector<2x32xf32>
    %383 = vector.shape_cast %375 : vector<2x32xf32> to vector<2x1x32xf32>
    tpu.vector_store %arg19[%c0_71, %c1_72, %c0_73], %383 {strides = array<i32>} : memref<2x2x32xf32, #tpu.memory_space<vmem>>, vector<2x1x32xf32>,
    %384 = vector.shape_cast %237 : vector<2x32xf32> to vector<2x1x32xf32>
    %385 = vector.shape_cast %257 : vector<2x32xf32> to vector<2x1x32xf32>
    %386 = vector.shape_cast %277 : vector<2x32xf32> to vector<2x1x32xf32>
    %387 = vector.shape_cast %297 : vector<2x32xf32> to vector<2x1x32xf32>
    %388 = vector.shape_cast %317 : vector<2x32xf32> to vector<2x1x32xf32>
    %389 = vector.shape_cast %337 : vector<2x32xf32> to vector<2x1x32xf32>
    %390 = vector.shape_cast %357 : vector<2x32xf32> to vector<2x1x32xf32>
    %391 = vector.shape_cast %377 : vector<2x32xf32> to vector<2x1x32xf32>
    %392 = tpu.concatenate %384, %385, %386, %387, %388, %389, %390, %391 in 1 : vector<2x1x32xf32>, vector<2x1x32xf32>, vector<2x1x32xf32>, vector<2x1x32xf32>, vector<2x1x32xf32>, vector<2x1x32xf32>, vector<2x1x32xf32>, vector<2x1x32xf32> -> vector<2x8x32xf32>
    %393 = vector.shape_cast %392 : vector<2x8x32xf32> to vector<16x32xf32>
    %394 = arith.truncf %393 : vector<16x32xf32> to vector<16x32xbf16>
    %c0_74 = arith.constant 0 : index
    %c0_75 = arith.constant 0 : index
    %c0_76 = arith.constant 0 : index
    %395 = vector.load %arg3[%c0_74, %c0_75, %c0_76] : memref<2x8x64xbf16, #tpu.memory_space<vmem>>, vector<2x8x64xbf16>
    %396 = vector.shape_cast %395 : vector<2x8x64xbf16> to vector<16x64xbf16>
    %c0_77 = arith.constant 0 : index
    %c0_78 = arith.constant 0 : index
    %397 = vector.load %arg9[%c0_77, %c0_78] : memref<64x32xbf16, #tpu.memory_space<vmem>>, vector<64x32xbf16>
    %cst_79 = arith.constant dense<0.000000e+00> : vector<16x32xf32>
    %398 = tpu.matmul %396, %397, %cst_79 {dimension_numbers = #tpu.dot_dimension_numbers<[1], [0], [0], [1], [0, 0, 1, 1], [], []>} : vector<16x64xbf16>, vector<64x32xbf16>, vector<16x32xf32> -> vector<16x32xf32>
    %c0_80 = arith.constant 0 : index
    %c0_81 = arith.constant 0 : index
    %399 = vector.load %arg10[%c0_80, %c0_81] : memref<1x32xf32, #tpu.memory_space<vmem>>, vector<1x32xf32>
    %400 = vector.broadcast %399 : vector<1x32xf32> to vector<16x32xf32>
    %401 = arith.addf %398, %400 : vector<16x32xf32>
    %402 = arith.truncf %401 : vector<16x32xf32> to vector<16x32xbf16>
    %403 = vector.shape_cast %402 : vector<16x32xbf16> to vector<2x8x32xbf16>
    %c0_82 = arith.constant 0 : index
    %c0_83 = arith.constant 0 : index
    %404 = vector.load %arg11[%c0_82, %c0_83] : memref<32x32xbf16, #tpu.memory_space<vmem>>, vector<32x32xbf16>
    %cst_84 = arith.constant dense<0.000000e+00> : vector<16x32xf32>
    %405 = tpu.matmul %394, %404, %cst_84 {dimension_numbers = #tpu.dot_dimension_numbers<[1], [0], [0], [1], [0, 0, 1, 1], [], []>} : vector<16x32xbf16>, vector<32x32xbf16>, vector<16x32xf32> -> vector<16x32xf32>
    %406 = arith.truncf %405 : vector<16x32xf32> to vector<16x32xbf16>
    %407 = vector.shape_cast %406 : vector<16x32xbf16> to vector<2x8x32xbf16>
    "tpu.trace_start"() <{level = 10 : i32, message = "btd,bed->bte"}> : () -> ()
    %cst_85 = arith.constant dense<0.000000e+00> : vector<2x8x8xf32>
    %408 = tpu.matmul %407, %403, %cst_85 {dimension_numbers = #tpu.dot_dimension_numbers<[2], [2], [1], [1], [0, 0, 0, 1, 1, 1], [0], [0]>} : vector<2x8x32xbf16>, vector<2x8x32xbf16>, vector<2x8x8xf32> -> vector<2x8x8xf32>
    "tpu.trace_stop"() : () -> ()
    %cst_86 = arith.constant dense<0xFF800000> : vector<2x8xf32>
    %409 = vector.multi_reduction <maximumf>, %408, %cst_86 [2] : vector<2x8x8xf32> to vector<2x8xf32>
    %410 = vector.shape_cast %409 : vector<2x8xf32> to vector<2x8x1xf32>
    %411 = vector.broadcast %410 : vector<2x8x1xf32> to vector<2x8x8xf32>
    %412 = arith.subf %408, %411 : vector<2x8x8xf32>
    %413 = math.exp %412 : vector<2x8x8xf32>
    %cst_87 = arith.constant dense<0.000000e+00> : vector<2x8xf32>
    %414 = vector.multi_reduction <add>, %413, %cst_87 [2] : vector<2x8x8xf32> to vector<2x8xf32>
    %415 = vector.shape_cast %414 : vector<2x8xf32> to vector<2x8x1xf32>
    %416 = tpu.reciprocal %415 {approx = true} : vector<2x8x1xf32> -> vector<2x8x1xf32>
    %417 = vector.broadcast %416 : vector<2x8x1xf32> to vector<2x8x8xf32>
    %418 = arith.mulf %413, %417 : vector<2x8x8xf32>
    %419 = arith.truncf %418 : vector<2x8x8xf32> to vector<2x8x8xbf16>
    "tpu.trace_start"() <{level = 10 : i32, message = "bte,bed->btd"}> : () -> ()
    %cst_88 = arith.constant dense<0.000000e+00> : vector<2x8x32xf32>
    %420 = tpu.matmul %419, %403, %cst_88 {dimension_numbers = #tpu.dot_dimension_numbers<[2], [1], [1], [2], [0, 0, 0, 1, 1, 2], [0], [0]>} : vector<2x8x8xbf16>, vector<2x8x32xbf16>, vector<2x8x32xf32> -> vector<2x8x32xf32>
    "tpu.trace_stop"() : () -> ()
    %c0_89 = arith.constant 0 : index
    %c0_90 = arith.constant 0 : index
    %421 = vector.load %arg12[%c0_89, %c0_90] : memref<32x32xbf16, #tpu.memory_space<vmem>>, vector<32x32xbf16>
    %cst_91 = arith.constant dense<0.000000e+00> : vector<16x32xf32>
    %422 = tpu.matmul %394, %421, %cst_91 {dimension_numbers = #tpu.dot_dimension_numbers<[1], [0], [0], [1], [0, 0, 1, 1], [], []>} : vector<16x32xbf16>, vector<32x32xbf16>, vector<16x32xf32> -> vector<16x32xf32>
    %423 = vector.shape_cast %420 : vector<2x8x32xf32> to vector<16x32xf32>
    %424 = arith.truncf %423 : vector<16x32xf32> to vector<16x32xbf16>
    %c0_92 = arith.constant 0 : index
    %c0_93 = arith.constant 0 : index
    %425 = vector.load %arg13[%c0_92, %c0_93] : memref<32x32xbf16, #tpu.memory_space<vmem>>, vector<32x32xbf16>
    %cst_94 = arith.constant dense<0.000000e+00> : vector<16x32xf32>
    %426 = tpu.matmul %424, %425, %cst_94 {dimension_numbers = #tpu.dot_dimension_numbers<[1], [0], [0], [1], [0, 0, 1, 1], [], []>} : vector<16x32xbf16>, vector<32x32xbf16>, vector<16x32xf32> -> vector<16x32xf32>
    %427 = arith.addf %422, %426 : vector<16x32xf32>
    %c0_95 = arith.constant 0 : index
    %c0_96 = arith.constant 0 : index
    %428 = vector.load %arg14[%c0_95, %c0_96] : memref<1x32xf32, #tpu.memory_space<vmem>>, vector<1x32xf32>
    %429 = vector.broadcast %428 : vector<1x32xf32> to vector<16x32xf32>
    %430 = arith.addf %427, %429 : vector<16x32xf32>
    %431 = arith.truncf %430 : vector<16x32xf32> to vector<16x32xbf16>
    %c0_97 = arith.constant 0 : index
    %c0_98 = arith.constant 0 : index
    %432 = vector.load %arg15[%c0_97, %c0_98] : memref<32x128xbf16, #tpu.memory_space<vmem>>, vector<32x128xbf16>
    %cst_99 = arith.constant dense<0.000000e+00> : vector<16x128xf32>
    %433 = tpu.matmul %431, %432, %cst_99 {dimension_numbers = #tpu.dot_dimension_numbers<[1], [0], [0], [1], [0, 0, 1, 1], [], []>} : vector<16x32xbf16>, vector<32x128xbf16>, vector<16x128xf32> -> vector<16x128xf32>
    %c0_100 = arith.constant 0 : index
    %c0_101 = arith.constant 0 : index
    %434 = vector.load %arg16[%c0_100, %c0_101] : memref<1x128xf32, #tpu.memory_space<vmem>>, vector<1x128xf32>
    %435 = vector.broadcast %434 : vector<1x128xf32> to vector<16x128xf32>
    %436 = arith.addf %433, %435 : vector<16x128xf32>
    %437 = vector.shape_cast %436 : vector<16x128xf32> to vector<2x8x128xf32>
    %c0_102 = arith.constant 0 : index
    %c0_103 = arith.constant 0 : index
    %c0_104 = arith.constant 0 : index
    %438 = vector.load %arg17[%c0_102, %c0_103, %c0_104] : memref<2x8x128xf32, #tpu.memory_space<vmem>>, vector<2x8x128xf32>
    tpu.vector_store %arg17[%c0_102, %c0_103, %c0_104], %437 {strides = array<i32>} : memref<2x8x128xf32, #tpu.memory_space<vmem>>, vector<2x8x128xf32>,
    return
  }
  func.func @transform_0(%arg0: i32) -> (i32, i32, i32) {
    %c0_i32 = arith.constant 0 : i32
    %c0_i32_0 = arith.constant 0 : i32
    %c0_i32_1 = arith.constant 0 : i32
    return %arg0, %c0_i32, %c0_i32_0 : i32, i32, i32
  }
  func.func @transform_1(%arg0: i32) -> (i32, i32, i32) {
    %c0_i32 = arith.constant 0 : i32
    %c0_i32_0 = arith.constant 0 : i32
    %c0_i32_1 = arith.constant 0 : i32
    return %arg0, %c0_i32, %c0_i32_0 : i32, i32, i32
  }
  func.func @transform_2(%arg0: i32) -> (i32, i32, i32) {
    %c0_i32 = arith.constant 0 : i32
    %c0_i32_0 = arith.constant 0 : i32
    %c0_i32_1 = arith.constant 0 : i32
    return %arg0, %c0_i32, %c0_i32_0 : i32, i32, i32
  }
  func.func @transform_3(%arg0: i32) -> (i32, i32, i32) {
    %c0_i32 = arith.constant 0 : i32
    %c0_i32_0 = arith.constant 0 : i32
    %c0_i32_1 = arith.constant 0 : i32
    return %arg0, %c0_i32, %c0_i32_0 : i32, i32, i32
  }
  func.func @transform_4(%arg0: i32) -> (i32, i32, i32) {
    %c0_i32 = arith.constant 0 : i32
    %c0_i32_0 = arith.constant 0 : i32
    %c0_i32_1 = arith.constant 0 : i32
    return %arg0, %c0_i32, %c0_i32_0 : i32, i32, i32
  }
  func.func @transform_5(%arg0: i32) -> (i32, i32, i32) {
    %c0_i32 = arith.constant 0 : i32
    %c0_i32_0 = arith.constant 0 : i32
    %c0_i32_1 = arith.constant 0 : i32
    %c0_i32_2 = arith.constant 0 : i32
    return %c0_i32, %c0_i32_0, %c0_i32_1 : i32, i32, i32
  }
  func.func @transform_6(%arg0: i32) -> (i32, i32, i32) {
    %c0_i32 = arith.constant 0 : i32
    %c0_i32_0 = arith.constant 0 : i32
    %c0_i32_1 = arith.constant 0 : i32
    %c0_i32_2 = arith.constant 0 : i32
    return %c0_i32, %c0_i32_0, %c0_i32_1 : i32, i32, i32
  }
  func.func @transform_7(%arg0: i32) -> (i32, i32, i32) {
    %c0_i32 = arith.constant 0 : i32
    %c0_i32_0 = arith.constant 0 : i32
    %c0_i32_1 = arith.constant 0 : i32
    %c0_i32_2 = arith.constant 0 : i32
    return %c0_i32, %c0_i32_0, %c0_i32_1 : i32, i32, i32
  }
  func.func @transform_8(%arg0: i32) -> (i32, i32) {
    %c0_i32 = arith.constant 0 : i32
    %c0_i32_0 = arith.constant 0 : i32
    %c0_i32_1 = arith.constant 0 : i32
    return %c0_i32, %c0_i32_0 : i32, i32
  }
  func.func @transform_9(%arg0: i32) -> (i32, i32) {
    %c0_i32 = arith.constant 0 : i32
    %c0_i32_0 = arith.constant 0 : i32
    %c0_i32_1 = arith.constant 0 : i32
    return %c0_i32, %c0_i32_0 : i32, i32
  }
  func.func @transform_10(%arg0: i32) -> (i32, i32) {
    %c0_i32 = arith.constant 0 : i32
    %c0_i32_0 = arith.constant 0 : i32
    %c0_i32_1 = arith.constant 0 : i32
    return %c0_i32, %c0_i32_0 : i32, i32
  }
  func.func @transform_11(%arg0: i32) -> (i32, i32) {
    %c0_i32 = arith.constant 0 : i32
    %c0_i32_0 = arith.constant 0 : i32
    %c0_i32_1 = arith.constant 0 : i32
    return %c0_i32, %c0_i32_0 : i32, i32
  }
  func.func @transform_12(%arg0: i32) -> (i32, i32) {
    %c0_i32 = arith.constant 0 : i32
    %c0_i32_0 = arith.constant 0 : i32
    %c0_i32_1 = arith.constant 0 : i32
    return %c0_i32, %c0_i32_0 : i32, i32
  }
  func.func @transform_13(%arg0: i32) -> (i32, i32) {
    %c0_i32 = arith.constant 0 : i32
    %c0_i32_0 = arith.constant 0 : i32
    %c0_i32_1 = arith.constant 0 : i32
    return %c0_i32, %c0_i32_0 : i32, i32
  }
  func.func @transform_14(%arg0: i32) -> (i32, i32) {
    %c0_i32 = arith.constant 0 : i32
    %c0_i32_0 = arith.constant 0 : i32
    %c0_i32_1 = arith.constant 0 : i32
    return %c0_i32, %c0_i32_0 : i32, i32
  }
  func.func @transform_15(%arg0: i32) -> (i32, i32) {
    %c0_i32 = arith.constant 0 : i32
    %c0_i32_0 = arith.constant 0 : i32
    %c0_i32_1 = arith.constant 0 : i32
    return %c0_i32, %c0_i32_0 : i32, i32
  }
  func.func @transform_16(%arg0: i32) -> (i32, i32, i32) {
    %c0_i32 = arith.constant 0 : i32
    %c0_i32_0 = arith.constant 0 : i32
    %c0_i32_1 = arith.constant 0 : i32
    return %arg0, %c0_i32, %c0_i32_0 : i32, i32, i32
  }
  func.func @transform_17(%arg0: i32) -> (i32, i32, i32) {
    %c0_i32 = arith.constant 0 : i32
    %c0_i32_0 = arith.constant 0 : i32
    %c0_i32_1 = arith.constant 0 : i32
    return %arg0, %c0_i32, %c0_i32_0 : i32, i32, i32
  }
  func.func @transform_18(%arg0: i32) -> (i32, i32, i32) {
    %c0_i32 = arith.constant 0 : i32
    %c0_i32_0 = arith.constant 0 : i32
    %c0_i32_1 = arith.constant 0 : i32
    return %arg0, %c0_i32, %c0_i32_0 : i32, i32, i32
  }
}

</mosaic_0001>

<llo_original>
// kernel: tpu_custom_call.1
$region0: #{tpu_custom_call.1}
  #allocation0 [shape = 'u32[]', space=smem, size = 0x4, offset = 0x4, fixed_abs, tag = 'smem constant byte address 0x4 - core index']
  #allocation1 [shape = 'u32[144,128]{1,0:T(1,128)}', space=vmem, size = 0x12000, scoped, tag = 'internal scratch']
  %s0 = inlined_call_operand.hbm [shape: bf16[2,8,16], index: 0, kind: input, shape index: {}]
  %s1 = inlined_call_operand.vmem [shape: bf16[2,1,16], index: 1, kind: input, shape index: {}]
  %s2 = inlined_call_operand.hbm [shape: bf16[2,8,64], index: 2, kind: input, shape index: {}]
  %s3 = inlined_call_operand.hbm [shape: f32[2,2,32], index: 3, kind: input, shape index: {}]
  %s4 = inlined_call_operand.hbm [shape: f32[2,2,32], index: 4, kind: input, shape index: {}]
  %s5 = inlined_call_operand.vmem [shape: bf16[2,32,128], index: 5, kind: input, shape index: {}]
  %s6 = inlined_call_operand.vmem [shape: bf16[2,32,128], index: 6, kind: input, shape index: {}]
  %s7 = inlined_call_operand.hbm [shape: f32[2,1,128], index: 7, kind: input, shape index: {}]
  %s8 = inlined_call_operand.vmem [shape: bf16[64,32], index: 8, kind: input, shape index: {}]
  %s9 = inlined_call_operand.vmem [shape: f32[1,32], index: 9, kind: input, shape index: {}]
  %s10 = inlined_call_operand.hbm [shape: bf16[32,32], index: 10, kind: input, shape index: {}]
  %s11 = inlined_call_operand.hbm [shape: bf16[32,32], index: 11, kind: input, shape index: {}]
  %s12 = inlined_call_operand.vmem [shape: bf16[32,32], index: 12, kind: input, shape index: {}]
  %s13 = inlined_call_operand.vmem [shape: f32[1,32], index: 13, kind: input, shape index: {}]
  %s14 = inlined_call_operand.hbm [shape: bf16[32,128], index: 14, kind: input, shape index: {}]
  %s15 = inlined_call_operand.vmem [shape: f32[1,128], index: 15, kind: input, shape index: {}]
  %s16 = inlined_call_operand.hbm [shape: f32[2,8,128], index: 16, kind: output, shape index: {0}]
  %s17 = inlined_call_operand.hbm [shape: f32[2,2,32], index: 17, kind: output, shape index: {1}]
  %s18 = inlined_call_operand.hbm [shape: f32[2,2,32], index: 18, kind: output, shape index: {2}]
  %19 = xla_tuple %s16, %s17, %s18
  %s20 = sld [smem:[#allocation0]]
  $region122: #{tpu_custom_call.1} parent=0
    _
  %s22 = ssub.s32 1, %s20
  %s23 = scalar_select 0, %s22, %s20
  $region1: #{tpu_custom_call.1} parent=0
    #allocation2 [shape = 'u8[4096]{0}', space=vmem, size = 0x1000, scoped, tag = 'input window, operand 0, single buffered']
    #allocation3 [shape = 's32[1]{0}', space=sflag, size = 0x4, scoped, tag = 'scoped memory for tpu_custom_call.1']
    #allocation4 [shape = 's32[1]{0}', space=sflag, size = 0x4, scoped, tag = 'scoped memory for tpu_custom_call.1']
    #allocation5 [shape = 'u8[4096]{0}', space=vmem, size = 0x1000, scoped, tag = 'input window, operand 2, single buffered']
    #allocation6 [shape = 's32[1]{0}', space=sflag, size = 0x4, scoped, tag = 'scoped memory for tpu_custom_call.1']
    #allocation7 [shape = 'u8[2048]{0}', space=vmem, size = 0x800, scoped, tag = 'input window, operand 3, single buffered']
    #allocation8 [shape = 'u8[2048]{0}', space=vmem, size = 0x800, scoped, tag = 'input window, operand 4, single buffered']
    #allocation9 [shape = 's32[1]{0}', space=sflag, size = 0x4, scoped, tag = 'scoped memory for tpu_custom_call.1']
    #allocation10 [shape = 'u8[1024]{0}', space=vmem, size = 0x400, scoped, tag = 'input window, operand 7, single buffered']
    #allocation11 [shape = 'u8[8192]{0}', space=vmem, size = 0x2000, scoped, tag = 'input window, operand 10, single buffered']
    #allocation12 [shape = 's32[1]{0}', space=sflag, size = 0x4, scoped, tag = 'scoped memory for tpu_custom_call.1']
    #allocation13 [shape = 'u8[8192]{0}', space=vmem, size = 0x2000, scoped, tag = 'input window, operand 11, single buffered']
    #allocation14 [shape = 'u8[8192]{0}', space=vmem, size = 0x2000, scoped, tag = 'input window, operand 14, single buffered']
    #allocation15 [shape = 's32[1]{0}', space=sflag, size = 0x4, scoped, tag = 'scoped memory for tpu_custom_call.1']
    #allocation16 [shape = 'u8[8192]{0}', space=vmem, size = 0x2000, scoped, tag = 'output window, operand 0, single buffered']
    #allocation17 [shape = 'u8[2048]{0}', space=vmem, size = 0x800, scoped, tag = 'output window, operand 1, single buffered']
    #allocation18 [shape = 's32[1]{0}', space=sflag, size = 0x4, scoped, tag = 'scoped memory for tpu_custom_call.1']
    #allocation19 [shape = 'u8[2048]{0}', space=vmem, size = 0x800, scoped, tag = 'output window, operand 2, single buffered']
    %24 = vsyncpa [#allocation3], 0
    %25 = vsyncpa [#allocation6], 0
    %26 = vsyncpa [#allocation9], 0
    %27 = vsyncpa [#allocation12], 0
    %28 = vsyncpa [#allocation15], 0
    %29 = vsyncpa [#allocation4], 0
    %30 = vsyncpa [#allocation18], 0
    // Predicated region
    $region2: #{tpu_custom_call.1} parent=1 // pred_check
      _
    $region3: #{tpu_custom_call.1} parent=1 // pred_check_branch
      %32 = sbr.rel (0) target = $region5
    $region4: #{tpu_custom_call.1} parent=1 // pred_region
      %s34 = ssub.s32 128, 128
      %35 = vsyncadd [#allocation3], %s34
      %s36 = sshll.u32 [#allocation2], 4
      %s37 = int_to_ptr.vmem [resolvable:$true] %s36
      %42 = dma.hbm_to_vmem [thread:$0]  %s0, 128, %s37, [#allocation3], 64, 64, 4
    $region5: #{tpu_custom_call.1} parent=1 // pred_fallthru
      _
    // Predicated region
    $region6: #{tpu_custom_call.1} parent=1 // pred_check
      _
    $region7: #{tpu_custom_call.1} parent=1 // pred_check_branch
      %44 = sbr.rel (0) target = $region9
    $region8: #{tpu_custom_call.1} parent=1 // pred_region
      _
    $region9: #{tpu_custom_call.1} parent=1 // pred_fallthru
      _
    // Predicated region
    $region10: #{tpu_custom_call.1} parent=1 // pred_check
      _
    $region11: #{tpu_custom_call.1} parent=1 // pred_check_branch
      %46 = sbr.rel (0) target = $region13
    $region12: #{tpu_custom_call.1} parent=1 // pred_region
      %s48 = ssub.s32 128, 128
      %49 = vsyncadd [#allocation6], %s48
      %s50 = sshll.u32 [#allocation5], 4
      %s51 = int_to_ptr.vmem [resolvable:$true] %s50
      %56 = dma.hbm_to_vmem [thread:$0]  %s2, 128, %s51, [#allocation6], 64, 64, 4
    $region13: #{tpu_custom_call.1} parent=1 // pred_fallthru
      _
    // Predicated region
    $region14: #{tpu_custom_call.1} parent=1 // pred_check
      _
    $region15: #{tpu_custom_call.1} parent=1 // pred_check_branch
      %58 = sbr.rel (0) target = $region17
    $region16: #{tpu_custom_call.1} parent=1 // pred_region
      %s60 = ssub.s32 64, 64
      %61 = vsyncadd [#allocation6], %s60
      %s62 = sshll.u32 [#allocation7], 4
      %s63 = int_to_ptr.vmem [resolvable:$true] %s62
      %68 = dma.hbm_to_vmem [thread:$0]  %s3, 64, %s63, [#allocation6], 32, 32, 2
    $region17: #{tpu_custom_call.1} parent=1 // pred_fallthru
      _
    // Predicated region
    $region18: #{tpu_custom_call.1} parent=1 // pred_check
      _
    $region19: #{tpu_custom_call.1} parent=1 // pred_check_branch
      %70 = sbr.rel (0) target = $region21
    $region20: #{tpu_custom_call.1} parent=1 // pred_region
      %s72 = ssub.s32 64, 64
      %73 = vsyncadd [#allocation9], %s72
      %s74 = sshll.u32 [#allocation8], 4
      %s75 = int_to_ptr.vmem [resolvable:$true] %s74
      %80 = dma.hbm_to_vmem [thread:$0]  %s4, 64, %s75, [#allocation9], 32, 32, 2
    $region21: #{tpu_custom_call.1} parent=1 // pred_fallthru
      _
    // Predicated region
    $region22: #{tpu_custom_call.1} parent=1 // pred_check
      _
    $region23: #{tpu_custom_call.1} parent=1 // pred_check_branch
      %82 = sbr.rel (0) target = $region25
    $region24: #{tpu_custom_call.1} parent=1 // pred_region
      _
    $region25: #{tpu_custom_call.1} parent=1 // pred_fallthru
      _
    // Predicated region
    $region26: #{tpu_custom_call.1} parent=1 // pred_check
      _
    $region27: #{tpu_custom_call.1} parent=1 // pred_check_branch
      %84 = sbr.rel (0) target = $region29
    $region28: #{tpu_custom_call.1} parent=1 // pred_region
      _
    $region29: #{tpu_custom_call.1} parent=1 // pred_fallthru
      _
    // Predicated region
    $region30: #{tpu_custom_call.1} parent=1 // pred_check
      _
    $region31: #{tpu_custom_call.1} parent=1 // pred_check_branch
      %86 = sbr.rel (0) target = $region33
    $region32: #{tpu_custom_call.1} parent=1 // pred_region
      %s88 = ssub.s32 32, 32
      %89 = vsyncadd [#allocation9], %s88
      %s90 = sshll.u32 [#allocation10], 4
      %s91 = int_to_ptr.vmem [resolvable:$true] %s90
      %96 = dma.hbm_to_vmem [thread:$0]  %s7, 32, %s91, [#allocation9], 16, 16, 1
    $region33: #{tpu_custom_call.1} parent=1 // pred_fallthru
      _
    // Predicated region
    $region34: #{tpu_custom_call.1} parent=1 // pred_check
      _
    $region35: #{tpu_custom_call.1} parent=1 // pred_check_branch
      %98 = sbr.rel (0) target = $region37
    $region36: #{tpu_custom_call.1} parent=1 // pred_region
      _
    $region37: #{tpu_custom_call.1} parent=1 // pred_fallthru
      _
    // Predicated region
    $region38: #{tpu_custom_call.1} parent=1 // pred_check
      _
    $region39: #{tpu_custom_call.1} parent=1 // pred_check_branch
      %100 = sbr.rel (0) target = $region41
    $region40: #{tpu_custom_call.1} parent=1 // pred_region
      _
    $region41: #{tpu_custom_call.1} parent=1 // pred_fallthru
      _
    // Predicated region
    $region42: #{tpu_custom_call.1} parent=1 // pred_check
      _
    $region43: #{tpu_custom_call.1} parent=1 // pred_check_branch
      %102 = sbr.rel (0) target = $region45
    $region44: #{tpu_custom_call.1} parent=1 // pred_region
      %s104 = ssub.s32 256, 256
      %105 = vsyncadd [#allocation12], %s104
      %s106 = sshll.u32 [#allocation11], 4
      %s107 = int_to_ptr.vmem [resolvable:$true] %s106
      %112 = dma.hbm_to_vmem [thread:$0]  %s10, 256, %s107, [#allocation12], 64, 64, 4
    $region45: #{tpu_custom_call.1} parent=1 // pred_fallthru
      _
    // Predicated region
    $region46: #{tpu_custom_call.1} parent=1 // pred_check
      _
    $region47: #{tpu_custom_call.1} parent=1 // pred_check_branch
      %114 = sbr.rel (0) target = $region49
    $region48: #{tpu_custom_call.1} parent=1 // pred_region
      %s116 = ssub.s32 256, 256
      %117 = vsyncadd [#allocation12], %s116
      %s118 = sshll.u32 [#allocation13], 4
      %s119 = int_to_ptr.vmem [resolvable:$true] %s118
      %124 = dma.hbm_to_vmem [thread:$0]  %s11, 256, %s119, [#allocation12], 64, 64, 4
    $region49: #{tpu_custom_call.1} parent=1 // pred_fallthru
      _
    // Predicated region
    $region50: #{tpu_custom_call.1} parent=1 // pred_check
      _
    $region51: #{tpu_custom_call.1} parent=1 // pred_check_branch
      %126 = sbr.rel (0) target = $region53
    $region52: #{tpu_custom_call.1} parent=1 // pred_region
      _
    $region53: #{tpu_custom_call.1} parent=1 // pred_fallthru
      _
    // Predicated region
    $region54: #{tpu_custom_call.1} parent=1 // pred_check
      _
    $region55: #{tpu_custom_call.1} parent=1 // pred_check_branch
      %128 = sbr.rel (0) target = $region57
    $region56: #{tpu_custom_call.1} parent=1 // pred_region
      _
    $region57: #{tpu_custom_call.1} parent=1 // pred_fallthru
      _
    // Predicated region
    $region58: #{tpu_custom_call.1} parent=1 // pred_check
      _
    $region59: #{tpu_custom_call.1} parent=1 // pred_check_branch
      %130 = sbr.rel (0) target = $region61
    $region60: #{tpu_custom_call.1} parent=1 // pred_region
      %s132 = ssub.s32 256, 256
      %133 = vsyncadd [#allocation15], %s132
      %s134 = sshll.u32 [#allocation14], 4
      %s135 = int_to_ptr.vmem [resolvable:$true] %s134
      %140 = dma.hbm_to_vmem [thread:$0]  %s14, 256, %s135, [#allocation15], 64, 64, 4
    $region61: #{tpu_custom_call.1} parent=1 // pred_fallthru
      _
    // Predicated region
    $region62: #{tpu_custom_call.1} parent=1 // pred_check
      _
    $region63: #{tpu_custom_call.1} parent=1 // pred_check_branch
      %142 = sbr.rel (0) target = $region65
    $region64: #{tpu_custom_call.1} parent=1 // pred_region
      _
    $region65: #{tpu_custom_call.1} parent=1 // pred_fallthru
      _
    // Predicated region
    $region66: #{tpu_custom_call.1} parent=1 // pred_check
      _
    $region67: #{tpu_custom_call.1} parent=1 // pred_check_branch
      %144 = sbr.rel (0) target = $region69
    $region68: #{tpu_custom_call.1} parent=1 // pred_region
      %145 = dma.done [#allocation3], 128
    $region69: #{tpu_custom_call.1} parent=1 // pred_fallthru
      _
    // Predicated region
    $region70: #{tpu_custom_call.1} parent=1 // pred_check
      _
    $region71: #{tpu_custom_call.1} parent=1 // pred_check_branch
      %147 = sbr.rel (0) target = $region73
    $region72: #{tpu_custom_call.1} parent=1 // pred_region
      %148 = dma.done [#allocation6], 128
    $region73: #{tpu_custom_call.1} parent=1 // pred_fallthru
      _
    // Predicated region
    $region74: #{tpu_custom_call.1} parent=1 // pred_check
      _
    $region75: #{tpu_custom_call.1} parent=1 // pred_check_branch
      %150 = sbr.rel (0) target = $region77
    $region76: #{tpu_custom_call.1} parent=1 // pred_region
      %151 = dma.done [#allocation6], 64
    $region77: #{tpu_custom_call.1} parent=1 // pred_fallthru
      _
    // Predicated region
    $region78: #{tpu_custom_call.1} parent=1 // pred_check
      _
    $region79: #{tpu_custom_call.1} parent=1 // pred_check_branch
      %153 = sbr.rel (0) target = $region81
    $region80: #{tpu_custom_call.1} parent=1 // pred_region
      %154 = dma.done [#allocation9], 64
    $region81: #{tpu_custom_call.1} parent=1 // pred_fallthru
      _
    // Predicated region
    $region82: #{tpu_custom_call.1} parent=1 // pred_check
      _
    $region83: #{tpu_custom_call.1} parent=1 // pred_check_branch
      %156 = sbr.rel (0) target = $region85
    $region84: #{tpu_custom_call.1} parent=1 // pred_region
      %157 = dma.done [#allocation9], 32
    $region85: #{tpu_custom_call.1} parent=1 // pred_fallthru
      _
    // Predicated region
    $region86: #{tpu_custom_call.1} parent=1 // pred_check
      _
    $region87: #{tpu_custom_call.1} parent=1 // pred_check_branch
      %159 = sbr.rel (0) target = $region89
    $region88: #{tpu_custom_call.1} parent=1 // pred_region
      %160 = dma.done [#allocation12], 256
    $region89: #{tpu_custom_call.1} parent=1 // pred_fallthru
      _
    // Predicated region
    $region90: #{tpu_custom_call.1} parent=1 // pred_check
      _
    $region91: #{tpu_custom_call.1} parent=1 // pred_check_branch
      %162 = sbr.rel (0) target = $region93
    $region92: #{tpu_custom_call.1} parent=1 // pred_region
      %163 = dma.done [#allocation12], 256
    $region93: #{tpu_custom_call.1} parent=1 // pred_fallthru
      _
    // Predicated region
    $region94: #{tpu_custom_call.1} parent=1 // pred_check
      _
    $region95: #{tpu_custom_call.1} parent=1 // pred_check_branch
      %165 = sbr.rel (0) target = $region97
    $region96: #{tpu_custom_call.1} parent=1 // pred_region
      %166 = dma.done [#allocation15], 256
    $region97: #{tpu_custom_call.1} parent=1 // pred_fallthru
      _
    %v168 = vld [vmem:[#allocation7] sm:$0x3]
    %v169 = vld [vmem:[#allocation7 + $0x2] sm:$0x3]
    %v170 = vld [vmem:[#allocation8] sm:$0x3]
    %v171 = vld [vmem:[#allocation8 + $0x2] sm:$0x3]
    %v172 = vld [vmem:[%s5] sm:$0xf]
    %v173 = vld [vmem:[%s5 + $0x4] sm:$0xf]
    %v174 = vld [vmem:[%s5 + $0x8] sm:$0xf]
    %v175 = vld [vmem:[%s5 + $0xc] sm:$0xf]
    %v176 = vld [vmem:[#allocation2] sm:$0xf]
    %v177 = vld [vmem:[#allocation2 + $0x4] sm:$0xf]
    %v180 = vunpack.c.l.b16 %v176
    %v181 = vunpack.c.l.b16 %v177
    %v182 = vpack.c.b16 %v181, %v180
    %v185 = vunpack.c.l.b16 %v172
    %v186 = vunpack.c.l.b16 %v173
    %v187 = vpack.c.b16 %v186, %v185
    %vm189 = vcmask 130048
    %v191 = vsel %vm189, %v182, 0
    %193 = vmatprep.subr.bf16.mxu0 0
    %194 = vmatpush1.bf16.msra.mxu0 %v187
    %195 = vmatprep.subr.bf16.mxu0 0
    %196 = vmatpush1.bf16.msra.mxu0 0
    %197 = vmatprep.subr.bf16.mxu0 0
    %198 = vmatpush1.bf16.msra.mxu0 0
    %199 = vmatprep.subr.bf16.mxu0 0
    %200 = vmatpush1.bf16.msra.mxu0 0
    %201 = vmatprep.subr.bf16.mxu0 0
    %202 = vmatpush1.bf16.msra.mxu0 0
    %203 = vmatprep.subr.bf16.mxu0 0
    %204 = vmatpush1.bf16.msra.mxu0 0
    %205 = vmatprep.subr.bf16.mxu0 0
    %206 = vmatpush1.bf16.msra.mxu0 0
    %207 = vmatprep.subr.bf16.mxu0 0
    %208 = vmatpush1.bf16.msra.mxu0 0
    %209 = vmatprep.subr.bf16.mxu0 0
    %210 = vmatpush1.bf16.msra.mxu0 0
    %211 = vmatprep.subr.bf16.mxu0 0
    %212 = vmatpush1.bf16.msra.mxu0 0
    %213 = vmatprep.subr.bf16.mxu0 0
    %214 = vmatpush1.bf16.msra.mxu0 0
    %215 = vmatprep.subr.bf16.mxu0 0
    %216 = vmatpush1.bf16.msra.mxu0 0
    %217 = vmatprep.subr.bf16.mxu0 0
    %218 = vmatpush1.bf16.msra.mxu0 0
    %219 = vmatprep.subr.bf16.mxu0 0
    %220 = vmatpush1.bf16.msra.mxu0 0
    %221 = vmatprep.subr.bf16.mxu0 0
    %222 = vmatpush1.bf16.msra.mxu0 0
    %223 = vmatprep.subr.bf16.mxu0 0
    %224 = vmatpush1.bf16.msra.mxu0 0
    %225 = vmatprep.mubr.bf16.mxu0 0
    %226 = vmatmul.mubr.bf16.gmra.mrb[0].mxu0 %v191
    %v227 = vpop.f32.mrb[0].mxu0
    %v228 = vadd.f32 0.0, %v227
    %v229 = vpop.f32.mrb[0].mxu0
    %v230 = vpop.f32.mrb[0].mxu0
    %v231 = vadd.f32 0.0, %v230
    %v232 = vpop.f32.mrb[0].mxu0
    %233 = vdwg.mxu0
    %v234 = vld [vmem:[%s1] sm:$0x1]
    %v235 = vld [vmem:[%s1 + $0x1] sm:$0x1]
    %v239 = vunpack.c.l.s4 1966171168
    %v240 = vunpack.c.0.s8 %v239
    %v241 = vlaneseq
    %v242 = vshrl.u32 %v241, 7
    %v243 = vsub.s32 %v240, %v242
    %v244 = vrot.slane %v234, %v243
    %v246 = vunpack.c.l.s4 1966171168
    %v247 = vunpack.c.0.s8 %v246
    %v248 = vlaneseq
    %v249 = vshrl.u32 %v248, 7
    %v250 = vsub.s32 %v247, %v249
    %v251 = vrot.slane %v244, %v250
    %v253 = vunpack.c.l.s4 1966171168
    %v254 = vunpack.c.0.s8 %v253
    %v255 = vlaneseq
    %v256 = vshrl.u32 %v255, 7
    %v257 = vsub.s32 %v254, %v256
    %v258 = vrot.slane %v235, %v257
    %v260 = vunpack.c.l.s4 1966171168
    %v261 = vunpack.c.0.s8 %v260
    %v262 = vlaneseq
    %v263 = vshrl.u32 %v262, 7
    %v264 = vsub.s32 %v261, %v263
    %v265 = vrot.slane %v258, %v264
    %v266 = vunpack.c.l.b16 %v251
    %v267 = vunpack.c.l.b16 %v265
    %v268 = vrot.slane %v267, 7
    %vm269 = vcmask 1041409
    %v270 = vsel %vm269, %v268, %v266
    %v271 = vpack.c.b16 %v270, %v270
    %v274 = vunpack.c.l.b16 %v174
    %v275 = vunpack.c.l.b16 %v175
    %v276 = vpack.c.b16 %v275, %v274
    %v279 = vsel %vm189, %v271, 0
    %281 = vmatprep.subr.bf16.mxu0 0
    %282 = vmatpush1.bf16.msra.mxu0 %v276
    %283 = vmatprep.subr.bf16.mxu0 0
    %284 = vmatpush1.bf16.msra.mxu0 0
    %285 = vmatprep.subr.bf16.mxu0 0
    %286 = vmatpush1.bf16.msra.mxu0 0
    %287 = vmatprep.subr.bf16.mxu0 0
    %288 = vmatpush1.bf16.msra.mxu0 0
    %289 = vmatprep.subr.bf16.mxu0 0
    %290 = vmatpush1.bf16.msra.mxu0 0
    %291 = vmatprep.subr.bf16.mxu0 0
    %292 = vmatpush1.bf16.msra.mxu0 0
    %293 = vmatprep.subr.bf16.mxu0 0
    %294 = vmatpush1.bf16.msra.mxu0 0
    %295 = vmatprep.subr.bf16.mxu0 0
    %296 = vmatpush1.bf16.msra.mxu0 0
    %297 = vmatprep.subr.bf16.mxu0 0
    %298 = vmatpush1.bf16.msra.mxu0 0
    %299 = vmatprep.subr.bf16.mxu0 0
    %300 = vmatpush1.bf16.msra.mxu0 0
    %301 = vmatprep.subr.bf16.mxu0 0
    %302 = vmatpush1.bf16.msra.mxu0 0
    %303 = vmatprep.subr.bf16.mxu0 0
    %304 = vmatpush1.bf16.msra.mxu0 0
    %305 = vmatprep.subr.bf16.mxu0 0
    %306 = vmatpush1.bf16.msra.mxu0 0
    %307 = vmatprep.subr.bf16.mxu0 0
    %308 = vmatpush1.bf16.msra.mxu0 0
    %309 = vmatprep.subr.bf16.mxu0 0
    %310 = vmatpush1.bf16.msra.mxu0 0
    %311 = vmatprep.subr.bf16.mxu0 0
    %312 = vmatpush1.bf16.msra.mxu0 0
    %313 = vmatprep.mubr.bf16.mxu0 0
    %314 = vmatmul.mubr.bf16.gmra.mrb[0].mxu0 %v279
    %v315 = vpop.f32.mrb[0].mxu0
    %v316 = vadd.f32 0.0, %v315
    %v317 = vpop.f32.mrb[0].mxu0
    %v318 = vpop.f32.mrb[0].mxu0
    %v319 = vpop.f32.mrb[0].mxu0
    %320 = vdwg.mxu0
    %v323 = vunpack.c.l.s4 1966171168
    %v324 = vunpack.c.0.s8 %v323
    %v325 = vlaneseq
    %v326 = vshrl.u32 %v325, 7
    %v327 = vsub.s32 %v324, %v326
    %v328 = vrot.slane %v316, %v327
    %v329 = vcombine.high %v328, %v328
    %v331 = vunpack.c.l.s4 1966171168
    %v332 = vunpack.c.0.s8 %v331
    %v333 = vlaneseq
    %v334 = vshrl.u32 %v333, 7
    %v335 = vsub.s32 %v332, %v334
    %v336 = vrot.slane %v328, %v335
    %v338 = vunpack.c.l.s4 1966171168
    %v339 = vunpack.c.0.s8 %v338
    %v340 = vlaneseq
    %v341 = vshrl.u32 %v340, 7
    %v342 = vsub.s32 %v339, %v341
    %v343 = vrot.slane %v329, %v342
    %v344 = vlaneseq
    %v345 = vshrl.u32 %v344, 7
    %v346 = vsub.s32 0, %v345
    %v347 = vrot.slane %v336, %v346
    %v348 = vlaneseq
    %v349 = vshrl.u32 %v348, 7
    %v350 = vsub.s32 0, %v349
    %v351 = vrot.slane %v343, %v350
    %v354 = vadd.f32 %v228, %v347
    %v355 = vadd.f32 %v231, %v351
    %v356 = vld [vmem:[#allocation10] sm:$0x1]
    %v358 = vlaneseq
    %v359 = vshrl.u32 %v358, 7
    %v360 = vsub.s32 0, %v359
    %v361 = vrot.slane %v356, %v360
    %v363 = vadd.f32 %v354, %v361
    %v364 = vadd.f32 %v355, %v361
    %v365 = vld [vmem:[%s6] sm:$0xf]
    %v366 = vld [vmem:[%s6 + $0x4] sm:$0xf]
    %v367 = vld [vmem:[%s6 + $0x8] sm:$0xf]
    %v368 = vld [vmem:[%s6 + $0xc] sm:$0xf]
    %v369 = vpack.c.bf16 %v168, %v168
    %v370 = vpack.c.bf16 %v169, %v169
    %v373 = vunpack.c.l.b16 %v369
    %v374 = vunpack.c.l.b16 %v370
    %v375 = vrot.slane %v374, 7
    %v376 = vsel %vm269, %v375, %v373
    %v377 = vpack.c.b16 %v376, %v376
    %v382 = vunpack.c.l.b16 %v365
    %v383 = vunpack.c.l.b16 %v366
    %v384 = vunpack.c.l.b16 %v367
    %v385 = vunpack.c.l.b16 %v368
    %v386 = vpack.c.b16 %v383, %v382
    %v387 = vpack.c.b16 %v385, %v384
    %vm390 = vcmask 261120
    %v392 = vsel %vm390, %v377, 0
    %394 = vmatprep.subr.bf16.mxu0 0
    %395 = vmatpush1.bf16.msra.mxu0 %v386
    %396 = vmatprep.subr.bf16.mxu0 0
    %397 = vmatpush1.bf16.msra.mxu0 %v387
    %398 = vmatprep.subr.bf16.mxu0 0
    %399 = vmatpush1.bf16.msra.mxu0 0
    %400 = vmatprep.subr.bf16.mxu0 0
    %401 = vmatpush1.bf16.msra.mxu0 0
    %402 = vmatprep.subr.bf16.mxu0 0
    %403 = vmatpush1.bf16.msra.mxu0 0
    %404 = vmatprep.subr.bf16.mxu0 0
    %405 = vmatpush1.bf16.msra.mxu0 0
    %406 = vmatprep.subr.bf16.mxu0 0
    %407 = vmatpush1.bf16.msra.mxu0 0
    %408 = vmatprep.subr.bf16.mxu0 0
    %409 = vmatpush1.bf16.msra.mxu0 0
    %410 = vmatprep.subr.bf16.mxu0 0
    %411 = vmatpush1.bf16.msra.mxu0 0
    %412 = vmatprep.subr.bf16.mxu0 0
    %413 = vmatpush1.bf16.msra.mxu0 0
    %414 = vmatprep.subr.bf16.mxu0 0
    %415 = vmatpush1.bf16.msra.mxu0 0
    %416 = vmatprep.subr.bf16.mxu0 0
    %417 = vmatpush1.bf16.msra.mxu0 0
    %418 = vmatprep.subr.bf16.mxu0 0
    %419 = vmatpush1.bf16.msra.mxu0 0
    %420 = vmatprep.subr.bf16.mxu0 0
    %421 = vmatpush1.bf16.msra.mxu0 0
    %422 = vmatprep.subr.bf16.mxu0 0
    %423 = vmatpush1.bf16.msra.mxu0 0
    %424 = vmatprep.subr.bf16.mxu0 0
    %425 = vmatpush1.bf16.msra.mxu0 0
    %426 = vmatprep.mubr.bf16.mxu0 0
    %427 = vmatmul.mubr.bf16.gmra.mrb[0].mxu0 %v392
    %v428 = vpop.f32.mrb[0].mxu0
    %v429 = vadd.f32 0.0, %v428
    %v430 = vpop.f32.mrb[0].mxu0
    %v431 = vpop.f32.mrb[0].mxu0
    %v432 = vpop.f32.mrb[0].mxu0
    %433 = vdwg.mxu0
    %v435 = vrot.slane %v429, 1
    %v438 = vadd.f32 %v363, %v429
    %v439 = vadd.f32 %v364, %v435
    %v440 = vxor.u32 %v438, 2147483648
    %v441 = vxor.u32 %v439, 2147483648
    %v442 = vmul.f32 %v440, 1.442695
    %v443 = vpow.pop %v442
    %v444 = vmul.f32 %v441, 1.442695
    %v445 = vpow.pop %v444
    %v446 = vadd.f32 %v443, 1.0
    %v447 = vadd.f32 %v445, 1.0
    %v448 = vrcp.pop %v446
    %v449 = vmul.f32 1.0, %v448
    %v450 = vrcp.pop %v447
    %v451 = vmul.f32 1.0, %v450
    %v452 = vtanh.pop %v438
    %v453 = vtanh.pop %v439
    %456 = vrot.lane.b32.xlu0 %v170, 32
    %v457 = vpop.permute.xlu0 %456
    %458 = vrot.lane.b32.xlu0 %v171, 32
    %v459 = vpop.permute.xlu0 %458
    %v462 = vmul.f32 %v449, %v457
    %v463 = vmul.f32 %v451, %v459
    %466 = vrot.lane.b32.xlu0 %v452, 64
    %v467 = vpop.permute.xlu0 %466
    %468 = vrot.lane.b32.xlu0 %v453, 64
    %v469 = vpop.permute.xlu0 %468
    %v472 = vmul.f32 %v449, %v467
    %v473 = vmul.f32 %v451, %v469
    %476 = vrot.lane.b32.xlu0 %v472, 32
    %v477 = vpop.permute.xlu0 %476
    %478 = vrot.lane.b32.xlu0 %v473, 32
    %v479 = vpop.permute.xlu0 %478
    %v482 = vadd.f32 %v462, %v477
    %v483 = vadd.f32 %v463, %v479
    %v484 = vtanh.pop %v482
    %v485 = vtanh.pop %v483
    %488 = vrot.lane.b32.xlu0 %v484, 64
    %v489 = vpop.permute.xlu0 %488
    %490 = vrot.lane.b32.xlu0 %v485, 64
    %v491 = vpop.permute.xlu0 %490
    %v494 = vmul.f32 %v449, %v489
    %v495 = vmul.f32 %v451, %v491
    %v496 = vpack.c.bf16 %v494, %v494
    %v497 = vpack.c.bf16 %v495, %v495
    %v500 = vunpack.c.l.b16 %v496
    %v501 = vunpack.c.l.b16 %v497
    %v502 = vrot.slane %v501, 7
    %v503 = vsel %vm269, %v502, %v500
    %v504 = vpack.c.b16 %v503, %v503
    %505 = vrot.lane.b32.xlu0 %v504, 32
    %v506 = vpop.permute.xlu0 %505
    %v508 = vsel %vm390, %v506, 0
    %510 = vmatprep.subr.bf16.mxu0 0
    %511 = vmatpush1.bf16.msra.mxu0 %v386
    %512 = vmatprep.subr.bf16.mxu0 0
    %513 = vmatpush1.bf16.msra.mxu0 %v387
    %514 = vmatprep.subr.bf16.mxu0 0
    %515 = vmatpush1.bf16.msra.mxu0 0
    %516 = vmatprep.subr.bf16.mxu0 0
    %517 = vmatpush1.bf16.msra.mxu0 0
    %518 = vmatprep.subr.bf16.mxu0 0
    %519 = vmatpush1.bf16.msra.mxu0 0
    %520 = vmatprep.subr.bf16.mxu0 0
    %521 = vmatpush1.bf16.msra.mxu0 0
    %522 = vmatprep.subr.bf16.mxu0 0
    %523 = vmatpush1.bf16.msra.mxu0 0
    %524 = vmatprep.subr.bf16.mxu0 0
    %525 = vmatpush1.bf16.msra.mxu0 0
    %526 = vmatprep.subr.bf16.mxu0 0
    %527 = vmatpush1.bf16.msra.mxu0 0
    %528 = vmatprep.subr.bf16.mxu0 0
    %529 = vmatpush1.bf16.msra.mxu0 0
    %530 = vmatprep.subr.bf16.mxu0 0
    %531 = vmatpush1.bf16.msra.mxu0 0
    %532 = vmatprep.subr.bf16.mxu0 0
    %533 = vmatpush1.bf16.msra.mxu0 0
    %534 = vmatprep.subr.bf16.mxu0 0
    %535 = vmatpush1.bf16.msra.mxu0 0
    %536 = vmatprep.subr.bf16.mxu0 0
    %537 = vmatpush1.bf16.msra.mxu0 0
    %538 = vmatprep.subr.bf16.mxu0 0
    %539 = vmatpush1.bf16.msra.mxu0 0
    %540 = vmatprep.subr.bf16.mxu0 0
    %541 = vmatpush1.bf16.msra.mxu0 0
    %542 = vmatprep.mubr.bf16.mxu0 0
    %543 = vmatmul.mubr.bf16.gmra.mrb[0].mxu0 %v508
    %v544 = vpop.f32.mrb[0].mxu0
    %v545 = vadd.f32 0.0, %v544
    %v546 = vpop.f32.mrb[0].mxu0
    %v547 = vpop.f32.mrb[0].mxu0
    %v548 = vpop.f32.mrb[0].mxu0
    %549 = vdwg.mxu0
    %v551 = vrot.slane %v545, 7
    %v554 = vadd.f32 %v363, %v551
    %v555 = vadd.f32 %v364, %v545
    %v556 = vxor.u32 %v554, 2147483648
    %v557 = vxor.u32 %v555, 2147483648
    %v558 = vmul.f32 %v556, 1.442695
    %v559 = vpow.pop %v558
    %v560 = vmul.f32 %v557, 1.442695
    %v561 = vpow.pop %v560
    %v562 = vadd.f32 %v559, 1.0
    %v563 = vadd.f32 %v561, 1.0
    %v564 = vrcp.pop %v562
    %v565 = vmul.f32 1.0, %v564
    %v566 = vrcp.pop %v563
    %v567 = vmul.f32 1.0, %v566
    %v568 = vtanh.pop %v554
    %v569 = vtanh.pop %v555
    %v572 = vrot.slane %v482, 7
    %v573 = vrot.slane %v483, 7
    %v576 = vmul.f32 %v565, %v572
    %v577 = vmul.f32 %v567, %v573
    %580 = vrot.lane.b32.xlu0 %v568, 64
    %v581 = vpop.permute.xlu0 %580
    %582 = vrot.lane.b32.xlu0 %v569, 64
    %v583 = vpop.permute.xlu0 %582
    %v586 = vmul.f32 %v565, %v581
    %v587 = vmul.f32 %v567, %v583
    %590 = vrot.lane.b32.xlu0 %v586, 32
    %v591 = vpop.permute.xlu0 %590
    %592 = vrot.lane.b32.xlu0 %v587, 32
    %v593 = vpop.permute.xlu0 %592
    %v596 = vadd.f32 %v576, %v591
    %v597 = vadd.f32 %v577, %v593
    %v598 = vtanh.pop %v596
    %v599 = vtanh.pop %v597
    %602 = vrot.lane.b32.xlu0 %v598, 64
    %v603 = vpop.permute.xlu0 %602
    %604 = vrot.lane.b32.xlu0 %v599, 64
    %v605 = vpop.permute.xlu0 %604
    %v608 = vmul.f32 %v565, %v603
    %v609 = vmul.f32 %v567, %v605
    %v610 = vpack.c.bf16 %v608, %v608
    %v611 = vpack.c.bf16 %v609, %v609
    %v614 = vunpack.c.l.b16 %v610
    %v615 = vunpack.c.l.b16 %v611
    %v616 = vrot.slane %v614, 1
    %v617 = vsel %vm269, %v615, %v616
    %v618 = vpack.c.b16 %v617, %v617
    %619 = vrot.lane.b32.xlu0 %v618, 32
    %v620 = vpop.permute.xlu0 %619
    %v622 = vsel %vm390, %v620, 0
    %624 = vmatprep.subr.bf16.mxu0 0
    %625 = vmatpush1.bf16.msra.mxu0 %v386
    %626 = vmatprep.subr.bf16.mxu0 0
    %627 = vmatpush1.bf16.msra.mxu0 %v387
    %628 = vmatprep.subr.bf16.mxu0 0
    %629 = vmatpush1.bf16.msra.mxu0 0
    %630 = vmatprep.subr.bf16.mxu0 0
    %631 = vmatpush1.bf16.msra.mxu0 0
    %632 = vmatprep.subr.bf16.mxu0 0
    %633 = vmatpush1.bf16.msra.mxu0 0
    %634 = vmatprep.subr.bf16.mxu0 0
    %635 = vmatpush1.bf16.msra.mxu0 0
    %636 = vmatprep.subr.bf16.mxu0 0
    %637 = vmatpush1.bf16.msra.mxu0 0
    %638 = vmatprep.subr.bf16.mxu0 0
    %639 = vmatpush1.bf16.msra.mxu0 0
    %640 = vmatprep.subr.bf16.mxu0 0
    %641 = vmatpush1.bf16.msra.mxu0 0
    %642 = vmatprep.subr.bf16.mxu0 0
    %643 = vmatpush1.bf16.msra.mxu0 0
    %644 = vmatprep.subr.bf16.mxu0 0
    %645 = vmatpush1.bf16.msra.mxu0 0
    %646 = vmatprep.subr.bf16.mxu0 0
    %647 = vmatpush1.bf16.msra.mxu0 0
    %648 = vmatprep.subr.bf16.mxu0 0
    %649 = vmatpush1.bf16.msra.mxu0 0
    %650 = vmatprep.subr.bf16.mxu0 0
    %651 = vmatpush1.bf16.msra.mxu0 0
    %652 = vmatprep.subr.bf16.mxu0 0
    %653 = vmatpush1.bf16.msra.mxu0 0
    %654 = vmatprep.subr.bf16.mxu0 0
    %655 = vmatpush1.bf16.msra.mxu0 0
    %656 = vmatprep.mubr.bf16.mxu0 0
    %657 = vmatmul.mubr.bf16.gmra.mrb[0].mxu0 %v622
    %v658 = vpop.f32.mrb[0].mxu0
    %v659 = vadd.f32 0.0, %v658
    %v660 = vpop.f32.mrb[0].mxu0
    %v661 = vpop.f32.mrb[0].mxu0
    %v662 = vpop.f32.mrb[0].mxu0
    %663 = vdwg.mxu0
    %v665 = vrot.slane %v659, 6
    %v666 = vrot.slane %v659, 7
    %v669 = vadd.f32 %v363, %v665
    %v670 = vadd.f32 %v364, %v666
    %v671 = vxor.u32 %v669, 2147483648
    %v672 = vxor.u32 %v670, 2147483648
    %v673 = vmul.f32 %v671, 1.442695
    %v674 = vpow.pop %v673
    %v675 = vmul.f32 %v672, 1.442695
    %v676 = vpow.pop %v675
    %v677 = vadd.f32 %v674, 1.0
    %v678 = vadd.f32 %v676, 1.0
    %v679 = vrcp.pop %v677
    %v680 = vmul.f32 1.0, %v679
    %v681 = vrcp.pop %v678
    %v682 = vmul.f32 1.0, %v681
    %v683 = vtanh.pop %v669
    %v684 = vtanh.pop %v670
    %v687 = vrot.slane %v596, 7
    %v688 = vrot.slane %v597, 7
    %v691 = vmul.f32 %v680, %v687
    %v692 = vmul.f32 %v682, %v688
    %695 = vrot.lane.b32.xlu0 %v683, 64
    %v696 = vpop.permute.xlu0 %695
    %697 = vrot.lane.b32.xlu0 %v684, 64
    %v698 = vpop.permute.xlu0 %697
    %v701 = vmul.f32 %v680, %v696
    %v702 = vmul.f32 %v682, %v698
    %705 = vrot.lane.b32.xlu0 %v701, 32
    %v706 = vpop.permute.xlu0 %705
    %707 = vrot.lane.b32.xlu0 %v702, 32
    %v708 = vpop.permute.xlu0 %707
    %v711 = vadd.f32 %v691, %v706
    %v712 = vadd.f32 %v692, %v708
    %v713 = vtanh.pop %v711
    %v714 = vtanh.pop %v712
    %717 = vrot.lane.b32.xlu0 %v713, 64
    %v718 = vpop.permute.xlu0 %717
    %719 = vrot.lane.b32.xlu0 %v714, 64
    %v720 = vpop.permute.xlu0 %719
    %v723 = vmul.f32 %v680, %v718
    %v724 = vmul.f32 %v682, %v720
    %v725 = vpack.c.bf16 %v723, %v723
    %v726 = vpack.c.bf16 %v724, %v724
    %v729 = vunpack.c.l.b16 %v725
    %v730 = vunpack.c.l.b16 %v726
    %v731 = vrot.slane %v729, 2
    %v732 = vrot.slane %v730, 1
    %v733 = vsel %vm269, %v732, %v731
    %v734 = vpack.c.b16 %v733, %v733
    %735 = vrot.lane.b32.xlu0 %v734, 32
    %v736 = vpop.permute.xlu0 %735
    %v738 = vsel %vm390, %v736, 0
    %740 = vmatprep.subr.bf16.mxu0 0
    %741 = vmatpush1.bf16.msra.mxu0 %v386
    %742 = vmatprep.subr.bf16.mxu0 0
    %743 = vmatpush1.bf16.msra.mxu0 %v387
    %744 = vmatprep.subr.bf16.mxu0 0
    %745 = vmatpush1.bf16.msra.mxu0 0
    %746 = vmatprep.subr.bf16.mxu0 0
    %747 = vmatpush1.bf16.msra.mxu0 0
    %748 = vmatprep.subr.bf16.mxu0 0
    %749 = vmatpush1.bf16.msra.mxu0 0
    %750 = vmatprep.subr.bf16.mxu0 0
    %751 = vmatpush1.bf16.msra.mxu0 0
    %752 = vmatprep.subr.bf16.mxu0 0
    %753 = vmatpush1.bf16.msra.mxu0 0
    %754 = vmatprep.subr.bf16.mxu0 0
    %755 = vmatpush1.bf16.msra.mxu0 0
    %756 = vmatprep.subr.bf16.mxu0 0
    %757 = vmatpush1.bf16.msra.mxu0 0
    %758 = vmatprep.subr.bf16.mxu0 0
    %759 = vmatpush1.bf16.msra.mxu0 0
    %760 = vmatprep.subr.bf16.mxu0 0
    %761 = vmatpush1.bf16.msra.mxu0 0
    %762 = vmatprep.subr.bf16.mxu0 0
    %763 = vmatpush1.bf16.msra.mxu0 0
    %764 = vmatprep.subr.bf16.mxu0 0
    %765 = vmatpush1.bf16.msra.mxu0 0
    %766 = vmatprep.subr.bf16.mxu0 0
    %767 = vmatpush1.bf16.msra.mxu0 0
    %768 = vmatprep.subr.bf16.mxu0 0
    %769 = vmatpush1.bf16.msra.mxu0 0
    %770 = vmatprep.subr.bf16.mxu0 0
    %771 = vmatpush1.bf16.msra.mxu0 0
    %772 = vmatprep.mubr.bf16.mxu0 0
    %773 = vmatmul.mubr.bf16.gmra.mrb[0].mxu0 %v738
    %v774 = vpop.f32.mrb[0].mxu0
    %v775 = vadd.f32 0.0, %v774
    %v776 = vpop.f32.mrb[0].mxu0
    %v777 = vpop.f32.mrb[0].mxu0
    %v778 = vpop.f32.mrb[0].mxu0
    %779 = vdwg.mxu0
    %v781 = vrot.slane %v775, 5
    %v782 = vrot.slane %v775, 6
    %v785 = vadd.f32 %v363, %v781
    %v786 = vadd.f32 %v364, %v782
    %v787 = vxor.u32 %v785, 2147483648
    %v788 = vxor.u32 %v786, 2147483648
    %v789 = vmul.f32 %v787, 1.442695
    %v790 = vpow.pop %v789
    %v791 = vmul.f32 %v788, 1.442695
    %v792 = vpow.pop %v791
    %v793 = vadd.f32 %v790, 1.0
    %v794 = vadd.f32 %v792, 1.0
    %v795 = vrcp.pop %v793
    %v796 = vmul.f32 1.0, %v795
    %v797 = vrcp.pop %v794
    %v798 = vmul.f32 1.0, %v797
    %v799 = vtanh.pop %v785
    %v800 = vtanh.pop %v786
    %v803 = vrot.slane %v711, 7
    %v804 = vrot.slane %v712, 7
    %v807 = vmul.f32 %v796, %v803
    %v808 = vmul.f32 %v798, %v804
    %811 = vrot.lane.b32.xlu0 %v799, 64
    %v812 = vpop.permute.xlu0 %811
    %813 = vrot.lane.b32.xlu0 %v800, 64
    %v814 = vpop.permute.xlu0 %813
    %v817 = vmul.f32 %v796, %v812
    %v818 = vmul.f32 %v798, %v814
    %821 = vrot.lane.b32.xlu0 %v817, 32
    %v822 = vpop.permute.xlu0 %821
    %823 = vrot.lane.b32.xlu0 %v818, 32
    %v824 = vpop.permute.xlu0 %823
    %v827 = vadd.f32 %v807, %v822
    %v828 = vadd.f32 %v808, %v824
    %v829 = vtanh.pop %v827
    %v830 = vtanh.pop %v828
    %833 = vrot.lane.b32.xlu0 %v829, 64
    %v834 = vpop.permute.xlu0 %833
    %835 = vrot.lane.b32.xlu0 %v830, 64
    %v836 = vpop.permute.xlu0 %835
    %v839 = vmul.f32 %v796, %v834
    %v840 = vmul.f32 %v798, %v836
    %v841 = vpack.c.bf16 %v839, %v839
    %v842 = vpack.c.bf16 %v840, %v840
    %v845 = vunpack.c.l.b16 %v841
    %v846 = vunpack.c.l.b16 %v842
    %v847 = vrot.slane %v845, 3
    %v848 = vrot.slane %v846, 2
    %v849 = vsel %vm269, %v848, %v847
    %v850 = vpack.c.b16 %v849, %v849
    %851 = vrot.lane.b32.xlu0 %v850, 32
    %v852 = vpop.permute.xlu0 %851
    %v854 = vsel %vm390, %v852, 0
    %856 = vmatprep.subr.bf16.mxu0 0
    %857 = vmatpush1.bf16.msra.mxu0 %v386
    %858 = vmatprep.subr.bf16.mxu0 0
    %859 = vmatpush1.bf16.msra.mxu0 %v387
    %860 = vmatprep.subr.bf16.mxu0 0
    %861 = vmatpush1.bf16.msra.mxu0 0
    %862 = vmatprep.subr.bf16.mxu0 0
    %863 = vmatpush1.bf16.msra.mxu0 0
    %864 = vmatprep.subr.bf16.mxu0 0
    %865 = vmatpush1.bf16.msra.mxu0 0
    %866 = vmatprep.subr.bf16.mxu0 0
    %867 = vmatpush1.bf16.msra.mxu0 0
    %868 = vmatprep.subr.bf16.mxu0 0
    %869 = vmatpush1.bf16.msra.mxu0 0
    %870 = vmatprep.subr.bf16.mxu0 0
    %871 = vmatpush1.bf16.msra.mxu0 0
    %872 = vmatprep.subr.bf16.mxu0 0
    %873 = vmatpush1.bf16.msra.mxu0 0
    %874 = vmatprep.subr.bf16.mxu0 0
    %875 = vmatpush1.bf16.msra.mxu0 0
    %876 = vmatprep.subr.bf16.mxu0 0
    %877 = vmatpush1.bf16.msra.mxu0 0
    %878 = vmatprep.subr.bf16.mxu0 0
    %879 = vmatpush1.bf16.msra.mxu0 0
    %880 = vmatprep.subr.bf16.mxu0 0
    %881 = vmatpush1.bf16.msra.mxu0 0
    %882 = vmatprep.subr.bf16.mxu0 0
    %883 = vmatpush1.bf16.msra.mxu0 0
    %884 = vmatprep.subr.bf16.mxu0 0
    %885 = vmatpush1.bf16.msra.mxu0 0
    %886 = vmatprep.subr.bf16.mxu0 0
    %887 = vmatpush1.bf16.msra.mxu0 0
    %888 = vmatprep.mubr.bf16.mxu0 0
    %889 = vmatmul.mubr.bf16.gmra.mrb[0].mxu0 %v854
    %v890 = vpop.f32.mrb[0].mxu0
    %v891 = vadd.f32 0.0, %v890
    %v892 = vpop.f32.mrb[0].mxu0
    %v893 = vpop.f32.mrb[0].mxu0
    %v894 = vpop.f32.mrb[0].mxu0
    %895 = vdwg.mxu0
    %v897 = vrot.slane %v891, 4
    %v898 = vrot.slane %v891, 5
    %v901 = vadd.f32 %v363, %v897
    %v902 = vadd.f32 %v364, %v898
    %v903 = vxor.u32 %v901, 2147483648
    %v904 = vxor.u32 %v902, 2147483648
    %v905 = vmul.f32 %v903, 1.442695
    %v906 = vpow.pop %v905
    %v907 = vmul.f32 %v904, 1.442695
    %v908 = vpow.pop %v907
    %v909 = vadd.f32 %v906, 1.0
    %v910 = vadd.f32 %v908, 1.0
    %v911 = vrcp.pop %v909
    %v912 = vmul.f32 1.0, %v911
    %v913 = vrcp.pop %v910
    %v914 = vmul.f32 1.0, %v913
    %v915 = vtanh.pop %v901
    %v916 = vtanh.pop %v902
    %v919 = vrot.slane %v827, 7
    %v920 = vrot.slane %v828, 7
    %v923 = vmul.f32 %v912, %v919
    %v924 = vmul.f32 %v914, %v920
    %927 = vrot.lane.b32.xlu0 %v915, 64
    %v928 = vpop.permute.xlu0 %927
    %929 = vrot.lane.b32.xlu0 %v916, 64
    %v930 = vpop.permute.xlu0 %929
    %v933 = vmul.f32 %v912, %v928
    %v934 = vmul.f32 %v914, %v930
    %937 = vrot.lane.b32.xlu0 %v933, 32
    %v938 = vpop.permute.xlu0 %937
    %939 = vrot.lane.b32.xlu0 %v934, 32
    %v940 = vpop.permute.xlu0 %939
    %v943 = vadd.f32 %v923, %v938
    %v944 = vadd.f32 %v924, %v940
    %v945 = vtanh.pop %v943
    %v946 = vtanh.pop %v944
    %949 = vrot.lane.b32.xlu0 %v945, 64
    %v950 = vpop.permute.xlu0 %949
    %951 = vrot.lane.b32.xlu0 %v946, 64
    %v952 = vpop.permute.xlu0 %951
    %v955 = vmul.f32 %v912, %v950
    %v956 = vmul.f32 %v914, %v952
    %v957 = vpack.c.bf16 %v955, %v955
    %v958 = vpack.c.bf16 %v956, %v956
    %v961 = vunpack.c.l.b16 %v957
    %v962 = vunpack.c.l.b16 %v958
    %v963 = vrot.slane %v961, 4
    %v964 = vrot.slane %v962, 3
    %v965 = vsel %vm269, %v964, %v963
    %v966 = vpack.c.b16 %v965, %v965
    %967 = vrot.lane.b32.xlu0 %v966, 32
    %v968 = vpop.permute.xlu0 %967
    %v970 = vsel %vm390, %v968, 0
    %972 = vmatprep.subr.bf16.mxu0 0
    %973 = vmatpush1.bf16.msra.mxu0 %v386
    %974 = vmatprep.subr.bf16.mxu0 0
    %975 = vmatpush1.bf16.msra.mxu0 %v387
    %976 = vmatprep.subr.bf16.mxu0 0
    %977 = vmatpush1.bf16.msra.mxu0 0
    %978 = vmatprep.subr.bf16.mxu0 0
    %979 = vmatpush1.bf16.msra.mxu0 0
    %980 = vmatprep.subr.bf16.mxu0 0
    %981 = vmatpush1.bf16.msra.mxu0 0
    %982 = vmatprep.subr.bf16.mxu0 0
    %983 = vmatpush1.bf16.msra.mxu0 0
    %984 = vmatprep.subr.bf16.mxu0 0
    %985 = vmatpush1.bf16.msra.mxu0 0
    %986 = vmatprep.subr.bf16.mxu0 0
    %987 = vmatpush1.bf16.msra.mxu0 0
    %988 = vmatprep.subr.bf16.mxu0 0
    %989 = vmatpush1.bf16.msra.mxu0 0
    %990 = vmatprep.subr.bf16.mxu0 0
    %991 = vmatpush1.bf16.msra.mxu0 0
    %992 = vmatprep.subr.bf16.mxu0 0
    %993 = vmatpush1.bf16.msra.mxu0 0
    %994 = vmatprep.subr.bf16.mxu0 0
    %995 = vmatpush1.bf16.msra.mxu0 0
    %996 = vmatprep.subr.bf16.mxu0 0
    %997 = vmatpush1.bf16.msra.mxu0 0
    %998 = vmatprep.subr.bf16.mxu0 0
    %999 = vmatpush1.bf16.msra.mxu0 0
    %1000 = vmatprep.subr.bf16.mxu0 0
    %1001 = vmatpush1.bf16.msra.mxu0 0
    %1002 = vmatprep.subr.bf16.mxu0 0
    %1003 = vmatpush1.bf16.msra.mxu0 0
    %1004 = vmatprep.mubr.bf16.mxu0 0
    %1005 = vmatmul.mubr.bf16.gmra.mrb[0].mxu0 %v970
    %v1006 = vpop.f32.mrb[0].mxu0
    %v1007 = vadd.f32 0.0, %v1006
    %v1008 = vpop.f32.mrb[0].mxu0
    %v1009 = vpop.f32.mrb[0].mxu0
    %v1010 = vpop.f32.mrb[0].mxu0
    %1011 = vdwg.mxu0
    %v1013 = vrot.slane %v1007, 3
    %v1014 = vrot.slane %v1007, 4
    %v1017 = vadd.f32 %v363, %v1013
    %v1018 = vadd.f32 %v364, %v1014
    %v1019 = vxor.u32 %v1017, 2147483648
    %v1020 = vxor.u32 %v1018, 2147483648
    %v1021 = vmul.f32 %v1019, 1.442695
    %v1022 = vpow.pop %v1021
    %v1023 = vmul.f32 %v1020, 1.442695
    %v1024 = vpow.pop %v1023
    %v1025 = vadd.f32 %v1022, 1.0
    %v1026 = vadd.f32 %v1024, 1.0
    %v1027 = vrcp.pop %v1025
    %v1028 = vmul.f32 1.0, %v1027
    %v1029 = vrcp.pop %v1026
    %v1030 = vmul.f32 1.0, %v1029
    %v1031 = vtanh.pop %v1017
    %v1032 = vtanh.pop %v1018
    %v1035 = vrot.slane %v943, 7
    %v1036 = vrot.slane %v944, 7
    %v1039 = vmul.f32 %v1028, %v1035
    %v1040 = vmul.f32 %v1030, %v1036
    %1043 = vrot.lane.b32.xlu0 %v1031, 64
    %v1044 = vpop.permute.xlu0 %1043
    %1045 = vrot.lane.b32.xlu0 %v1032, 64
    %v1046 = vpop.permute.xlu0 %1045
    %v1049 = vmul.f32 %v1028, %v1044
    %v1050 = vmul.f32 %v1030, %v1046
    %1053 = vrot.lane.b32.xlu0 %v1049, 32
    %v1054 = vpop.permute.xlu0 %1053
    %1055 = vrot.lane.b32.xlu0 %v1050, 32
    %v1056 = vpop.permute.xlu0 %1055
    %v1059 = vadd.f32 %v1039, %v1054
    %v1060 = vadd.f32 %v1040, %v1056
    %v1061 = vtanh.pop %v1059
    %v1062 = vtanh.pop %v1060
    %1065 = vrot.lane.b32.xlu0 %v1061, 64
    %v1066 = vpop.permute.xlu0 %1065
    %1067 = vrot.lane.b32.xlu0 %v1062, 64
    %v1068 = vpop.permute.xlu0 %1067
    %v1071 = vmul.f32 %v1028, %v1066
    %v1072 = vmul.f32 %v1030, %v1068
    %v1073 = vpack.c.bf16 %v1071, %v1071
    %v1074 = vpack.c.bf16 %v1072, %v1072
    %v1077 = vunpack.c.l.b16 %v1073
    %v1078 = vunpack.c.l.b16 %v1074
    %v1079 = vrot.slane %v1077, 5
    %v1080 = vrot.slane %v1078, 4
    %v1081 = vsel %vm269, %v1080, %v1079
    %v1082 = vpack.c.b16 %v1081, %v1081
    %1083 = vrot.lane.b32.xlu0 %v1082, 32
    %v1084 = vpop.permute.xlu0 %1083
    %v1086 = vsel %vm390, %v1084, 0
    %1088 = vmatprep.subr.bf16.mxu0 0
    %1089 = vmatpush1.bf16.msra.mxu0 %v386
    %1090 = vmatprep.subr.bf16.mxu0 0
    %1091 = vmatpush1.bf16.msra.mxu0 %v387
    %1092 = vmatprep.subr.bf16.mxu0 0
    %1093 = vmatpush1.bf16.msra.mxu0 0
    %1094 = vmatprep.subr.bf16.mxu0 0
    %1095 = vmatpush1.bf16.msra.mxu0 0
    %1096 = vmatprep.subr.bf16.mxu0 0
    %1097 = vmatpush1.bf16.msra.mxu0 0
    %1098 = vmatprep.subr.bf16.mxu0 0
    %1099 = vmatpush1.bf16.msra.mxu0 0
    %1100 = vmatprep.subr.bf16.mxu0 0
    %1101 = vmatpush1.bf16.msra.mxu0 0
    %1102 = vmatprep.subr.bf16.mxu0 0
    %1103 = vmatpush1.bf16.msra.mxu0 0
    %1104 = vmatprep.subr.bf16.mxu0 0
    %1105 = vmatpush1.bf16.msra.mxu0 0
    %1106 = vmatprep.subr.bf16.mxu0 0
    %1107 = vmatpush1.bf16.msra.mxu0 0
    %1108 = vmatprep.subr.bf16.mxu0 0
    %1109 = vmatpush1.bf16.msra.mxu0 0
    %1110 = vmatprep.subr.bf16.mxu0 0
    %1111 = vmatpush1.bf16.msra.mxu0 0
    %1112 = vmatprep.subr.bf16.mxu0 0
    %1113 = vmatpush1.bf16.msra.mxu0 0
    %1114 = vmatprep.subr.bf16.mxu0 0
    %1115 = vmatpush1.bf16.msra.mxu0 0
    %1116 = vmatprep.subr.bf16.mxu0 0
    %1117 = vmatpush1.bf16.msra.mxu0 0
    %1118 = vmatprep.subr.bf16.mxu0 0
    %1119 = vmatpush1.bf16.msra.mxu0 0
    %1120 = vmatprep.mubr.bf16.mxu0 0
    %1121 = vmatmul.mubr.bf16.gmra.mrb[0].mxu0 %v1086
    %v1122 = vpop.f32.mrb[0].mxu0
    %v1123 = vadd.f32 0.0, %v1122
    %v1124 = vpop.f32.mrb[0].mxu0
    %v1125 = vpop.f32.mrb[0].mxu0
    %v1126 = vpop.f32.mrb[0].mxu0
    %1127 = vdwg.mxu0
    %v1129 = vrot.slane %v1123, 2
    %v1130 = vrot.slane %v1123, 3
    %v1133 = vadd.f32 %v363, %v1129
    %v1134 = vadd.f32 %v364, %v1130
    %v1135 = vxor.u32 %v1133, 2147483648
    %v1136 = vxor.u32 %v1134, 2147483648
    %v1137 = vmul.f32 %v1135, 1.442695
    %v1138 = vpow.pop %v1137
    %v1139 = vmul.f32 %v1136, 1.442695
    %v1140 = vpow.pop %v1139
    %v1141 = vadd.f32 %v1138, 1.0
    %v1142 = vadd.f32 %v1140, 1.0
    %v1143 = vrcp.pop %v1141
    %v1144 = vmul.f32 1.0, %v1143
    %v1145 = vrcp.pop %v1142
    %v1146 = vmul.f32 1.0, %v1145
    %v1147 = vtanh.pop %v1133
    %v1148 = vtanh.pop %v1134
    %v1151 = vrot.slane %v1059, 7
    %v1152 = vrot.slane %v1060, 7
    %v1155 = vmul.f32 %v1144, %v1151
    %v1156 = vmul.f32 %v1146, %v1152
    %1159 = vrot.lane.b32.xlu0 %v1147, 64
    %v1160 = vpop.permute.xlu0 %1159
    %1161 = vrot.lane.b32.xlu0 %v1148, 64
    %v1162 = vpop.permute.xlu0 %1161
    %v1165 = vmul.f32 %v1144, %v1160
    %v1166 = vmul.f32 %v1146, %v1162
    %1169 = vrot.lane.b32.xlu0 %v1165, 32
    %v1170 = vpop.permute.xlu0 %1169
    %1171 = vrot.lane.b32.xlu0 %v1166, 32
    %v1172 = vpop.permute.xlu0 %1171
    %v1175 = vadd.f32 %v1155, %v1170
    %v1176 = vadd.f32 %v1156, %v1172
    %v1177 = vtanh.pop %v1175
    %v1178 = vtanh.pop %v1176
    %1181 = vrot.lane.b32.xlu0 %v1177, 64
    %v1182 = vpop.permute.xlu0 %1181
    %1183 = vrot.lane.b32.xlu0 %v1178, 64
    %v1184 = vpop.permute.xlu0 %1183
    %v1187 = vmul.f32 %v1144, %v1182
    %v1188 = vmul.f32 %v1146, %v1184
    %v1189 = vpack.c.bf16 %v1187, %v1187
    %v1190 = vpack.c.bf16 %v1188, %v1188
    %v1193 = vunpack.c.l.b16 %v1189
    %v1194 = vunpack.c.l.b16 %v1190
    %v1195 = vrot.slane %v1193, 6
    %v1196 = vrot.slane %v1194, 5
    %v1197 = vsel %vm269, %v1196, %v1195
    %v1198 = vpack.c.b16 %v1197, %v1197
    %1199 = vrot.lane.b32.xlu0 %v1198, 32
    %v1200 = vpop.permute.xlu0 %1199
    %v1202 = vsel %vm390, %v1200, 0
    %1204 = vmatprep.subr.bf16.mxu0 0
    %1205 = vmatpush1.bf16.msra.mxu0 %v386
    %1206 = vmatprep.subr.bf16.mxu0 0
    %1207 = vmatpush1.bf16.msra.mxu0 %v387
    %1208 = vmatprep.subr.bf16.mxu0 0
    %1209 = vmatpush1.bf16.msra.mxu0 0
    %1210 = vmatprep.subr.bf16.mxu0 0
    %1211 = vmatpush1.bf16.msra.mxu0 0
    %1212 = vmatprep.subr.bf16.mxu0 0
    %1213 = vmatpush1.bf16.msra.mxu0 0
    %1214 = vmatprep.subr.bf16.mxu0 0
    %1215 = vmatpush1.bf16.msra.mxu0 0
    %1216 = vmatprep.subr.bf16.mxu0 0
    %1217 = vmatpush1.bf16.msra.mxu0 0
    %1218 = vmatprep.subr.bf16.mxu0 0
    %1219 = vmatpush1.bf16.msra.mxu0 0
    %1220 = vmatprep.subr.bf16.mxu0 0
    %1221 = vmatpush1.bf16.msra.mxu0 0
    %1222 = vmatprep.subr.bf16.mxu0 0
    %1223 = vmatpush1.bf16.msra.mxu0 0
    %1224 = vmatprep.subr.bf16.mxu0 0
    %1225 = vmatpush1.bf16.msra.mxu0 0
    %1226 = vmatprep.subr.bf16.mxu0 0
    %1227 = vmatpush1.bf16.msra.mxu0 0
    %1228 = vmatprep.subr.bf16.mxu0 0
    %1229 = vmatpush1.bf16.msra.mxu0 0
    %1230 = vmatprep.subr.bf16.mxu0 0
    %1231 = vmatpush1.bf16.msra.mxu0 0
    %1232 = vmatprep.subr.bf16.mxu0 0
    %1233 = vmatpush1.bf16.msra.mxu0 0
    %1234 = vmatprep.subr.bf16.mxu0 0
    %1235 = vmatpush1.bf16.msra.mxu0 0
    %1236 = vmatprep.mubr.bf16.mxu0 0
    %1237 = vmatmul.mubr.bf16.gmra.mrb[0].mxu0 %v1202
    %v1238 = vpop.f32.mrb[0].mxu0
    %v1239 = vadd.f32 0.0, %v1238
    %v1240 = vpop.f32.mrb[0].mxu0
    %v1241 = vpop.f32.mrb[0].mxu0
    %v1242 = vpop.f32.mrb[0].mxu0
    %1243 = vdwg.mxu0
    %v1245 = vrot.slane %v1239, 1
    %v1246 = vrot.slane %v1239, 2
    %v1249 = vadd.f32 %v363, %v1245
    %v1250 = vadd.f32 %v364, %v1246
    %v1251 = vxor.u32 %v1249, 2147483648
    %v1252 = vxor.u32 %v1250, 2147483648
    %v1253 = vmul.f32 %v1251, 1.442695
    %v1254 = vpow.pop %v1253
    %v1255 = vmul.f32 %v1252, 1.442695
    %v1256 = vpow.pop %v1255
    %v1257 = vadd.f32 %v1254, 1.0
    %v1258 = vadd.f32 %v1256, 1.0
    %v1259 = vrcp.pop %v1257
    %v1260 = vmul.f32 1.0, %v1259
    %v1261 = vrcp.pop %v1258
    %v1262 = vmul.f32 1.0, %v1261
    %v1263 = vtanh.pop %v1249
    %v1264 = vtanh.pop %v1250
    %v1267 = vrot.slane %v1175, 7
    %v1268 = vrot.slane %v1176, 7
    %v1271 = vmul.f32 %v1260, %v1267
    %v1272 = vmul.f32 %v1262, %v1268
    %1275 = vrot.lane.b32.xlu0 %v1263, 64
    %v1276 = vpop.permute.xlu0 %1275
    %1277 = vrot.lane.b32.xlu0 %v1264, 64
    %v1278 = vpop.permute.xlu0 %1277
    %v1281 = vmul.f32 %v1260, %v1276
    %v1282 = vmul.f32 %v1262, %v1278
    %1285 = vrot.lane.b32.xlu0 %v1281, 32
    %v1286 = vpop.permute.xlu0 %1285
    %1287 = vrot.lane.b32.xlu0 %v1282, 32
    %v1288 = vpop.permute.xlu0 %1287
    %v1291 = vadd.f32 %v1271, %v1286
    %v1292 = vadd.f32 %v1272, %v1288
    %v1293 = vtanh.pop %v1291
    %v1294 = vtanh.pop %v1292
    %1297 = vrot.lane.b32.xlu0 %v1293, 64
    %v1298 = vpop.permute.xlu0 %1297
    %1299 = vrot.lane.b32.xlu0 %v1294, 64
    %v1300 = vpop.permute.xlu0 %1299
    %v1303 = vmul.f32 %v1260, %v1298
    %v1304 = vmul.f32 %v1262, %v1300
    %1307 = vrot.lane.b32.xlu0 %v1303, 32
    %v1308 = vpop.permute.xlu0 %1307
    %1309 = vrot.lane.b32.xlu0 %v1304, 32
    %v1310 = vpop.permute.xlu0 %1309
    %vm1313 = vcmask 261127
    %1314 = vst.msk [vmem:[#allocation17 - $0x7] sm:$0x80] %vm1313, %v1308
    %1315 = vst.msk [vmem:[#allocation17 - $0x5] sm:$0x80] %vm1313, %v1310
    %1318 = vrot.lane.b32.xlu0 %v1291, 96
    %v1319 = vpop.permute.xlu0 %1318
    %1320 = vrot.lane.b32.xlu0 %v1292, 96
    %v1321 = vpop.permute.xlu0 %1320
    %1324 = vst.msk [vmem:[#allocation19 - $0x7] sm:$0x80] %vm1313, %v1319
    %1325 = vst.msk [vmem:[#allocation19 - $0x5] sm:$0x80] %vm1313, %v1321
    %vm1326 = vcmask 1040384
    %v1327 = vsel %vm1326, %v494, %v608
    %v1328 = vsel %vm1326, %v495, %v609
    %vm1329 = vcmask 1041408
    %v1330 = vsel %vm1329, %v1327, %v723
    %v1331 = vsel %vm1329, %v1328, %v724
    %vm1332 = vcmask 1042432
    %v1333 = vsel %vm1332, %v1330, %v839
    %v1334 = vsel %vm1332, %v1331, %v840
    %vm1335 = vcmask 1043456
    %v1336 = vsel %vm1335, %v1333, %v955
    %v1337 = vsel %vm1335, %v1334, %v956
    %vm1338 = vcmask 1044480
    %v1339 = vsel %vm1338, %v1336, %v1071
    %v1340 = vsel %vm1338, %v1337, %v1072
    %vm1341 = vcmask 1045504
    %v1342 = vsel %vm1341, %v1339, %v1187
    %v1343 = vsel %vm1341, %v1340, %v1188
    %vm1344 = vcmask 1046528
    %v1345 = vsel %vm1344, %v1342, %v1303
    %v1346 = vsel %vm1344, %v1343, %v1304
    %v1347 = vpack.c.bf16 %v1346, %v1345
    %s1348 = scalar_lea.vmem %s5, 16
    %v1349 = vld [vmem:[%s1348] sm:$0xf]
    %v1350 = vld [vmem:[%s1348 + $0x4] sm:$0xf]
    %v1351 = vld [vmem:[%s1348 + $0x8] sm:$0xf]
    %v1352 = vld [vmem:[%s1348 + $0xc] sm:$0xf]
    %s1353 = scalar_lea.vmem [#allocation10], 1
    %v1354 = vld [vmem:[%s1353] sm:$0x1]
    %v1356 = vlaneseq
    %v1357 = vshrl.u32 %v1356, 7
    %v1358 = vsub.s32 0, %v1357
    %v1359 = vrot.slane %v1354, %v1358
    %1362 = vrot.lane.b32.xlu0 %v1347, 32
    %v1363 = vpop.permute.xlu0 %1362
    %v1368 = vunpack.c.l.b16 %v1349
    %v1369 = vunpack.c.l.b16 %v1350
    %v1370 = vunpack.c.l.b16 %v1351
    %v1371 = vunpack.c.l.b16 %v1352
    %v1372 = vpack.c.b16 %v1369, %v1368
    %v1373 = vpack.c.b16 %v1371, %v1370
    %v1377 = vsel %vm390, %v1363, 0
    %1379 = vmatprep.subr.bf16.mxu0 0
    %1380 = vmatpush1.bf16.msra.mxu0 %v1372
    %1381 = vmatprep.subr.bf16.mxu0 0
    %1382 = vmatpush1.bf16.msra.mxu0 %v1373
    %1383 = vmatprep.subr.bf16.mxu0 0
    %1384 = vmatpush1.bf16.msra.mxu0 0
    %1385 = vmatprep.subr.bf16.mxu0 0
    %1386 = vmatpush1.bf16.msra.mxu0 0
    %1387 = vmatprep.subr.bf16.mxu0 0
    %1388 = vmatpush1.bf16.msra.mxu0 0
    %1389 = vmatprep.subr.bf16.mxu0 0
    %1390 = vmatpush1.bf16.msra.mxu0 0
    %1391 = vmatprep.subr.bf16.mxu0 0
    %1392 = vmatpush1.bf16.msra.mxu0 0
    %1393 = vmatprep.subr.bf16.mxu0 0
    %1394 = vmatpush1.bf16.msra.mxu0 0
    %1395 = vmatprep.subr.bf16.mxu0 0
    %1396 = vmatpush1.bf16.msra.mxu0 0
    %1397 = vmatprep.subr.bf16.mxu0 0
    %1398 = vmatpush1.bf16.msra.mxu0 0
    %1399 = vmatprep.subr.bf16.mxu0 0
    %1400 = vmatpush1.bf16.msra.mxu0 0
    %1401 = vmatprep.subr.bf16.mxu0 0
    %1402 = vmatpush1.bf16.msra.mxu0 0
    %1403 = vmatprep.subr.bf16.mxu0 0
    %1404 = vmatpush1.bf16.msra.mxu0 0
    %1405 = vmatprep.subr.bf16.mxu0 0
    %1406 = vmatpush1.bf16.msra.mxu0 0
    %1407 = vmatprep.subr.bf16.mxu0 0
    %1408 = vmatpush1.bf16.msra.mxu0 0
    %1409 = vmatprep.subr.bf16.mxu0 0
    %1410 = vmatpush1.bf16.msra.mxu0 0
    %1411 = vmatprep.mubr.bf16.mxu0 0
    %1412 = vmatmul.mubr.bf16.gmra.mrb[0].mxu0 %v1377
    %v1413 = vpop.f32.mrb[0].mxu0
    %v1414 = vadd.f32 %v1359, %v1413
    %v1415 = vpop.f32.mrb[0].mxu0
    %v1416 = vpop.f32.mrb[0].mxu0
    %v1417 = vadd.f32 %v1359, %v1416
    %v1418 = vpop.f32.mrb[0].mxu0
    %1419 = vdwg.mxu0
    %s1420 = scalar_lea.vmem %s6, 16
    %v1421 = vld [vmem:[%s1420] sm:$0xf]
    %v1422 = vld [vmem:[%s1420 + $0x4] sm:$0xf]
    %v1423 = vld [vmem:[%s1420 + $0x8] sm:$0xf]
    %v1424 = vld [vmem:[%s1420 + $0xc] sm:$0xf]
    %v1425 = vrot.slane %v373, 1
    %v1426 = vsel %vm269, %v374, %v1425
    %v1427 = vpack.c.b16 %v1426, %v1426
    %v1432 = vunpack.c.l.b16 %v1421
    %v1433 = vunpack.c.l.b16 %v1422
    %v1434 = vunpack.c.l.b16 %v1423
    %v1435 = vunpack.c.l.b16 %v1424
    %v1436 = vpack.c.b16 %v1433, %v1432
    %v1437 = vpack.c.b16 %v1435, %v1434
    %v1441 = vsel %vm390, %v1427, 0
    %1443 = vmatprep.subr.bf16.mxu0 0
    %1444 = vmatpush1.bf16.msra.mxu0 %v1436
    %1445 = vmatprep.subr.bf16.mxu0 0
    %1446 = vmatpush1.bf16.msra.mxu0 %v1437
    %1447 = vmatprep.subr.bf16.mxu0 0
    %1448 = vmatpush1.bf16.msra.mxu0 0
    %1449 = vmatprep.subr.bf16.mxu0 0
    %1450 = vmatpush1.bf16.msra.mxu0 0
    %1451 = vmatprep.subr.bf16.mxu0 0
    %1452 = vmatpush1.bf16.msra.mxu0 0
    %1453 = vmatprep.subr.bf16.mxu0 0
    %1454 = vmatpush1.bf16.msra.mxu0 0
    %1455 = vmatprep.subr.bf16.mxu0 0
    %1456 = vmatpush1.bf16.msra.mxu0 0
    %1457 = vmatprep.subr.bf16.mxu0 0
    %1458 = vmatpush1.bf16.msra.mxu0 0
    %1459 = vmatprep.subr.bf16.mxu0 0
    %1460 = vmatpush1.bf16.msra.mxu0 0
    %1461 = vmatprep.subr.bf16.mxu0 0
    %1462 = vmatpush1.bf16.msra.mxu0 0
    %1463 = vmatprep.subr.bf16.mxu0 0
    %1464 = vmatpush1.bf16.msra.mxu0 0
    %1465 = vmatprep.subr.bf16.mxu0 0
    %1466 = vmatpush1.bf16.msra.mxu0 0
    %1467 = vmatprep.subr.bf16.mxu0 0
    %1468 = vmatpush1.bf16.msra.mxu0 0
    %1469 = vmatprep.subr.bf16.mxu0 0
    %1470 = vmatpush1.bf16.msra.mxu0 0
    %1471 = vmatprep.subr.bf16.mxu0 0
    %1472 = vmatpush1.bf16.msra.mxu0 0
    %1473 = vmatprep.subr.bf16.mxu0 0
    %1474 = vmatpush1.bf16.msra.mxu0 0
    %1475 = vmatprep.mubr.bf16.mxu0 0
    %1476 = vmatmul.mubr.bf16.gmra.mrb[0].mxu0 %v1441
    %v1477 = vpop.f32.mrb[0].mxu0
    %v1478 = vadd.f32 0.0, %v1477
    %v1479 = vpop.f32.mrb[0].mxu0
    %v1480 = vpop.f32.mrb[0].mxu0
    %v1481 = vpop.f32.mrb[0].mxu0
    %1482 = vdwg.mxu0
    %v1484 = vrot.slane %v1478, 1
    %v1487 = vadd.f32 %v1414, %v1478
    %v1488 = vadd.f32 %v1417, %v1484
    %v1489 = vxor.u32 %v1487, 2147483648
    %v1490 = vxor.u32 %v1488, 2147483648
    %v1491 = vmul.f32 %v1489, 1.442695
    %v1492 = vpow.pop %v1491
    %v1493 = vmul.f32 %v1490, 1.442695
    %v1494 = vpow.pop %v1493
    %v1495 = vadd.f32 %v1492, 1.0
    %v1496 = vadd.f32 %v1494, 1.0
    %v1497 = vrcp.pop %v1495
    %v1498 = vmul.f32 1.0, %v1497
    %v1499 = vrcp.pop %v1496
    %v1500 = vmul.f32 1.0, %v1499
    %v1501 = vtanh.pop %v1487
    %v1502 = vtanh.pop %v1488
    %v1503 = vrot.slane %v170, 1
    %v1504 = vrot.slane %v171, 1
    %1505 = vrot.lane.b32.xlu0 %v1503, 32
    %v1506 = vpop.permute.xlu0 %1505
    %1507 = vrot.lane.b32.xlu0 %v1504, 32
    %v1508 = vpop.permute.xlu0 %1507
    %v1511 = vmul.f32 %v1498, %v1506
    %v1512 = vmul.f32 %v1500, %v1508
    %1515 = vrot.lane.b32.xlu0 %v1501, 64
    %v1516 = vpop.permute.xlu0 %1515
    %1517 = vrot.lane.b32.xlu0 %v1502, 64
    %v1518 = vpop.permute.xlu0 %1517
    %v1521 = vmul.f32 %v1498, %v1516
    %v1522 = vmul.f32 %v1500, %v1518
    %1525 = vrot.lane.b32.xlu0 %v1521, 32
    %v1526 = vpop.permute.xlu0 %1525
    %1527 = vrot.lane.b32.xlu0 %v1522, 32
    %v1528 = vpop.permute.xlu0 %1527
    %v1531 = vadd.f32 %v1511, %v1526
    %v1532 = vadd.f32 %v1512, %v1528
    %v1533 = vtanh.pop %v1531
    %v1534 = vtanh.pop %v1532
    %1537 = vrot.lane.b32.xlu0 %v1533, 64
    %v1538 = vpop.permute.xlu0 %1537
    %1539 = vrot.lane.b32.xlu0 %v1534, 64
    %v1540 = vpop.permute.xlu0 %1539
    %v1543 = vmul.f32 %v1498, %v1538
    %v1544 = vmul.f32 %v1500, %v1540
    %v1545 = vpack.c.bf16 %v1543, %v1543
    %v1546 = vpack.c.bf16 %v1544, %v1544
    %v1549 = vunpack.c.l.b16 %v1545
    %v1550 = vunpack.c.l.b16 %v1546
    %v1551 = vrot.slane %v1550, 7
    %v1552 = vsel %vm269, %v1551, %v1549
    %v1553 = vpack.c.b16 %v1552, %v1552
    %1554 = vrot.lane.b32.xlu0 %v1553, 32
    %v1555 = vpop.permute.xlu0 %1554
    %v1557 = vsel %vm390, %v1555, 0
    %1559 = vmatprep.subr.bf16.mxu0 0
    %1560 = vmatpush1.bf16.msra.mxu0 %v1436
    %1561 = vmatprep.subr.bf16.mxu0 0
    %1562 = vmatpush1.bf16.msra.mxu0 %v1437
    %1563 = vmatprep.subr.bf16.mxu0 0
    %1564 = vmatpush1.bf16.msra.mxu0 0
    %1565 = vmatprep.subr.bf16.mxu0 0
    %1566 = vmatpush1.bf16.msra.mxu0 0
    %1567 = vmatprep.subr.bf16.mxu0 0
    %1568 = vmatpush1.bf16.msra.mxu0 0
    %1569 = vmatprep.subr.bf16.mxu0 0
    %1570 = vmatpush1.bf16.msra.mxu0 0
    %1571 = vmatprep.subr.bf16.mxu0 0
    %1572 = vmatpush1.bf16.msra.mxu0 0
    %1573 = vmatprep.subr.bf16.mxu0 0
    %1574 = vmatpush1.bf16.msra.mxu0 0
    %1575 = vmatprep.subr.bf16.mxu0 0
    %1576 = vmatpush1.bf16.msra.mxu0 0
    %1577 = vmatprep.subr.bf16.mxu0 0
    %1578 = vmatpush1.bf16.msra.mxu0 0
    %1579 = vmatprep.subr.bf16.mxu0 0
    %1580 = vmatpush1.bf16.msra.mxu0 0
    %1581 = vmatprep.subr.bf16.mxu0 0
    %1582 = vmatpush1.bf16.msra.mxu0 0
    %1583 = vmatprep.subr.bf16.mxu0 0
    %1584 = vmatpush1.bf16.msra.mxu0 0
    %1585 = vmatprep.subr.bf16.mxu0 0
    %1586 = vmatpush1.bf16.msra.mxu0 0
    %1587 = vmatprep.subr.bf16.mxu0 0
    %1588 = vmatpush1.bf16.msra.mxu0 0
    %1589 = vmatprep.subr.bf16.mxu0 0
    %1590 = vmatpush1.bf16.msra.mxu0 0
    %1591 = vmatprep.mubr.bf16.mxu0 0
    %1592 = vmatmul.mubr.bf16.gmra.mrb[0].mxu0 %v1557
    %v1593 = vpop.f32.mrb[0].mxu0
    %v1594 = vadd.f32 0.0, %v1593
    %v1595 = vpop.f32.mrb[0].mxu0
    %v1596 = vpop.f32.mrb[0].mxu0
    %v1597 = vpop.f32.mrb[0].mxu0
    %1598 = vdwg.mxu0
    %v1600 = vrot.slane %v1594, 7
    %v1603 = vadd.f32 %v1414, %v1600
    %v1604 = vadd.f32 %v1417, %v1594
    %v1605 = vxor.u32 %v1603, 2147483648
    %v1606 = vxor.u32 %v1604, 2147483648
    %v1607 = vmul.f32 %v1605, 1.442695
    %v1608 = vpow.pop %v1607
    %v1609 = vmul.f32 %v1606, 1.442695
    %v1610 = vpow.pop %v1609
    %v1611 = vadd.f32 %v1608, 1.0
    %v1612 = vadd.f32 %v1610, 1.0
    %v1613 = vrcp.pop %v1611
    %v1614 = vmul.f32 1.0, %v1613
    %v1615 = vrcp.pop %v1612
    %v1616 = vmul.f32 1.0, %v1615
    %v1617 = vtanh.pop %v1603
    %v1618 = vtanh.pop %v1604
    %v1621 = vrot.slane %v1531, 7
    %v1622 = vrot.slane %v1532, 7
    %v1625 = vmul.f32 %v1614, %v1621
    %v1626 = vmul.f32 %v1616, %v1622
    %1629 = vrot.lane.b32.xlu0 %v1617, 64
    %v1630 = vpop.permute.xlu0 %1629
    %1631 = vrot.lane.b32.xlu0 %v1618, 64
    %v1632 = vpop.permute.xlu0 %1631
    %v1635 = vmul.f32 %v1614, %v1630
    %v1636 = vmul.f32 %v1616, %v1632
    %1639 = vrot.lane.b32.xlu0 %v1635, 32
    %v1640 = vpop.permute.xlu0 %1639
    %1641 = vrot.lane.b32.xlu0 %v1636, 32
    %v1642 = vpop.permute.xlu0 %1641
    %v1645 = vadd.f32 %v1625, %v1640
    %v1646 = vadd.f32 %v1626, %v1642
    %v1647 = vtanh.pop %v1645
    %v1648 = vtanh.pop %v1646
    %1651 = vrot.lane.b32.xlu0 %v1647, 64
    %v1652 = vpop.permute.xlu0 %1651
    %1653 = vrot.lane.b32.xlu0 %v1648, 64
    %v1654 = vpop.permute.xlu0 %1653
    %v1657 = vmul.f32 %v1614, %v1652
    %v1658 = vmul.f32 %v1616, %v1654
    %v1659 = vpack.c.bf16 %v1657, %v1657
    %v1660 = vpack.c.bf16 %v1658, %v1658
    %v1663 = vunpack.c.l.b16 %v1659
    %v1664 = vunpack.c.l.b16 %v1660
    %v1665 = vrot.slane %v1663, 1
    %v1666 = vsel %vm269, %v1664, %v1665
    %v1667 = vpack.c.b16 %v1666, %v1666
    %1668 = vrot.lane.b32.xlu0 %v1667, 32
    %v1669 = vpop.permute.xlu0 %1668
    %v1671 = vsel %vm390, %v1669, 0
    %1673 = vmatprep.subr.bf16.mxu0 0
    %1674 = vmatpush1.bf16.msra.mxu0 %v1436
    %1675 = vmatprep.subr.bf16.mxu0 0
    %1676 = vmatpush1.bf16.msra.mxu0 %v1437
    %1677 = vmatprep.subr.bf16.mxu0 0
    %1678 = vmatpush1.bf16.msra.mxu0 0
    %1679 = vmatprep.subr.bf16.mxu0 0
    %1680 = vmatpush1.bf16.msra.mxu0 0
    %1681 = vmatprep.subr.bf16.mxu0 0
    %1682 = vmatpush1.bf16.msra.mxu0 0
    %1683 = vmatprep.subr.bf16.mxu0 0
    %1684 = vmatpush1.bf16.msra.mxu0 0
    %1685 = vmatprep.subr.bf16.mxu0 0
    %1686 = vmatpush1.bf16.msra.mxu0 0
    %1687 = vmatprep.subr.bf16.mxu0 0
    %1688 = vmatpush1.bf16.msra.mxu0 0
    %1689 = vmatprep.subr.bf16.mxu0 0
    %1690 = vmatpush1.bf16.msra.mxu0 0
    %1691 = vmatprep.subr.bf16.mxu0 0
    %1692 = vmatpush1.bf16.msra.mxu0 0
    %1693 = vmatprep.subr.bf16.mxu0 0
    %1694 = vmatpush1.bf16.msra.mxu0 0
    %1695 = vmatprep.subr.bf16.mxu0 0
    %1696 = vmatpush1.bf16.msra.mxu0 0
    %1697 = vmatprep.subr.bf16.mxu0 0
    %1698 = vmatpush1.bf16.msra.mxu0 0
    %1699 = vmatprep.subr.bf16.mxu0 0
    %1700 = vmatpush1.bf16.msra.mxu0 0
    %1701 = vmatprep.subr.bf16.mxu0 0
    %1702 = vmatpush1.bf16.msra.mxu0 0
    %1703 = vmatprep.subr.bf16.mxu0 0
    %1704 = vmatpush1.bf16.msra.mxu0 0
    %1705 = vmatprep.mubr.bf16.mxu0 0
    %1706 = vmatmul.mubr.bf16.gmra.mrb[0].mxu0 %v1671
    %v1707 = vpop.f32.mrb[0].mxu0
    %v1708 = vadd.f32 0.0, %v1707
    %v1709 = vpop.f32.mrb[0].mxu0
    %v1710 = vpop.f32.mrb[0].mxu0
    %v1711 = vpop.f32.mrb[0].mxu0
    %1712 = vdwg.mxu0
    %v1714 = vrot.slane %v1708, 6
    %v1715 = vrot.slane %v1708, 7
    %v1718 = vadd.f32 %v1414, %v1714
    %v1719 = vadd.f32 %v1417, %v1715
    %v1720 = vxor.u32 %v1718, 2147483648
    %v1721 = vxor.u32 %v1719, 2147483648
    %v1722 = vmul.f32 %v1720, 1.442695
    %v1723 = vpow.pop %v1722
    %v1724 = vmul.f32 %v1721, 1.442695
    %v1725 = vpow.pop %v1724
    %v1726 = vadd.f32 %v1723, 1.0
    %v1727 = vadd.f32 %v1725, 1.0
    %v1728 = vrcp.pop %v1726
    %v1729 = vmul.f32 1.0, %v1728
    %v1730 = vrcp.pop %v1727
    %v1731 = vmul.f32 1.0, %v1730
    %v1732 = vtanh.pop %v1718
    %v1733 = vtanh.pop %v1719
    %v1736 = vrot.slane %v1645, 7
    %v1737 = vrot.slane %v1646, 7
    %v1740 = vmul.f32 %v1729, %v1736
    %v1741 = vmul.f32 %v1731, %v1737
    %1744 = vrot.lane.b32.xlu0 %v1732, 64
    %v1745 = vpop.permute.xlu0 %1744
    %1746 = vrot.lane.b32.xlu0 %v1733, 64
    %v1747 = vpop.permute.xlu0 %1746
    %v1750 = vmul.f32 %v1729, %v1745
    %v1751 = vmul.f32 %v1731, %v1747
    %1754 = vrot.lane.b32.xlu0 %v1750, 32
    %v1755 = vpop.permute.xlu0 %1754
    %1756 = vrot.lane.b32.xlu0 %v1751, 32
    %v1757 = vpop.permute.xlu0 %1756
    %v1760 = vadd.f32 %v1740, %v1755
    %v1761 = vadd.f32 %v1741, %v1757
    %v1762 = vtanh.pop %v1760
    %v1763 = vtanh.pop %v1761
    %1766 = vrot.lane.b32.xlu0 %v1762, 64
    %v1767 = vpop.permute.xlu0 %1766
    %1768 = vrot.lane.b32.xlu0 %v1763, 64
    %v1769 = vpop.permute.xlu0 %1768
    %v1772 = vmul.f32 %v1729, %v1767
    %v1773 = vmul.f32 %v1731, %v1769
    %v1774 = vpack.c.bf16 %v1772, %v1772
    %v1775 = vpack.c.bf16 %v1773, %v1773
    %v1778 = vunpack.c.l.b16 %v1774
    %v1779 = vunpack.c.l.b16 %v1775
    %v1780 = vrot.slane %v1778, 2
    %v1781 = vrot.slane %v1779, 1
    %v1782 = vsel %vm269, %v1781, %v1780
    %v1783 = vpack.c.b16 %v1782, %v1782
    %1784 = vrot.lane.b32.xlu0 %v1783, 32
    %v1785 = vpop.permute.xlu0 %1784
    %v1787 = vsel %vm390, %v1785, 0
    %1789 = vmatprep.subr.bf16.mxu0 0
    %1790 = vmatpush1.bf16.msra.mxu0 %v1436
    %1791 = vmatprep.subr.bf16.mxu0 0
    %1792 = vmatpush1.bf16.msra.mxu0 %v1437
    %1793 = vmatprep.subr.bf16.mxu0 0
    %1794 = vmatpush1.bf16.msra.mxu0 0
    %1795 = vmatprep.subr.bf16.mxu0 0
    %1796 = vmatpush1.bf16.msra.mxu0 0
    %1797 = vmatprep.subr.bf16.mxu0 0
    %1798 = vmatpush1.bf16.msra.mxu0 0
    %1799 = vmatprep.subr.bf16.mxu0 0
    %1800 = vmatpush1.bf16.msra.mxu0 0
    %1801 = vmatprep.subr.bf16.mxu0 0
    %1802 = vmatpush1.bf16.msra.mxu0 0
    %1803 = vmatprep.subr.bf16.mxu0 0
    %1804 = vmatpush1.bf16.msra.mxu0 0
    %1805 = vmatprep.subr.bf16.mxu0 0
    %1806 = vmatpush1.bf16.msra.mxu0 0
    %1807 = vmatprep.subr.bf16.mxu0 0
    %1808 = vmatpush1.bf16.msra.mxu0 0
    %1809 = vmatprep.subr.bf16.mxu0 0
    %1810 = vmatpush1.bf16.msra.mxu0 0
    %1811 = vmatprep.subr.bf16.mxu0 0
    %1812 = vmatpush1.bf16.msra.mxu0 0
    %1813 = vmatprep.subr.bf16.mxu0 0
    %1814 = vmatpush1.bf16.msra.mxu0 0
    %1815 = vmatprep.subr.bf16.mxu0 0
    %1816 = vmatpush1.bf16.msra.mxu0 0
    %1817 = vmatprep.subr.bf16.mxu0 0
    %1818 = vmatpush1.bf16.msra.mxu0 0
    %1819 = vmatprep.subr.bf16.mxu0 0
    %1820 = vmatpush1.bf16.msra.mxu0 0
    %1821 = vmatprep.mubr.bf16.mxu0 0
    %1822 = vmatmul.mubr.bf16.gmra.mrb[0].mxu0 %v1787
    %v1823 = vpop.f32.mrb[0].mxu0
    %v1824 = vadd.f32 0.0, %v1823
    %v1825 = vpop.f32.mrb[0].mxu0
    %v1826 = vpop.f32.mrb[0].mxu0
    %v1827 = vpop.f32.mrb[0].mxu0
    %1828 = vdwg.mxu0
    %v1830 = vrot.slane %v1824, 5
    %v1831 = vrot.slane %v1824, 6
    %v1834 = vadd.f32 %v1414, %v1830
    %v1835 = vadd.f32 %v1417, %v1831
    %v1836 = vxor.u32 %v1834, 2147483648
    %v1837 = vxor.u32 %v1835, 2147483648
    %v1838 = vmul.f32 %v1836, 1.442695
    %v1839 = vpow.pop %v1838
    %v1840 = vmul.f32 %v1837, 1.442695
    %v1841 = vpow.pop %v1840
    %v1842 = vadd.f32 %v1839, 1.0
    %v1843 = vadd.f32 %v1841, 1.0
    %v1844 = vrcp.pop %v1842
    %v1845 = vmul.f32 1.0, %v1844
    %v1846 = vrcp.pop %v1843
    %v1847 = vmul.f32 1.0, %v1846
    %v1848 = vtanh.pop %v1834
    %v1849 = vtanh.pop %v1835
    %v1852 = vrot.slane %v1760, 7
    %v1853 = vrot.slane %v1761, 7
    %v1856 = vmul.f32 %v1845, %v1852
    %v1857 = vmul.f32 %v1847, %v1853
    %1860 = vrot.lane.b32.xlu0 %v1848, 64
    %v1861 = vpop.permute.xlu0 %1860
    %1862 = vrot.lane.b32.xlu0 %v1849, 64
    %v1863 = vpop.permute.xlu0 %1862
    %v1866 = vmul.f32 %v1845, %v1861
    %v1867 = vmul.f32 %v1847, %v1863
    %1870 = vrot.lane.b32.xlu0 %v1866, 32
    %v1871 = vpop.permute.xlu0 %1870
    %1872 = vrot.lane.b32.xlu0 %v1867, 32
    %v1873 = vpop.permute.xlu0 %1872
    %v1876 = vadd.f32 %v1856, %v1871
    %v1877 = vadd.f32 %v1857, %v1873
    %v1878 = vtanh.pop %v1876
    %v1879 = vtanh.pop %v1877
    %1882 = vrot.lane.b32.xlu0 %v1878, 64
    %v1883 = vpop.permute.xlu0 %1882
    %1884 = vrot.lane.b32.xlu0 %v1879, 64
    %v1885 = vpop.permute.xlu0 %1884
    %v1888 = vmul.f32 %v1845, %v1883
    %v1889 = vmul.f32 %v1847, %v1885
    %v1890 = vpack.c.bf16 %v1888, %v1888
    %v1891 = vpack.c.bf16 %v1889, %v1889
    %v1894 = vunpack.c.l.b16 %v1890
    %v1895 = vunpack.c.l.b16 %v1891
    %v1896 = vrot.slane %v1894, 3
    %v1897 = vrot.slane %v1895, 2
    %v1898 = vsel %vm269, %v1897, %v1896
    %v1899 = vpack.c.b16 %v1898, %v1898
    %1900 = vrot.lane.b32.xlu0 %v1899, 32
    %v1901 = vpop.permute.xlu0 %1900
    %v1903 = vsel %vm390, %v1901, 0
    %1905 = vmatprep.subr.bf16.mxu0 0
    %1906 = vmatpush1.bf16.msra.mxu0 %v1436
    %1907 = vmatprep.subr.bf16.mxu0 0
    %1908 = vmatpush1.bf16.msra.mxu0 %v1437
    %1909 = vmatprep.subr.bf16.mxu0 0
    %1910 = vmatpush1.bf16.msra.mxu0 0
    %1911 = vmatprep.subr.bf16.mxu0 0
    %1912 = vmatpush1.bf16.msra.mxu0 0
    %1913 = vmatprep.subr.bf16.mxu0 0
    %1914 = vmatpush1.bf16.msra.mxu0 0
    %1915 = vmatprep.subr.bf16.mxu0 0
    %1916 = vmatpush1.bf16.msra.mxu0 0
    %1917 = vmatprep.subr.bf16.mxu0 0
    %1918 = vmatpush1.bf16.msra.mxu0 0
    %1919 = vmatprep.subr.bf16.mxu0 0
    %1920 = vmatpush1.bf16.msra.mxu0 0
    %1921 = vmatprep.subr.bf16.mxu0 0
    %1922 = vmatpush1.bf16.msra.mxu0 0
    %1923 = vmatprep.subr.bf16.mxu0 0
    %1924 = vmatpush1.bf16.msra.mxu0 0
    %1925 = vmatprep.subr.bf16.mxu0 0
    %1926 = vmatpush1.bf16.msra.mxu0 0
    %1927 = vmatprep.subr.bf16.mxu0 0
    %1928 = vmatpush1.bf16.msra.mxu0 0
    %1929 = vmatprep.subr.bf16.mxu0 0
    %1930 = vmatpush1.bf16.msra.mxu0 0
    %1931 = vmatprep.subr.bf16.mxu0 0
    %1932 = vmatpush1.bf16.msra.mxu0 0
    %1933 = vmatprep.subr.bf16.mxu0 0
    %1934 = vmatpush1.bf16.msra.mxu0 0
    %1935 = vmatprep.subr.bf16.mxu0 0
    %1936 = vmatpush1.bf16.msra.mxu0 0
    %1937 = vmatprep.mubr.bf16.mxu0 0
    %1938 = vmatmul.mubr.bf16.gmra.mrb[0].mxu0 %v1903
    %v1939 = vpop.f32.mrb[0].mxu0
    %v1940 = vadd.f32 0.0, %v1939
    %v1941 = vpop.f32.mrb[0].mxu0
    %v1942 = vpop.f32.mrb[0].mxu0
    %v1943 = vpop.f32.mrb[0].mxu0
    %1944 = vdwg.mxu0
    %v1946 = vrot.slane %v1940, 4
    %v1947 = vrot.slane %v1940, 5
    %v1950 = vadd.f32 %v1414, %v1946
    %v1951 = vadd.f32 %v1417, %v1947
    %v1952 = vxor.u32 %v1950, 2147483648
    %v1953 = vxor.u32 %v1951, 2147483648
    %v1954 = vmul.f32 %v1952, 1.442695
    %v1955 = vpow.pop %v1954
    %v1956 = vmul.f32 %v1953, 1.442695
    %v1957 = vpow.pop %v1956
    %v1958 = vadd.f32 %v1955, 1.0
    %v1959 = vadd.f32 %v1957, 1.0
    %v1960 = vrcp.pop %v1958
    %v1961 = vmul.f32 1.0, %v1960
    %v1962 = vrcp.pop %v1959
    %v1963 = vmul.f32 1.0, %v1962
    %v1964 = vtanh.pop %v1950
    %v1965 = vtanh.pop %v1951
    %v1968 = vrot.slane %v1876, 7
    %v1969 = vrot.slane %v1877, 7
    %v1972 = vmul.f32 %v1961, %v1968
    %v1973 = vmul.f32 %v1963, %v1969
    %1976 = vrot.lane.b32.xlu0 %v1964, 64
    %v1977 = vpop.permute.xlu0 %1976
    %1978 = vrot.lane.b32.xlu0 %v1965, 64
    %v1979 = vpop.permute.xlu0 %1978
    %v1982 = vmul.f32 %v1961, %v1977
    %v1983 = vmul.f32 %v1963, %v1979
    %1986 = vrot.lane.b32.xlu0 %v1982, 32
    %v1987 = vpop.permute.xlu0 %1986
    %1988 = vrot.lane.b32.xlu0 %v1983, 32
    %v1989 = vpop.permute.xlu0 %1988
    %v1992 = vadd.f32 %v1972, %v1987
    %v1993 = vadd.f32 %v1973, %v1989
    %v1994 = vtanh.pop %v1992
    %v1995 = vtanh.pop %v1993
    %1998 = vrot.lane.b32.xlu0 %v1994, 64
    %v1999 = vpop.permute.xlu0 %1998
    %2000 = vrot.lane.b32.xlu0 %v1995, 64
    %v2001 = vpop.permute.xlu0 %2000
    %v2004 = vmul.f32 %v1961, %v1999
    %v2005 = vmul.f32 %v1963, %v2001
    %v2006 = vpack.c.bf16 %v2004, %v2004
    %v2007 = vpack.c.bf16 %v2005, %v2005
    %v2010 = vunpack.c.l.b16 %v2006
    %v2011 = vunpack.c.l.b16 %v2007
    %v2012 = vrot.slane %v2010, 4
    %v2013 = vrot.slane %v2011, 3
    %v2014 = vsel %vm269, %v2013, %v2012
    %v2015 = vpack.c.b16 %v2014, %v2014
    %2016 = vrot.lane.b32.xlu0 %v2015, 32
    %v2017 = vpop.permute.xlu0 %2016
    %v2019 = vsel %vm390, %v2017, 0
    %2021 = vmatprep.subr.bf16.mxu0 0
    %2022 = vmatpush1.bf16.msra.mxu0 %v1436
    %2023 = vmatprep.subr.bf16.mxu0 0
    %2024 = vmatpush1.bf16.msra.mxu0 %v1437
    %2025 = vmatprep.subr.bf16.mxu0 0
    %2026 = vmatpush1.bf16.msra.mxu0 0
    %2027 = vmatprep.subr.bf16.mxu0 0
    %2028 = vmatpush1.bf16.msra.mxu0 0
    %2029 = vmatprep.subr.bf16.mxu0 0
    %2030 = vmatpush1.bf16.msra.mxu0 0
    %2031 = vmatprep.subr.bf16.mxu0 0
    %2032 = vmatpush1.bf16.msra.mxu0 0
    %2033 = vmatprep.subr.bf16.mxu0 0
    %2034 = vmatpush1.bf16.msra.mxu0 0
    %2035 = vmatprep.subr.bf16.mxu0 0
    %2036 = vmatpush1.bf16.msra.mxu0 0
    %2037 = vmatprep.subr.bf16.mxu0 0
    %2038 = vmatpush1.bf16.msra.mxu0 0
    %2039 = vmatprep.subr.bf16.mxu0 0
    %2040 = vmatpush1.bf16.msra.mxu0 0
    %2041 = vmatprep.subr.bf16.mxu0 0
    %2042 = vmatpush1.bf16.msra.mxu0 0
    %2043 = vmatprep.subr.bf16.mxu0 0
    %2044 = vmatpush1.bf16.msra.mxu0 0
    %2045 = vmatprep.subr.bf16.mxu0 0
    %2046 = vmatpush1.bf16.msra.mxu0 0
    %2047 = vmatprep.subr.bf16.mxu0 0
    %2048 = vmatpush1.bf16.msra.mxu0 0
    %2049 = vmatprep.subr.bf16.mxu0 0
    %2050 = vmatpush1.bf16.msra.mxu0 0
    %2051 = vmatprep.subr.bf16.mxu0 0
    %2052 = vmatpush1.bf16.msra.mxu0 0
    %2053 = vmatprep.mubr.bf16.mxu0 0
    %2054 = vmatmul.mubr.bf16.gmra.mrb[0].mxu0 %v2019
    %v2055 = vpop.f32.mrb[0].mxu0
    %v2056 = vadd.f32 0.0, %v2055
    %v2057 = vpop.f32.mrb[0].mxu0
    %v2058 = vpop.f32.mrb[0].mxu0
    %v2059 = vpop.f32.mrb[0].mxu0
    %2060 = vdwg.mxu0
    %v2062 = vrot.slane %v2056, 3
    %v2063 = vrot.slane %v2056, 4
    %v2066 = vadd.f32 %v1414, %v2062
    %v2067 = vadd.f32 %v1417, %v2063
    %v2068 = vxor.u32 %v2066, 2147483648
    %v2069 = vxor.u32 %v2067, 2147483648
    %v2070 = vmul.f32 %v2068, 1.442695
    %v2071 = vpow.pop %v2070
    %v2072 = vmul.f32 %v2069, 1.442695
    %v2073 = vpow.pop %v2072
    %v2074 = vadd.f32 %v2071, 1.0
    %v2075 = vadd.f32 %v2073, 1.0
    %v2076 = vrcp.pop %v2074
    %v2077 = vmul.f32 1.0, %v2076
    %v2078 = vrcp.pop %v2075
    %v2079 = vmul.f32 1.0, %v2078
    %v2080 = vtanh.pop %v2066
    %v2081 = vtanh.pop %v2067
    %v2084 = vrot.slane %v1992, 7
    %v2085 = vrot.slane %v1993, 7
    %v2088 = vmul.f32 %v2077, %v2084
    %v2089 = vmul.f32 %v2079, %v2085
    %2092 = vrot.lane.b32.xlu0 %v2080, 64
    %v2093 = vpop.permute.xlu0 %2092
    %2094 = vrot.lane.b32.xlu0 %v2081, 64
    %v2095 = vpop.permute.xlu0 %2094
    %v2098 = vmul.f32 %v2077, %v2093
    %v2099 = vmul.f32 %v2079, %v2095
    %2102 = vrot.lane.b32.xlu0 %v2098, 32
    %v2103 = vpop.permute.xlu0 %2102
    %2104 = vrot.lane.b32.xlu0 %v2099, 32
    %v2105 = vpop.permute.xlu0 %2104
    %v2108 = vadd.f32 %v2088, %v2103
    %v2109 = vadd.f32 %v2089, %v2105
    %v2110 = vtanh.pop %v2108
    %v2111 = vtanh.pop %v2109
    %2114 = vrot.lane.b32.xlu0 %v2110, 64
    %v2115 = vpop.permute.xlu0 %2114
    %2116 = vrot.lane.b32.xlu0 %v2111, 64
    %v2117 = vpop.permute.xlu0 %2116
    %v2120 = vmul.f32 %v2077, %v2115
    %v2121 = vmul.f32 %v2079, %v2117
    %v2122 = vpack.c.bf16 %v2120, %v2120
    %v2123 = vpack.c.bf16 %v2121, %v2121
    %v2126 = vunpack.c.l.b16 %v2122
    %v2127 = vunpack.c.l.b16 %v2123
    %v2128 = vrot.slane %v2126, 5
    %v2129 = vrot.slane %v2127, 4
    %v2130 = vsel %vm269, %v2129, %v2128
    %v2131 = vpack.c.b16 %v2130, %v2130
    %2132 = vrot.lane.b32.xlu0 %v2131, 32
    %v2133 = vpop.permute.xlu0 %2132
    %v2135 = vsel %vm390, %v2133, 0
    %2137 = vmatprep.subr.bf16.mxu0 0
    %2138 = vmatpush1.bf16.msra.mxu0 %v1436
    %2139 = vmatprep.subr.bf16.mxu0 0
    %2140 = vmatpush1.bf16.msra.mxu0 %v1437
    %2141 = vmatprep.subr.bf16.mxu0 0
    %2142 = vmatpush1.bf16.msra.mxu0 0
    %2143 = vmatprep.subr.bf16.mxu0 0
    %2144 = vmatpush1.bf16.msra.mxu0 0
    %2145 = vmatprep.subr.bf16.mxu0 0
    %2146 = vmatpush1.bf16.msra.mxu0 0
    %2147 = vmatprep.subr.bf16.mxu0 0
    %2148 = vmatpush1.bf16.msra.mxu0 0
    %2149 = vmatprep.subr.bf16.mxu0 0
    %2150 = vmatpush1.bf16.msra.mxu0 0
    %2151 = vmatprep.subr.bf16.mxu0 0
    %2152 = vmatpush1.bf16.msra.mxu0 0
    %2153 = vmatprep.subr.bf16.mxu0 0
    %2154 = vmatpush1.bf16.msra.mxu0 0
    %2155 = vmatprep.subr.bf16.mxu0 0
    %2156 = vmatpush1.bf16.msra.mxu0 0
    %2157 = vmatprep.subr.bf16.mxu0 0
    %2158 = vmatpush1.bf16.msra.mxu0 0
    %2159 = vmatprep.subr.bf16.mxu0 0
    %2160 = vmatpush1.bf16.msra.mxu0 0
    %2161 = vmatprep.subr.bf16.mxu0 0
    %2162 = vmatpush1.bf16.msra.mxu0 0
    %2163 = vmatprep.subr.bf16.mxu0 0
    %2164 = vmatpush1.bf16.msra.mxu0 0
    %2165 = vmatprep.subr.bf16.mxu0 0
    %2166 = vmatpush1.bf16.msra.mxu0 0
    %2167 = vmatprep.subr.bf16.mxu0 0
    %2168 = vmatpush1.bf16.msra.mxu0 0
    %2169 = vmatprep.mubr.bf16.mxu0 0
    %2170 = vmatmul.mubr.bf16.gmra.mrb[0].mxu0 %v2135
    %v2171 = vpop.f32.mrb[0].mxu0
    %v2172 = vadd.f32 0.0, %v2171
    %v2173 = vpop.f32.mrb[0].mxu0
    %v2174 = vpop.f32.mrb[0].mxu0
    %v2175 = vpop.f32.mrb[0].mxu0
    %2176 = vdwg.mxu0
    %v2178 = vrot.slane %v2172, 2
    %v2179 = vrot.slane %v2172, 3
    %v2182 = vadd.f32 %v1414, %v2178
    %v2183 = vadd.f32 %v1417, %v2179
    %v2184 = vxor.u32 %v2182, 2147483648
    %v2185 = vxor.u32 %v2183, 2147483648
    %v2186 = vmul.f32 %v2184, 1.442695
    %v2187 = vpow.pop %v2186
    %v2188 = vmul.f32 %v2185, 1.442695
    %v2189 = vpow.pop %v2188
    %v2190 = vadd.f32 %v2187, 1.0
    %v2191 = vadd.f32 %v2189, 1.0
    %v2192 = vrcp.pop %v2190
    %v2193 = vmul.f32 1.0, %v2192
    %v2194 = vrcp.pop %v2191
    %v2195 = vmul.f32 1.0, %v2194
    %v2196 = vtanh.pop %v2182
    %v2197 = vtanh.pop %v2183
    %v2200 = vrot.slane %v2108, 7
    %v2201 = vrot.slane %v2109, 7
    %v2204 = vmul.f32 %v2193, %v2200
    %v2205 = vmul.f32 %v2195, %v2201
    %2208 = vrot.lane.b32.xlu0 %v2196, 64
    %v2209 = vpop.permute.xlu0 %2208
    %2210 = vrot.lane.b32.xlu0 %v2197, 64
    %v2211 = vpop.permute.xlu0 %2210
    %v2214 = vmul.f32 %v2193, %v2209
    %v2215 = vmul.f32 %v2195, %v2211
    %2218 = vrot.lane.b32.xlu0 %v2214, 32
    %v2219 = vpop.permute.xlu0 %2218
    %2220 = vrot.lane.b32.xlu0 %v2215, 32
    %v2221 = vpop.permute.xlu0 %2220
    %v2224 = vadd.f32 %v2204, %v2219
    %v2225 = vadd.f32 %v2205, %v2221
    %v2226 = vtanh.pop %v2224
    %v2227 = vtanh.pop %v2225
    %2230 = vrot.lane.b32.xlu0 %v2226, 64
    %v2231 = vpop.permute.xlu0 %2230
    %2232 = vrot.lane.b32.xlu0 %v2227, 64
    %v2233 = vpop.permute.xlu0 %2232
    %v2236 = vmul.f32 %v2193, %v2231
    %v2237 = vmul.f32 %v2195, %v2233
    %v2238 = vpack.c.bf16 %v2236, %v2236
    %v2239 = vpack.c.bf16 %v2237, %v2237
    %v2242 = vunpack.c.l.b16 %v2238
    %v2243 = vunpack.c.l.b16 %v2239
    %v2244 = vrot.slane %v2242, 6
    %v2245 = vrot.slane %v2243, 5
    %v2246 = vsel %vm269, %v2245, %v2244
    %v2247 = vpack.c.b16 %v2246, %v2246
    %2248 = vrot.lane.b32.xlu0 %v2247, 32
    %v2249 = vpop.permute.xlu0 %2248
    %v2251 = vsel %vm390, %v2249, 0
    %2253 = vmatprep.subr.bf16.mxu0 0
    %2254 = vmatpush1.bf16.msra.mxu0 %v1436
    %2255 = vmatprep.subr.bf16.mxu0 0
    %2256 = vmatpush1.bf16.msra.mxu0 %v1437
    %2257 = vmatprep.subr.bf16.mxu0 0
    %2258 = vmatpush1.bf16.msra.mxu0 0
    %2259 = vmatprep.subr.bf16.mxu0 0
    %2260 = vmatpush1.bf16.msra.mxu0 0
    %2261 = vmatprep.subr.bf16.mxu0 0
    %2262 = vmatpush1.bf16.msra.mxu0 0
    %2263 = vmatprep.subr.bf16.mxu0 0
    %2264 = vmatpush1.bf16.msra.mxu0 0
    %2265 = vmatprep.subr.bf16.mxu0 0
    %2266 = vmatpush1.bf16.msra.mxu0 0
    %2267 = vmatprep.subr.bf16.mxu0 0
    %2268 = vmatpush1.bf16.msra.mxu0 0
    %2269 = vmatprep.subr.bf16.mxu0 0
    %2270 = vmatpush1.bf16.msra.mxu0 0
    %2271 = vmatprep.subr.bf16.mxu0 0
    %2272 = vmatpush1.bf16.msra.mxu0 0
    %2273 = vmatprep.subr.bf16.mxu0 0
    %2274 = vmatpush1.bf16.msra.mxu0 0
    %2275 = vmatprep.subr.bf16.mxu0 0
    %2276 = vmatpush1.bf16.msra.mxu0 0
    %2277 = vmatprep.subr.bf16.mxu0 0
    %2278 = vmatpush1.bf16.msra.mxu0 0
    %2279 = vmatprep.subr.bf16.mxu0 0
    %2280 = vmatpush1.bf16.msra.mxu0 0
    %2281 = vmatprep.subr.bf16.mxu0 0
    %2282 = vmatpush1.bf16.msra.mxu0 0
    %2283 = vmatprep.subr.bf16.mxu0 0
    %2284 = vmatpush1.bf16.msra.mxu0 0
    %2285 = vmatprep.mubr.bf16.mxu0 0
    %2286 = vmatmul.mubr.bf16.gmra.mrb[0].mxu0 %v2251
    %v2287 = vpop.f32.mrb[0].mxu0
    %v2288 = vadd.f32 0.0, %v2287
    %v2289 = vpop.f32.mrb[0].mxu0
    %v2290 = vpop.f32.mrb[0].mxu0
    %v2291 = vpop.f32.mrb[0].mxu0
    %2292 = vdwg.mxu0
    %v2294 = vrot.slane %v2288, 1
    %v2295 = vrot.slane %v2288, 2
    %v2298 = vadd.f32 %v1414, %v2294
    %v2299 = vadd.f32 %v1417, %v2295
    %v2300 = vxor.u32 %v2298, 2147483648
    %v2301 = vxor.u32 %v2299, 2147483648
    %v2302 = vmul.f32 %v2300, 1.442695
    %v2303 = vpow.pop %v2302
    %v2304 = vmul.f32 %v2301, 1.442695
    %v2305 = vpow.pop %v2304
    %v2306 = vadd.f32 %v2303, 1.0
    %v2307 = vadd.f32 %v2305, 1.0
    %v2308 = vrcp.pop %v2306
    %v2309 = vmul.f32 1.0, %v2308
    %v2310 = vrcp.pop %v2307
    %v2311 = vmul.f32 1.0, %v2310
    %v2312 = vtanh.pop %v2298
    %v2313 = vtanh.pop %v2299
    %v2316 = vrot.slane %v2224, 7
    %v2317 = vrot.slane %v2225, 7
    %v2320 = vmul.f32 %v2309, %v2316
    %v2321 = vmul.f32 %v2311, %v2317
    %2324 = vrot.lane.b32.xlu0 %v2312, 64
    %v2325 = vpop.permute.xlu0 %2324
    %2326 = vrot.lane.b32.xlu0 %v2313, 64
    %v2327 = vpop.permute.xlu0 %2326
    %v2330 = vmul.f32 %v2309, %v2325
    %v2331 = vmul.f32 %v2311, %v2327
    %2334 = vrot.lane.b32.xlu0 %v2330, 32
    %v2335 = vpop.permute.xlu0 %2334
    %2336 = vrot.lane.b32.xlu0 %v2331, 32
    %v2337 = vpop.permute.xlu0 %2336
    %v2340 = vadd.f32 %v2320, %v2335
    %v2341 = vadd.f32 %v2321, %v2337
    %v2342 = vtanh.pop %v2340
    %v2343 = vtanh.pop %v2341
    %2346 = vrot.lane.b32.xlu0 %v2342, 64
    %v2347 = vpop.permute.xlu0 %2346
    %2348 = vrot.lane.b32.xlu0 %v2343, 64
    %v2349 = vpop.permute.xlu0 %2348
    %v2352 = vmul.f32 %v2309, %v2347
    %v2353 = vmul.f32 %v2311, %v2349
    %2356 = vrot.lane.b32.xlu0 %v2352, 32
    %v2357 = vpop.permute.xlu0 %2356
    %2358 = vrot.lane.b32.xlu0 %v2353, 32
    %v2359 = vpop.permute.xlu0 %2358
    %2362 = vst.msk [vmem:[#allocation17 - $0x6] sm:$0x80] %vm1313, %v2357
    %2363 = vst.msk [vmem:[#allocation17 - $0x4] sm:$0x80] %vm1313, %v2359
    %2366 = vrot.lane.b32.xlu0 %v2340, 96
    %v2367 = vpop.permute.xlu0 %2366
    %2368 = vrot.lane.b32.xlu0 %v2341, 96
    %v2369 = vpop.permute.xlu0 %2368
    %2372 = vst.msk [vmem:[#allocation19 - $0x6] sm:$0x80] %vm1313, %v2367
    %2373 = vst.msk [vmem:[#allocation19 - $0x4] sm:$0x80] %vm1313, %v2369
    %v2374 = vsel %vm1326, %v1543, %v1657
    %v2375 = vsel %vm1326, %v1544, %v1658
    %v2376 = vsel %vm1329, %v2374, %v1772
    %v2377 = vsel %vm1329, %v2375, %v1773
    %v2378 = vsel %vm1332, %v2376, %v1888
    %v2379 = vsel %vm1332, %v2377, %v1889
    %v2380 = vsel %vm1335, %v2378, %v2004
    %v2381 = vsel %vm1335, %v2379, %v2005
    %v2382 = vsel %vm1338, %v2380, %v2120
    %v2383 = vsel %vm1338, %v2381, %v2121
    %v2384 = vsel %vm1341, %v2382, %v2236
    %v2385 = vsel %vm1341, %v2383, %v2237
    %v2386 = vsel %vm1344, %v2384, %v2352
    %v2387 = vsel %vm1344, %v2385, %v2353
    %v2388 = vpack.c.bf16 %v2387, %v2386
    %v2389 = vld [vmem:[#allocation5] sm:$0xf]
    %v2390 = vld [vmem:[#allocation5 + $0x4] sm:$0xf]
    %v2391 = vld [vmem:[%s8] sm:$0xf]
    %v2392 = vld [vmem:[%s8 + $0x4] sm:$0xf]
    %v2393 = vld [vmem:[%s8 + $0x8] sm:$0xf]
    %v2394 = vld [vmem:[%s8 + $0xc] sm:$0xf]
    %v2395 = vld [vmem:[%s8 + $0x10] sm:$0xf]
    %v2396 = vld [vmem:[%s8 + $0x14] sm:$0xf]
    %v2397 = vld [vmem:[%s8 + $0x18] sm:$0xf]
    %v2398 = vld [vmem:[%s8 + $0x1c] sm:$0xf]
    %v2399 = vld [vmem:[%s9] sm:$0x1]
    %v2401 = vlaneseq
    %v2402 = vshrl.u32 %v2401, 7
    %v2403 = vsub.s32 0, %v2402
    %v2404 = vrot.slane %v2399, %v2403
    %v2408 = vunpack.c.l.b16 %v2389
    %v2409 = vunpack.c.l.b16 %v2390
    %v2410 = vpack.c.b16 %v2409, %v2408
    %v2419 = vunpack.c.l.b16 %v2391
    %v2420 = vunpack.c.l.b16 %v2392
    %v2421 = vunpack.c.l.b16 %v2393
    %v2422 = vunpack.c.l.b16 %v2394
    %v2423 = vunpack.c.l.b16 %v2395
    %v2424 = vunpack.c.l.b16 %v2396
    %v2425 = vunpack.c.l.b16 %v2397
    %v2426 = vunpack.c.l.b16 %v2398
    %v2427 = vpack.c.b16 %v2420, %v2419
    %v2428 = vpack.c.b16 %v2422, %v2421
    %v2429 = vpack.c.b16 %v2424, %v2423
    %v2430 = vpack.c.b16 %v2426, %v2425
    %vm2435 = vcmask 523264
    %v2437 = vsel %vm2435, %v2410, 0
    %2439 = vmatprep.subr.bf16.mxu0 0
    %2440 = vmatpush1.bf16.msra.mxu0 %v2427
    %2441 = vmatprep.subr.bf16.mxu0 0
    %2442 = vmatpush1.bf16.msra.mxu0 %v2428
    %2443 = vmatprep.subr.bf16.mxu0 0
    %2444 = vmatpush1.bf16.msra.mxu0 %v2429
    %2445 = vmatprep.subr.bf16.mxu0 0
    %2446 = vmatpush1.bf16.msra.mxu0 %v2430
    %2447 = vmatprep.subr.bf16.mxu0 0
    %2448 = vmatpush1.bf16.msra.mxu0 0
    %2449 = vmatprep.subr.bf16.mxu0 0
    %2450 = vmatpush1.bf16.msra.mxu0 0
    %2451 = vmatprep.subr.bf16.mxu0 0
    %2452 = vmatpush1.bf16.msra.mxu0 0
    %2453 = vmatprep.subr.bf16.mxu0 0
    %2454 = vmatpush1.bf16.msra.mxu0 0
    %2455 = vmatprep.subr.bf16.mxu0 0
    %2456 = vmatpush1.bf16.msra.mxu0 0
    %2457 = vmatprep.subr.bf16.mxu0 0
    %2458 = vmatpush1.bf16.msra.mxu0 0
    %2459 = vmatprep.subr.bf16.mxu0 0
    %2460 = vmatpush1.bf16.msra.mxu0 0
    %2461 = vmatprep.subr.bf16.mxu0 0
    %2462 = vmatpush1.bf16.msra.mxu0 0
    %2463 = vmatprep.subr.bf16.mxu0 0
    %2464 = vmatpush1.bf16.msra.mxu0 0
    %2465 = vmatprep.subr.bf16.mxu0 0
    %2466 = vmatpush1.bf16.msra.mxu0 0
    %2467 = vmatprep.subr.bf16.mxu0 0
    %2468 = vmatpush1.bf16.msra.mxu0 0
    %2469 = vmatprep.subr.bf16.mxu0 0
    %2470 = vmatpush1.bf16.msra.mxu0 0
    %2471 = vmatprep.mubr.bf16.mxu0 0
    %2472 = vmatmul.mubr.bf16.gmra.mrb[0].mxu0 %v2437
    %v2473 = vpop.f32.mrb[0].mxu0
    %v2474 = vadd.f32 %v2404, %v2473
    %v2475 = vpop.f32.mrb[0].mxu0
    %v2476 = vpop.f32.mrb[0].mxu0
    %v2477 = vadd.f32 %v2404, %v2476
    %v2478 = vpop.f32.mrb[0].mxu0
    %2479 = vdwg.mxu0
    %v2480 = vpack.c.bf16 %v2477, %v2474
    %v2482 = vunpack.c.l.b16 %v2480
    %v2483 = vunpack.c.h.b16 %v2480
    %v2484 = vpack.c.b16 %v2482, %v2482
    %v2485 = vpack.c.b16 %v2483, %v2483
    %v2486 = vld [vmem:[#allocation11] sm:$0xf]
    %v2487 = vld [vmem:[#allocation11 + $0x4] sm:$0xf]
    %v2488 = vld [vmem:[#allocation11 + $0x8] sm:$0xf]
    %v2489 = vld [vmem:[#allocation11 + $0xc] sm:$0xf]
    %2491 = vrot.lane.b32.xlu0 %v2388, 32
    %v2492 = vpop.permute.xlu0 %2491
    %v2497 = vunpack.c.l.b16 %v2486
    %v2498 = vunpack.c.l.b16 %v2487
    %v2499 = vunpack.c.l.b16 %v2488
    %v2500 = vunpack.c.l.b16 %v2489
    %v2501 = vpack.c.b16 %v2498, %v2497
    %v2502 = vpack.c.b16 %v2500, %v2499
    %v2506 = vsel %vm390, %v2492, 0
    %2508 = vmatprep.subr.bf16.mxu0 0
    %2509 = vmatpush1.bf16.msra.mxu0 %v2501
    %2510 = vmatprep.subr.bf16.mxu0 0
    %2511 = vmatpush1.bf16.msra.mxu0 %v2502
    %2512 = vmatprep.subr.bf16.mxu0 0
    %2513 = vmatpush1.bf16.msra.mxu0 0
    %2514 = vmatprep.subr.bf16.mxu0 0
    %2515 = vmatpush1.bf16.msra.mxu0 0
    %2516 = vmatprep.subr.bf16.mxu0 0
    %2517 = vmatpush1.bf16.msra.mxu0 0
    %2518 = vmatprep.subr.bf16.mxu0 0
    %2519 = vmatpush1.bf16.msra.mxu0 0
    %2520 = vmatprep.subr.bf16.mxu0 0
    %2521 = vmatpush1.bf16.msra.mxu0 0
    %2522 = vmatprep.subr.bf16.mxu0 0
    %2523 = vmatpush1.bf16.msra.mxu0 0
    %2524 = vmatprep.subr.bf16.mxu0 0
    %2525 = vmatpush1.bf16.msra.mxu0 0
    %2526 = vmatprep.subr.bf16.mxu0 0
    %2527 = vmatpush1.bf16.msra.mxu0 0
    %2528 = vmatprep.subr.bf16.mxu0 0
    %2529 = vmatpush1.bf16.msra.mxu0 0
    %2530 = vmatprep.subr.bf16.mxu0 0
    %2531 = vmatpush1.bf16.msra.mxu0 0
    %2532 = vmatprep.subr.bf16.mxu0 0
    %2533 = vmatpush1.bf16.msra.mxu0 0
    %2534 = vmatprep.subr.bf16.mxu0 0
    %2535 = vmatpush1.bf16.msra.mxu0 0
    %2536 = vmatprep.subr.bf16.mxu0 0
    %2537 = vmatpush1.bf16.msra.mxu0 0
    %2538 = vmatprep.subr.bf16.mxu0 0
    %2539 = vmatpush1.bf16.msra.mxu0 0
    %2540 = vmatprep.mubr.bf16.mxu0 0
    %2541 = vmatmul.mubr.bf16.gmra.mrb[0].mxu0 %v2506
    %v2542 = vpop.f32.mrb[0].mxu0
    %v2543 = vadd.f32 0.0, %v2542
    %v2544 = vpop.f32.mrb[0].mxu0
    %v2545 = vpop.f32.mrb[0].mxu0
    %v2546 = vadd.f32 0.0, %v2545
    %v2547 = vpop.f32.mrb[0].mxu0
    %2548 = vdwg.mxu0
    %v2549 = vpack.c.bf16 %v2546, %v2543
    %v2551 = vunpack.c.l.b16 %v2549
    %v2552 = vunpack.c.h.b16 %v2549
    %v2553 = vpack.c.b16 %v2551, %v2551
    %v2554 = vpack.c.b16 %v2552, %v2552
    %v2556 = vsel %vm390, %v2553, 0
    %v2559 = vsel %vm390, %v2484, 0
    %2561 = vmatprep.subr.bf16.mxu0 0
    %2562 = vmatpush1.bf16.xpose.msra.mxu0 %v2559
    %2563 = vmatprep.subr.bf16.mxu0 0
    %2564 = vmatpush1.bf16.xpose.msra.mxu0 0
    %2565 = vmatprep.subr.bf16.mxu0 0
    %2566 = vmatpush1.bf16.xpose.msra.mxu0 0
    %2567 = vmatprep.subr.bf16.mxu0 0
    %2568 = vmatpush1.bf16.xpose.msra.mxu0 0
    %2569 = vmatprep.subr.bf16.mxu0 0
    %2570 = vmatpush1.bf16.xpose.msra.mxu0 0
    %2571 = vmatprep.subr.bf16.mxu0 0
    %2572 = vmatpush1.bf16.xpose.msra.mxu0 0
    %2573 = vmatprep.subr.bf16.mxu0 0
    %2574 = vmatpush1.bf16.xpose.msra.mxu0 0
    %2575 = vmatprep.subr.bf16.mxu0 0
    %2576 = vmatpush1.bf16.xpose.msra.mxu0 0
    %2577 = vmatprep.subr.bf16.mxu0 0
    %2578 = vmatpush1.bf16.xpose.msra.mxu0 0
    %2579 = vmatprep.subr.bf16.mxu0 0
    %2580 = vmatpush1.bf16.xpose.msra.mxu0 0
    %2581 = vmatprep.subr.bf16.mxu0 0
    %2582 = vmatpush1.bf16.xpose.msra.mxu0 0
    %2583 = vmatprep.subr.bf16.mxu0 0
    %2584 = vmatpush1.bf16.xpose.msra.mxu0 0
    %2585 = vmatprep.subr.bf16.mxu0 0
    %2586 = vmatpush1.bf16.xpose.msra.mxu0 0
    %2587 = vmatprep.subr.bf16.mxu0 0
    %2588 = vmatpush1.bf16.xpose.msra.mxu0 0
    %2589 = vmatprep.subr.bf16.mxu0 0
    %2590 = vmatpush1.bf16.xpose.msra.mxu0 0
    %2591 = vmatprep.subr.bf16.mxu0 0
    %2592 = vmatpush1.bf16.xpose.msra.mxu0 0
    %2593 = vmatprep.mubr.bf16.mxu0 0
    %2594 = vmatmul.mubr.bf16.gmra.mrb[0].mxu0 %v2556
    %v2595 = vpop.f32.mrb[0].mxu0
    %v2596 = vadd.f32 0.0, %v2595
    %v2597 = vpop.f32.mrb[0].mxu0
    %v2598 = vpop.f32.mrb[0].mxu0
    %v2599 = vpop.f32.mrb[0].mxu0
    %2600 = vdwg.mxu0
    %v2602 = vsel %vm390, %v2554, 0
    %v2605 = vsel %vm390, %v2485, 0
    %2607 = vmatprep.subr.bf16.mxu0 0
    %2608 = vmatpush1.bf16.xpose.msra.mxu0 %v2605
    %2609 = vmatprep.subr.bf16.mxu0 0
    %2610 = vmatpush1.bf16.xpose.msra.mxu0 0
    %2611 = vmatprep.subr.bf16.mxu0 0
    %2612 = vmatpush1.bf16.xpose.msra.mxu0 0
    %2613 = vmatprep.subr.bf16.mxu0 0
    %2614 = vmatpush1.bf16.xpose.msra.mxu0 0
    %2615 = vmatprep.subr.bf16.mxu0 0
    %2616 = vmatpush1.bf16.xpose.msra.mxu0 0
    %2617 = vmatprep.subr.bf16.mxu0 0
    %2618 = vmatpush1.bf16.xpose.msra.mxu0 0
    %2619 = vmatprep.subr.bf16.mxu0 0
    %2620 = vmatpush1.bf16.xpose.msra.mxu0 0
    %2621 = vmatprep.subr.bf16.mxu0 0
    %2622 = vmatpush1.bf16.xpose.msra.mxu0 0
    %2623 = vmatprep.subr.bf16.mxu0 0
    %2624 = vmatpush1.bf16.xpose.msra.mxu0 0
    %2625 = vmatprep.subr.bf16.mxu0 0
    %2626 = vmatpush1.bf16.xpose.msra.mxu0 0
    %2627 = vmatprep.subr.bf16.mxu0 0
    %2628 = vmatpush1.bf16.xpose.msra.mxu0 0
    %2629 = vmatprep.subr.bf16.mxu0 0
    %2630 = vmatpush1.bf16.xpose.msra.mxu0 0
    %2631 = vmatprep.subr.bf16.mxu0 0
    %2632 = vmatpush1.bf16.xpose.msra.mxu0 0
    %2633 = vmatprep.subr.bf16.mxu0 0
    %2634 = vmatpush1.bf16.xpose.msra.mxu0 0
    %2635 = vmatprep.subr.bf16.mxu0 0
    %2636 = vmatpush1.bf16.xpose.msra.mxu0 0
    %2637 = vmatprep.subr.bf16.mxu0 0
    %2638 = vmatpush1.bf16.xpose.msra.mxu0 0
    %2639 = vmatprep.mubr.bf16.mxu0 0
    %2640 = vmatmul.mubr.bf16.gmra.mrb[0].mxu0 %v2602
    %v2641 = vpop.f32.mrb[0].mxu0
    %v2642 = vadd.f32 0.0, %v2641
    %v2643 = vpop.f32.mrb[0].mxu0
    %v2644 = vpop.f32.mrb[0].mxu0
    %v2645 = vpop.f32.mrb[0].mxu0
    %2646 = vdwg.mxu0
    %vm2647 = vcmask 64512
    %v2648 = vsel %vm2647, %v2596, -inf
    %2649 = vmax.xlane.f32.xlu0 %v2648
    %v2650 = vpop.xlane.xlu0 %2649
    %v2651 = vsel %vm2647, %v2642, -inf
    %2652 = vmax.xlane.f32.xlu0 %v2651
    %v2653 = vpop.xlane.xlu0 %2652
    %v2654 = vsub.f32 %v2596, %v2650
    %v2655 = vsub.f32 %v2642, %v2653
    %v2656 = vmul.f32 %v2654, 1.442695
    %v2657 = vpow.pop %v2656
    %v2658 = vmul.f32 %v2655, 1.442695
    %v2659 = vpow.pop %v2658
    %v2660 = vsel %vm2647, %v2657, 0.0
    %2661 = vadd.xlane.f32.xlu0 %v2660
    %v2662 = vpop.xlane.xlu0 %2661
    %v2663 = vsel %vm2647, %v2659, 0.0
    %2664 = vadd.xlane.f32.xlu0 %v2663
    %v2665 = vpop.xlane.xlu0 %2664
    %v2666 = vrcp.pop %v2662
    %v2667 = vrcp.pop %v2665
    %v2668 = vmul.f32 %v2657, %v2666
    %v2669 = vmul.f32 %v2659, %v2667
    %v2670 = vpack.c.bf16 %v2668, %v2668
    %v2671 = vpack.c.bf16 %v2669, %v2669
    %v2673 = vsel %vm2647, %v2670, 0
    %v2675 = vsel %vm1335, %v2484, 0
    %2677 = vmatprep.subr.bf16.mxu0 0
    %2678 = vmatpush1.bf16.msra.mxu0 %v2675
    %2679 = vmatprep.subr.bf16.mxu0 0
    %2680 = vmatpush1.bf16.msra.mxu0 0
    %2681 = vmatprep.subr.bf16.mxu0 0
    %2682 = vmatpush1.bf16.msra.mxu0 0
    %2683 = vmatprep.subr.bf16.mxu0 0
    %2684 = vmatpush1.bf16.msra.mxu0 0
    %2685 = vmatprep.subr.bf16.mxu0 0
    %2686 = vmatpush1.bf16.msra.mxu0 0
    %2687 = vmatprep.subr.bf16.mxu0 0
    %2688 = vmatpush1.bf16.msra.mxu0 0
    %2689 = vmatprep.subr.bf16.mxu0 0
    %2690 = vmatpush1.bf16.msra.mxu0 0
    %2691 = vmatprep.subr.bf16.mxu0 0
    %2692 = vmatpush1.bf16.msra.mxu0 0
    %2693 = vmatprep.subr.bf16.mxu0 0
    %2694 = vmatpush1.bf16.msra.mxu0 0
    %2695 = vmatprep.subr.bf16.mxu0 0
    %2696 = vmatpush1.bf16.msra.mxu0 0
    %2697 = vmatprep.subr.bf16.mxu0 0
    %2698 = vmatpush1.bf16.msra.mxu0 0
    %2699 = vmatprep.subr.bf16.mxu0 0
    %2700 = vmatpush1.bf16.msra.mxu0 0
    %2701 = vmatprep.subr.bf16.mxu0 0
    %2702 = vmatpush1.bf16.msra.mxu0 0
    %2703 = vmatprep.subr.bf16.mxu0 0
    %2704 = vmatpush1.bf16.msra.mxu0 0
    %2705 = vmatprep.subr.bf16.mxu0 0
    %2706 = vmatpush1.bf16.msra.mxu0 0
    %2707 = vmatprep.subr.bf16.mxu0 0
    %2708 = vmatpush1.bf16.msra.mxu0 0
    %2709 = vmatprep.mubr.bf16.mxu0 0
    %2710 = vmatmul.mubr.bf16.gmra.mrb[0].mxu0 %v2673
    %v2711 = vpop.f32.mrb[0].mxu0
    %v2712 = vadd.f32 0.0, %v2711
    %v2713 = vpop.f32.mrb[0].mxu0
    %v2714 = vpop.f32.mrb[0].mxu0
    %v2715 = vpop.f32.mrb[0].mxu0
    %2716 = vdwg.mxu0
    %v2718 = vsel %vm2647, %v2671, 0
    %v2720 = vsel %vm1335, %v2485, 0
    %2722 = vmatprep.subr.bf16.mxu0 0
    %2723 = vmatpush1.bf16.msra.mxu0 %v2720
    %2724 = vmatprep.subr.bf16.mxu0 0
    %2725 = vmatpush1.bf16.msra.mxu0 0
    %2726 = vmatprep.subr.bf16.mxu0 0
    %2727 = vmatpush1.bf16.msra.mxu0 0
    %2728 = vmatprep.subr.bf16.mxu0 0
    %2729 = vmatpush1.bf16.msra.mxu0 0
    %2730 = vmatprep.subr.bf16.mxu0 0
    %2731 = vmatpush1.bf16.msra.mxu0 0
    %2732 = vmatprep.subr.bf16.mxu0 0
    %2733 = vmatpush1.bf16.msra.mxu0 0
    %2734 = vmatprep.subr.bf16.mxu0 0
    %2735 = vmatpush1.bf16.msra.mxu0 0
    %2736 = vmatprep.subr.bf16.mxu0 0
    %2737 = vmatpush1.bf16.msra.mxu0 0
    %2738 = vmatprep.subr.bf16.mxu0 0
    %2739 = vmatpush1.bf16.msra.mxu0 0
    %2740 = vmatprep.subr.bf16.mxu0 0
    %2741 = vmatpush1.bf16.msra.mxu0 0
    %2742 = vmatprep.subr.bf16.mxu0 0
    %2743 = vmatpush1.bf16.msra.mxu0 0
    %2744 = vmatprep.subr.bf16.mxu0 0
    %2745 = vmatpush1.bf16.msra.mxu0 0
    %2746 = vmatprep.subr.bf16.mxu0 0
    %2747 = vmatpush1.bf16.msra.mxu0 0
    %2748 = vmatprep.subr.bf16.mxu0 0
    %2749 = vmatpush1.bf16.msra.mxu0 0
    %2750 = vmatprep.subr.bf16.mxu0 0
    %2751 = vmatpush1.bf16.msra.mxu0 0
    %2752 = vmatprep.subr.bf16.mxu0 0
    %2753 = vmatpush1.bf16.msra.mxu0 0
    %2754 = vmatprep.mubr.bf16.mxu0 0
    %2755 = vmatmul.mubr.bf16.gmra.mrb[0].mxu0 %v2718
    %v2756 = vpop.f32.mrb[0].mxu0
    %v2757 = vadd.f32 0.0, %v2756
    %v2758 = vpop.f32.mrb[0].mxu0
    %v2759 = vpop.f32.mrb[0].mxu0
    %v2760 = vpop.f32.mrb[0].mxu0
    %2761 = vdwg.mxu0
    %v2762 = vld [vmem:[#allocation13] sm:$0xf]
    %v2763 = vld [vmem:[#allocation13 + $0x4] sm:$0xf]
    %v2764 = vld [vmem:[#allocation13 + $0x8] sm:$0xf]
    %v2765 = vld [vmem:[#allocation13 + $0xc] sm:$0xf]
    %v2766 = vpack.c.bf16 %v2757, %v2712
    %v2767 = vld [vmem:[%s12] sm:$0xf]
    %v2768 = vld [vmem:[%s12 + $0x4] sm:$0xf]
    %v2769 = vld [vmem:[%s12 + $0x8] sm:$0xf]
    %v2770 = vld [vmem:[%s12 + $0xc] sm:$0xf]
    %v2775 = vunpack.c.l.b16 %v2767
    %v2776 = vunpack.c.l.b16 %v2768
    %v2777 = vunpack.c.l.b16 %v2769
    %v2778 = vunpack.c.l.b16 %v2770
    %v2779 = vpack.c.b16 %v2776, %v2775
    %v2780 = vpack.c.b16 %v2778, %v2777
    %v2784 = vsel %vm390, %v2766, 0
    %2786 = vmatprep.subr.bf16.mxu0 0
    %2787 = vmatpush1.bf16.msra.mxu0 %v2779
    %2788 = vmatprep.subr.bf16.mxu0 0
    %2789 = vmatpush1.bf16.msra.mxu0 %v2780
    %2790 = vmatprep.subr.bf16.mxu0 0
    %2791 = vmatpush1.bf16.msra.mxu0 0
    %2792 = vmatprep.subr.bf16.mxu0 0
    %2793 = vmatpush1.bf16.msra.mxu0 0
    %2794 = vmatprep.subr.bf16.mxu0 0
    %2795 = vmatpush1.bf16.msra.mxu0 0
    %2796 = vmatprep.subr.bf16.mxu0 0
    %2797 = vmatpush1.bf16.msra.mxu0 0
    %2798 = vmatprep.subr.bf16.mxu0 0
    %2799 = vmatpush1.bf16.msra.mxu0 0
    %2800 = vmatprep.subr.bf16.mxu0 0
    %2801 = vmatpush1.bf16.msra.mxu0 0
    %2802 = vmatprep.subr.bf16.mxu0 0
    %2803 = vmatpush1.bf16.msra.mxu0 0
    %2804 = vmatprep.subr.bf16.mxu0 0
    %2805 = vmatpush1.bf16.msra.mxu0 0
    %2806 = vmatprep.subr.bf16.mxu0 0
    %2807 = vmatpush1.bf16.msra.mxu0 0
    %2808 = vmatprep.subr.bf16.mxu0 0
    %2809 = vmatpush1.bf16.msra.mxu0 0
    %2810 = vmatprep.subr.bf16.mxu0 0
    %2811 = vmatpush1.bf16.msra.mxu0 0
    %2812 = vmatprep.subr.bf16.mxu0 0
    %2813 = vmatpush1.bf16.msra.mxu0 0
    %2814 = vmatprep.subr.bf16.mxu0 0
    %2815 = vmatpush1.bf16.msra.mxu0 0
    %2816 = vmatprep.subr.bf16.mxu0 0
    %2817 = vmatpush1.bf16.msra.mxu0 0
    %2818 = vmatprep.mubr.bf16.mxu0 0
    %2819 = vmatmul.mubr.bf16.gmra.mrb[0].mxu0 %v2784
    %v2820 = vpop.f32.mrb[0].mxu0
    %v2821 = vadd.f32 0.0, %v2820
    %v2822 = vpop.f32.mrb[0].mxu0
    %v2823 = vpop.f32.mrb[0].mxu0
    %v2824 = vadd.f32 0.0, %v2823
    %v2825 = vpop.f32.mrb[0].mxu0
    %2826 = vdwg.mxu0
    %v2831 = vunpack.c.l.b16 %v2762
    %v2832 = vunpack.c.l.b16 %v2763
    %v2833 = vunpack.c.l.b16 %v2764
    %v2834 = vunpack.c.l.b16 %v2765
    %v2835 = vpack.c.b16 %v2832, %v2831
    %v2836 = vpack.c.b16 %v2834, %v2833
    %2839 = vmatprep.subr.bf16.mxu0 0
    %2840 = vmatpush1.bf16.msra.mxu0 %v2835
    %2841 = vmatprep.subr.bf16.mxu0 0
    %2842 = vmatpush1.bf16.msra.mxu0 %v2836
    %2843 = vmatprep.subr.bf16.mxu0 0
    %2844 = vmatpush1.bf16.msra.mxu0 0
    %2845 = vmatprep.subr.bf16.mxu0 0
    %2846 = vmatpush1.bf16.msra.mxu0 0
    %2847 = vmatprep.subr.bf16.mxu0 0
    %2848 = vmatpush1.bf16.msra.mxu0 0
    %2849 = vmatprep.subr.bf16.mxu0 0
    %2850 = vmatpush1.bf16.msra.mxu0 0
    %2851 = vmatprep.subr.bf16.mxu0 0
    %2852 = vmatpush1.bf16.msra.mxu0 0
    %2853 = vmatprep.subr.bf16.mxu0 0
    %2854 = vmatpush1.bf16.msra.mxu0 0
    %2855 = vmatprep.subr.bf16.mxu0 0
    %2856 = vmatpush1.bf16.msra.mxu0 0
    %2857 = vmatprep.subr.bf16.mxu0 0
    %2858 = vmatpush1.bf16.msra.mxu0 0
    %2859 = vmatprep.subr.bf16.mxu0 0
    %2860 = vmatpush1.bf16.msra.mxu0 0
    %2861 = vmatprep.subr.bf16.mxu0 0
    %2862 = vmatpush1.bf16.msra.mxu0 0
    %2863 = vmatprep.subr.bf16.mxu0 0
    %2864 = vmatpush1.bf16.msra.mxu0 0
    %2865 = vmatprep.subr.bf16.mxu0 0
    %2866 = vmatpush1.bf16.msra.mxu0 0
    %2867 = vmatprep.subr.bf16.mxu0 0
    %2868 = vmatpush1.bf16.msra.mxu0 0
    %2869 = vmatprep.subr.bf16.mxu0 0
    %2870 = vmatpush1.bf16.msra.mxu0 0
    %2871 = vmatprep.mubr.bf16.mxu0 0
    %2872 = vmatmul.mubr.bf16.gmra.mrb[0].mxu0 %v2506
    %v2873 = vpop.f32.mrb[0].mxu0
    %v2874 = vadd.f32 %v2821, %v2873
    %v2875 = vpop.f32.mrb[0].mxu0
    %v2876 = vpop.f32.mrb[0].mxu0
    %v2877 = vadd.f32 %v2824, %v2876
    %v2878 = vpop.f32.mrb[0].mxu0
    %2879 = vdwg.mxu0
    %v2880 = vld [vmem:[%s13] sm:$0x1]
    %v2882 = vlaneseq
    %v2883 = vshrl.u32 %v2882, 7
    %v2884 = vsub.s32 0, %v2883
    %v2885 = vrot.slane %v2880, %v2884
    %v2887 = vadd.f32 %v2874, %v2885
    %v2888 = vadd.f32 %v2877, %v2885
    %v2889 = vpack.c.bf16 %v2888, %v2887
    %v2890 = vld [vmem:[#allocation14] sm:$0xf]
    %v2891 = vld [vmem:[#allocation14 + $0x4] sm:$0xf]
    %v2892 = vld [vmem:[#allocation14 + $0x8] sm:$0xf]
    %v2893 = vld [vmem:[#allocation14 + $0xc] sm:$0xf]
    %v2894 = vld [vmem:[%s15] sm:$0x1]
    %v2896 = vlaneseq
    %v2897 = vshrl.u32 %v2896, 7
    %v2898 = vsub.s32 0, %v2897
    %v2899 = vrot.slane %v2894, %v2898
    %v2905 = vunpack.c.l.b16 %v2890
    %v2906 = vunpack.c.l.b16 %v2891
    %v2907 = vunpack.c.l.b16 %v2892
    %v2908 = vunpack.c.l.b16 %v2893
    %v2909 = vpack.c.b16 %v2906, %v2905
    %v2910 = vpack.c.b16 %v2908, %v2907
    %v2914 = vsel %vm390, %v2889, 0
    %2916 = vmatprep.subr.bf16.mxu0 0
    %2917 = vmatpush1.bf16.msra.mxu0 %v2909
    %2918 = vmatprep.subr.bf16.mxu0 0
    %2919 = vmatpush1.bf16.msra.mxu0 %v2910
    %2920 = vmatprep.subr.bf16.mxu0 0
    %2921 = vmatpush1.bf16.msra.mxu0 0
    %2922 = vmatprep.subr.bf16.mxu0 0
    %2923 = vmatpush1.bf16.msra.mxu0 0
    %2924 = vmatprep.subr.bf16.mxu0 0
    %2925 = vmatpush1.bf16.msra.mxu0 0
    %2926 = vmatprep.subr.bf16.mxu0 0
    %2927 = vmatpush1.bf16.msra.mxu0 0
    %2928 = vmatprep.subr.bf16.mxu0 0
    %2929 = vmatpush1.bf16.msra.mxu0 0
    %2930 = vmatprep.subr.bf16.mxu0 0
    %2931 = vmatpush1.bf16.msra.mxu0 0
    %2932 = vmatprep.subr.bf16.mxu0 0
    %2933 = vmatpush1.bf16.msra.mxu0 0
    %2934 = vmatprep.subr.bf16.mxu0 0
    %2935 = vmatpush1.bf16.msra.mxu0 0
    %2936 = vmatprep.subr.bf16.mxu0 0
    %2937 = vmatpush1.bf16.msra.mxu0 0
    %2938 = vmatprep.subr.bf16.mxu0 0
    %2939 = vmatpush1.bf16.msra.mxu0 0
    %2940 = vmatprep.subr.bf16.mxu0 0
    %2941 = vmatpush1.bf16.msra.mxu0 0
    %2942 = vmatprep.subr.bf16.mxu0 0
    %2943 = vmatpush1.bf16.msra.mxu0 0
    %2944 = vmatprep.subr.bf16.mxu0 0
    %2945 = vmatpush1.bf16.msra.mxu0 0
    %2946 = vmatprep.subr.bf16.mxu0 0
    %2947 = vmatpush1.bf16.msra.mxu0 0
    %2948 = vmatprep.mubr.bf16.mxu0 0
    %2949 = vmatmul.mubr.bf16.gmra.mrb[0].mxu0 %v2914
    %v2950 = vpop.f32.mrb[0].mxu0
    %v2951 = vadd.f32 %v2899, %v2950
    %v2952 = vpop.f32.mrb[0].mxu0
    %v2953 = vpop.f32.mrb[0].mxu0
    %v2954 = vadd.f32 %v2899, %v2953
    %v2955 = vpop.f32.mrb[0].mxu0
    %2956 = vdwg.mxu0
    %2957 = vst [vmem:[#allocation16] sm:$0xff] %v2951
    %2958 = vst [vmem:[#allocation16 + $0x8] sm:$0xff] %v2954
    // Predicated region
    $region98: #{tpu_custom_call.1} parent=1 // pred_check
      _
    $region99: #{tpu_custom_call.1} parent=1 // pred_check_branch
      %2960 = sbr.rel (0) target = $region101
    $region100: #{tpu_custom_call.1} parent=1 // pred_region
      %s2962 = ssub.s32 256, 256
      %2963 = vsyncadd [#allocation4], %s2962
      %s2964 = sshll.u32 [#allocation16], 4
      %s2965 = int_to_ptr.vmem [resolvable:$true] %s2964
      %2970 = dma.vmem_to_hbm [thread:$0]  %s2965, 256, %s16, [#allocation4], 128, 128, 8
    $region101: #{tpu_custom_call.1} parent=1 // pred_fallthru
      _
    // Predicated region
    $region102: #{tpu_custom_call.1} parent=1 // pred_check
      _
    $region103: #{tpu_custom_call.1} parent=1 // pred_check_branch
      %2972 = sbr.rel (0) target = $region105
    $region104: #{tpu_custom_call.1} parent=1 // pred_region
      %s2974 = ssub.s32 64, 64
      %2975 = vsyncadd [#allocation18], %s2974
      %s2976 = sshll.u32 [#allocation17], 4
      %s2977 = int_to_ptr.vmem [resolvable:$true] %s2976
      %2982 = dma.vmem_to_hbm [thread:$0]  %s2977, 64, %s17, [#allocation18], 32, 32, 2
    $region105: #{tpu_custom_call.1} parent=1 // pred_fallthru
      _
    // Predicated region
    $region106: #{tpu_custom_call.1} parent=1 // pred_check
      _
    $region107: #{tpu_custom_call.1} parent=1 // pred_check_branch
      %2984 = sbr.rel (0) target = $region109
    $region108: #{tpu_custom_call.1} parent=1 // pred_region
      %s2986 = ssub.s32 64, 64
      %2987 = vsyncadd [#allocation18], %s2986
      %s2988 = sshll.u32 [#allocation19], 4
      %s2989 = int_to_ptr.vmem [resolvable:$true] %s2988
      %2994 = dma.vmem_to_hbm [thread:$0]  %s2989, 64, %s18, [#allocation18], 32, 32, 2
    $region109: #{tpu_custom_call.1} parent=1 // pred_fallthru
      _
    // Predicated region
    $region110: #{tpu_custom_call.1} parent=1 // pred_check
      _
    $region111: #{tpu_custom_call.1} parent=1 // pred_check_branch
      %2996 = sbr.rel (0) target = $region113
    $region112: #{tpu_custom_call.1} parent=1 // pred_region
      %2997 = dma.done [#allocation4], 256
    $region113: #{tpu_custom_call.1} parent=1 // pred_fallthru
      _
    // Predicated region
    $region114: #{tpu_custom_call.1} parent=1 // pred_check
      _
    $region115: #{tpu_custom_call.1} parent=1 // pred_check_branch
      %2999 = sbr.rel (0) target = $region117
    $region116: #{tpu_custom_call.1} parent=1 // pred_region
      %3000 = dma.done [#allocation18], 64
    $region117: #{tpu_custom_call.1} parent=1 // pred_fallthru
      _
    // Predicated region
    $region118: #{tpu_custom_call.1} parent=1 // pred_check
      _
    $region119: #{tpu_custom_call.1} parent=1 // pred_check_branch
      %3002 = sbr.rel (0) target = $region121
    $region120: #{tpu_custom_call.1} parent=1 // pred_region
      %3003 = dma.done [#allocation18], 64
    $region121: #{tpu_custom_call.1} parent=1 // pred_fallthru
      _
    %3004 = vsyncpa [#allocation3], 1
    %3005 = vsyncpa [#allocation6], 1
    %3006 = vsyncpa [#allocation9], 1
    %3007 = vsyncpa [#allocation12], 1
    %3008 = vsyncpa [#allocation15], 1
    %3009 = vsyncpa [#allocation4], 1
    %3010 = vsyncpa [#allocation18], 1

</llo_original>
